<compile_context>
chip_gen: v7x
topology: tpu7x:2x2x1
jax: 0.10.0
libtpu: 0.0.40
codegen_flags: <defaults>
</compile_context>

<pallas_src>
import math
import jax
import jax.numpy as jnp
from jax.experimental import pallas as pl
from jax.experimental.pallas import tpu as pltpu

# ----- module hyper-parameters (structurally faithful, small) -----
D_IN = 3
D_OUT = 1
D_HIDDEN = 64
N_LAYERS = 8            # dims = [3, 64*8, 1]  -> 9 Linear layers
SKIP_IN = (4,)
BIAS = 0.5
SCALE = 1.0
INSIDE_OUTSIDE = False
N_LIN = N_LAYERS + 1    # number of Linear layers
SKIP_L = SKIP_IN[0]     # = 4


def _dims():
    return [D_IN] + [D_HIDDEN] * N_LAYERS + [D_OUT]


def init_params(key):
    """Deterministic geometric init matching NPullNetwork.__init__ (multires=0)."""
    dims = _dims()
    num_layers = len(dims)
    params = []
    for l in range(num_layers - 1):
        in_dim = dims[l]
        if l + 1 in SKIP_IN:
            out_dim = dims[l + 1] - dims[0]
        else:
            out_dim = dims[l + 1]
        key, wk = jax.random.split(key)
        if l == num_layers - 2:
            mean = math.sqrt(math.pi) / math.sqrt(dims[l])
            if INSIDE_OUTSIDE:
                mean = -mean
            W = mean + 1e-4 * jax.random.normal(wk, (out_dim, in_dim), jnp.float32)
            b = jnp.full((out_dim,), BIAS if INSIDE_OUTSIDE else -BIAS, jnp.float32)
        else:
            std = math.sqrt(2.0) / math.sqrt(out_dim)
            W = std * jax.random.normal(wk, (out_dim, in_dim), jnp.float32)
            b = jnp.zeros((out_dim,), jnp.float32)
        # nn.utils.weight_norm at init: g = ||v|| per row -> effective weight == W.
        params.append((W.T, b.reshape(1, out_dim)))  # stored as (in_dim, out_dim)
    return params


def prepare_params(params):
    """Host-side packing / folding of the geometric-init parameters.

    Returns (wcomb, bcomb, wh, bh, wlast_t, blast) with:
      wcomb   (3, 128)    bf16  [SCALE*W0 | W4_input_half/sqrt2 * SCALE]
      bcomb   (1, 128)    f32   [b0 | zeros]
      wh      (7, 64, 64) bf16  layers 1..7; layer 3 zero-padded to 64 outputs,
                                layer 4 = hidden half of the skip layer (/sqrt2)
      bh      (7, 1, 64)  f32   matching biases (layer 3 zero-padded)
      wlast_t (1, 64)     f32   transposed last layer, 1/SCALE folded in
      blast   (1, 1)      f32   1/SCALE folded in
    """
    inv_sqrt2 = 1.0 / math.sqrt(2.0)
    ws = [w for (w, _) in params]
    bs = [b for (_, b) in params]

    d_pre = ws[SKIP_L - 1].shape[1]          # 61 = D_HIDDEN - D_IN
    pad_c = D_HIDDEN - d_pre                 # 3

    hidden_w, hidden_b = [], []
    w4in = None
    for l in range(1, N_LIN - 1):            # l = 1 .. 7
        w, b = ws[l], bs[l]
        if l == SKIP_L - 1:
            # pad 61-wide output to 64 with zero columns; ReLU keeps them zero
            w = jnp.pad(w, ((0, 0), (0, pad_c)))
            b = jnp.pad(b, ((0, 0), (0, pad_c)))
        elif l == SKIP_L:
            # cat([x(61), inputs(3)])/sqrt(2) @ W  ==  x_pad64 @ W_h + raw_x @ W_in
            w_h = jnp.pad(w[:d_pre, :], ((0, pad_c), (0, 0))) * inv_sqrt2
            w4in = w[d_pre:, :] * (inv_sqrt2 * SCALE)
            w = w_h
        hidden_w.append(w.astype(jnp.bfloat16))
        hidden_b.append(b)

    # fused entry weights/bias: layer 0 and the skip-layer raw-input projection
    wcomb = jnp.concatenate([SCALE * ws[0], w4in], axis=1).astype(jnp.bfloat16)
    bcomb = jnp.concatenate(
        [bs[0], jnp.zeros((1, D_HIDDEN), jnp.float32)], axis=1).astype(jnp.float32)

    wh = jnp.stack(hidden_w, axis=0)              # (7, 64, 64) bf16
    bh = jnp.stack(hidden_b, axis=0)              # (7, 1, 64)  f32
    wlast_t = (ws[-1] / SCALE).T.astype(jnp.float32)   # (1, 64) f32
    blast = (bs[-1] / SCALE).astype(jnp.float32)       # (1, 1)  f32
    return (wcomb, bcomb, wh, bh, wlast_t, blast)


# ----- Pallas kernel: whole MLP for one tile of points -----
def npull_mlp_kernel(x_ref, wcomb_ref, bcomb_ref, wh_ref, bh_ref,
                     wlast_t_ref, blast_ref, out_ref):
    # raw input points; SCALE already folded into wcomb
    inp_bf = x_ref[...].astype(jnp.bfloat16)                       # (tm, 3)

    # fused layer-0 + skip-input projection: one (tm,3)@(3,128) MXU pass
    fused = jnp.dot(inp_bf, wcomb_ref[...],
                    preferred_element_type=jnp.float32) + bcomb_ref[...]   # (tm, 128)
    h_f32 = jnp.maximum(fused[:, :D_HIDDEN], 0.0)                  # layer-0 output, f32
    x_proj = fused[:, D_HIDDEN:]                                   # (tm, 64) f32, skip term
    h_bf = h_f32.astype(jnp.bfloat16)                              # bf16 copy for next dot

    # hidden layers 1..7 (unrolled); skip connection handled algebraically
    for j in range(N_LAYERS - 1):                                  # j = 0..6, l = j+1
        l = j + 1
        acc = jnp.dot(h_bf, wh_ref[j], preferred_element_type=jnp.float32)
        if l == SKIP_L:
            acc = acc + x_proj
        h_f32 = jnp.maximum(acc + bh_ref[j], 0.0)                  # f32 bias/ReLU (VPU)
        h_bf = h_f32.astype(jnp.bfloat16)                          # only bf16 kept live

    # last layer (no activation), transposed so the output is lane-dense:
    # (1,64) @ (64,tm) -> (1,tm); wlast kept in f32 to preserve geometric init.
    out = jnp.dot(wlast_t_ref[...], h_f32.T,
                  preferred_element_type=jnp.float32) + blast_ref[...]     # (1, tm)
    out_ref[...] = out.reshape(out_ref.shape)


def npull_forward(x, prep, tm=None):
    """x: (N, D_IN) float32. Returns (N, D_OUT) float32."""
    N = x.shape[0]
    if tm is None:
        # big tile to amortize per-step pipeline overhead; shrink so the grid
        # keeps >= 2 steps (v7x has 2 TensorCores) when N allows
        tm = 2048
        while tm > 256 and pl.cdiv(N, tm) < 2:
            tm //= 2
    n_blocks = pl.cdiv(N, tm)
    if n_blocks > 1 and n_blocks % 2 == 1:
        n_blocks += 1            # even grid -> balanced split across 2 TCs on v7x
    n_pad = n_blocks * tm
    xp = jnp.pad(x, ((0, n_pad - N), (0, 0))) if n_pad != N else x

    wcomb, bcomb, wh, bh, wlast_t, blast = prep

    def full_spec(a):
        nd = a.ndim
        return pl.BlockSpec(a.shape, lambda i, nd=nd: (0,) * nd)

    out = pl.pallas_call(
        npull_mlp_kernel,
        out_shape=jax.ShapeDtypeStruct((n_blocks, 1, tm), jnp.float32),
        grid_spec=pltpu.PrefetchScalarGridSpec(
            num_scalar_prefetch=0,
            grid=(n_blocks,),
            in_specs=[
                pl.BlockSpec((tm, D_IN), lambda i: (i, 0)),
                full_spec(wcomb), full_spec(bcomb),
                full_spec(wh), full_spec(bh),
                full_spec(wlast_t), full_spec(blast),
            ],
            # lane-dense output block: last dim = tm (multiple of 128)
            out_specs=pl.BlockSpec((1, 1, tm), lambda i: (i, 0, 0)),
        ),
        compiler_params=pltpu.CompilerParams(
            dimension_semantics=("parallel",),
            vmem_limit_bytes=32 * 1024 * 1024,
        ),
    )(xp, wcomb, bcomb, wh, bh, wlast_t, blast)
    # NOTE: padded tail rows hold garbage and are sliced off here.
    return out.reshape(n_pad, D_OUT)[:N]


# ----- pure-JAX references for correctness checks -----
def npull_forward_ref(x, params):
    """Original f32 semantics (concat skip, explicit SCALE)."""
    inputs = x * SCALE
    h = inputs
    for l, (w, b) in enumerate(params):
        if l in SKIP_IN:
            h = jnp.concatenate([h, inputs], axis=1) / math.sqrt(2.0)
        h = h @ w + b
        if l < N_LIN - 1:
            h = jnp.maximum(h, 0.0)
    return h / SCALE


def npull_forward_ref_prepared(x, prep):
    """Mirror of the kernel math (prepared params, bf16 dots, f32 accum)."""
    wcomb, bcomb, wh, bh, wlast_t, blast = prep
    xb = x.astype(jnp.bfloat16)
    fused = jnp.dot(xb, wcomb, preferred_element_type=jnp.float32) + bcomb
    h = jnp.maximum(fused[:, :D_HIDDEN], 0.0)
    x_proj = fused[:, D_HIDDEN:]
    hb = h.astype(jnp.bfloat16)
    for j in range(N_LAYERS - 1):
        l = j + 1
        acc = jnp.dot(hb, wh[j], preferred_element_type=jnp.float32)
        if l == SKIP_L:
            acc = acc + x_proj
        h = jnp.maximum(acc + bh[j], 0.0)
        hb = h.astype(jnp.bfloat16)
    return jnp.dot(h, wlast_t.T, preferred_element_type=jnp.float32) + blast


if __name__ == "__main__":
    key = jax.random.PRNGKey(0)
    pkey, xkey = jax.random.split(key)

    params = init_params(pkey)
    prep = prepare_params(params)

    N = 1000  # deliberately not a multiple of the tile -> exercises padding path
    x = jax.random.uniform(xkey, (N, D_IN), jnp.float32, minval=-1.0, maxval=1.0)

    out = jax.block_until_ready(npull_forward(x, prep))
    assert out.shape == (N, D_OUT)

    # exact-math mirror (same bf16/f32 mixed precision as the kernel)
    ref_bf = npull_forward_ref_prepared(x, prep)
    err_bf = jnp.max(jnp.abs(out - ref_bf))
    assert jnp.allclose(out, ref_bf, atol=5e-3, rtol=5e-3), f"bf16-mirror max err {err_bf}"

    # original full-f32 semantics (loosened tolerance for the bf16 matmul path)
    ref_f32 = npull_forward_ref(x, params)
    err_f32 = jnp.max(jnp.abs(out - ref_f32))
    assert jnp.allclose(out, ref_f32, atol=5e-2, rtol=5e-2), f"f32-ref max err {err_f32}"

    print("KERNEL_OK")
</pallas_src>

<mosaic_0001>
module attributes {stable_mosaic.version = 11 : i64} {
  func.func @npull_mlp_kernel(%arg0: i32, %arg1: memref<512x3xf32, #tpu.memory_space<vmem>>, %arg2: memref<3x128xbf16, #tpu.memory_space<vmem>>, %arg3: memref<1x128xf32, #tpu.memory_space<vmem>>, %arg4: memref<7x64x64xbf16, #tpu.memory_space<vmem>>, %arg5: memref<7x1x64xf32, #tpu.memory_space<vmem>>, %arg6: memref<1x64xf32, #tpu.memory_space<vmem>>, %arg7: memref<1x1xf32, #tpu.memory_space<vmem>>, %arg8: memref<1x1x512xf32, #tpu.memory_space<vmem>>) attributes {dimension_semantics = [#tpu.dimension_semantics<parallel>], iteration_bounds = array<i64: 2>, scalar_prefetch = 0 : i64, scratch_operands = 0 : i64, tpu.core_type = #tpu.core_type<tc>, window_params = [{transform_indices = @transform_0, window_bounds = array<i64: 512, 3>}, {pipeline_mode = #tpu.pipeline_mode<synchronous>, transform_indices = @transform_1, window_bounds = array<i64: 3, 128>}, {pipeline_mode = #tpu.pipeline_mode<synchronous>, transform_indices = @transform_2, window_bounds = array<i64: 1, 128>}, {pipeline_mode = #tpu.pipeline_mode<synchronous>, transform_indices = @transform_3, window_bounds = array<i64: 7, 64, 64>}, {pipeline_mode = #tpu.pipeline_mode<synchronous>, transform_indices = @transform_4, window_bounds = array<i64: 7, 1, 64>}, {pipeline_mode = #tpu.pipeline_mode<synchronous>, transform_indices = @transform_5, window_bounds = array<i64: 1, 64>}, {pipeline_mode = #tpu.pipeline_mode<synchronous>, transform_indices = @transform_6, window_bounds = array<i64: 1, 1>}, {transform_indices = @transform_7, window_bounds = array<i64: 1, 1, 512>}]} {
    %c0 = arith.constant 0 : index
    %c0_0 = arith.constant 0 : index
    %0 = vector.load %arg1[%c0, %c0_0] : memref<512x3xf32, #tpu.memory_space<vmem>>, vector<512x3xf32>
    %1 = arith.truncf %0 : vector<512x3xf32> to vector<512x3xbf16>
    %c0_1 = arith.constant 0 : index
    %c0_2 = arith.constant 0 : index
    %2 = vector.load %arg2[%c0_1, %c0_2] : memref<3x128xbf16, #tpu.memory_space<vmem>>, vector<3x128xbf16>
    %cst = arith.constant dense<0.000000e+00> : vector<512x128xf32>
    %3 = tpu.matmul %1, %2, %cst {dimension_numbers = #tpu.dot_dimension_numbers<[1], [0], [0], [1], [0, 0, 1, 1], [], []>} : vector<512x3xbf16>, vector<3x128xbf16>, vector<512x128xf32> -> vector<512x128xf32>
    %c0_3 = arith.constant 0 : index
    %c0_4 = arith.constant 0 : index
    %4 = vector.load %arg3[%c0_3, %c0_4] : memref<1x128xf32, #tpu.memory_space<vmem>>, vector<1x128xf32>
    %5 = vector.broadcast %4 : vector<1x128xf32> to vector<512x128xf32>
    %6 = arith.addf %3, %5 : vector<512x128xf32>
    %7 = vector.extract_strided_slice %6 {offsets = [0, 0], sizes = [512, 64], strides = [1, 1]} : vector<512x128xf32> to vector<512x64xf32>
    %cst_5 = arith.constant 0.000000e+00 : f32
    %8 = vector.broadcast %cst_5 : f32 to vector<512x64xf32>
    %9 = arith.maximumf %7, %8 : vector<512x64xf32>
    %10 = vector.extract_strided_slice %6 {offsets = [0, 64], sizes = [512, 64], strides = [1, 1]} : vector<512x128xf32> to vector<512x64xf32>
    %11 = arith.truncf %9 : vector<512x64xf32> to vector<512x64xbf16>
    %c0_6 = arith.constant 0 : index
    %c0_7 = arith.constant 0 : index
    %c0_8 = arith.constant 0 : index
    %12 = vector.load %arg4[%c0_6, %c0_7, %c0_8] : memref<7x64x64xbf16, #tpu.memory_space<vmem>>, vector<1x64x64xbf16>
    %13 = vector.shape_cast %12 : vector<1x64x64xbf16> to vector<64x64xbf16>
    %cst_9 = arith.constant dense<0.000000e+00> : vector<512x64xf32>
    %14 = tpu.matmul %11, %13, %cst_9 {dimension_numbers = #tpu.dot_dimension_numbers<[1], [0], [0], [1], [0, 0, 1, 1], [], []>} : vector<512x64xbf16>, vector<64x64xbf16>, vector<512x64xf32> -> vector<512x64xf32>
    %c0_10 = arith.constant 0 : index
    %c0_11 = arith.constant 0 : index
    %c0_12 = arith.constant 0 : index
    %15 = vector.load %arg5[%c0_10, %c0_11, %c0_12] : memref<7x1x64xf32, #tpu.memory_space<vmem>>, vector<1x1x64xf32>
    %16 = vector.shape_cast %15 : vector<1x1x64xf32> to vector<1x64xf32>
    %17 = vector.broadcast %16 : vector<1x64xf32> to vector<512x64xf32>
    %18 = arith.addf %14, %17 : vector<512x64xf32>
    %cst_13 = arith.constant 0.000000e+00 : f32
    %19 = vector.broadcast %cst_13 : f32 to vector<512x64xf32>
    %20 = arith.maximumf %18, %19 : vector<512x64xf32>
    %21 = arith.truncf %20 : vector<512x64xf32> to vector<512x64xbf16>
    %c1 = arith.constant 1 : index
    %c0_14 = arith.constant 0 : index
    %c0_15 = arith.constant 0 : index
    %22 = vector.load %arg4[%c1, %c0_14, %c0_15] : memref<7x64x64xbf16, #tpu.memory_space<vmem>>, vector<1x64x64xbf16>
    %23 = vector.shape_cast %22 : vector<1x64x64xbf16> to vector<64x64xbf16>
    %cst_16 = arith.constant dense<0.000000e+00> : vector<512x64xf32>
    %24 = tpu.matmul %21, %23, %cst_16 {dimension_numbers = #tpu.dot_dimension_numbers<[1], [0], [0], [1], [0, 0, 1, 1], [], []>} : vector<512x64xbf16>, vector<64x64xbf16>, vector<512x64xf32> -> vector<512x64xf32>
    %c1_17 = arith.constant 1 : index
    %c0_18 = arith.constant 0 : index
    %c0_19 = arith.constant 0 : index
    %25 = vector.load %arg5[%c1_17, %c0_18, %c0_19] : memref<7x1x64xf32, #tpu.memory_space<vmem>>, vector<1x1x64xf32>
    %26 = vector.shape_cast %25 : vector<1x1x64xf32> to vector<1x64xf32>
    %27 = vector.broadcast %26 : vector<1x64xf32> to vector<512x64xf32>
    %28 = arith.addf %24, %27 : vector<512x64xf32>
    %cst_20 = arith.constant 0.000000e+00 : f32
    %29 = vector.broadcast %cst_20 : f32 to vector<512x64xf32>
    %30 = arith.maximumf %28, %29 : vector<512x64xf32>
    %31 = arith.truncf %30 : vector<512x64xf32> to vector<512x64xbf16>
    %c2 = arith.constant 2 : index
    %c0_21 = arith.constant 0 : index
    %c0_22 = arith.constant 0 : index
    %32 = vector.load %arg4[%c2, %c0_21, %c0_22] : memref<7x64x64xbf16, #tpu.memory_space<vmem>>, vector<1x64x64xbf16>
    %33 = vector.shape_cast %32 : vector<1x64x64xbf16> to vector<64x64xbf16>
    %cst_23 = arith.constant dense<0.000000e+00> : vector<512x64xf32>
    %34 = tpu.matmul %31, %33, %cst_23 {dimension_numbers = #tpu.dot_dimension_numbers<[1], [0], [0], [1], [0, 0, 1, 1], [], []>} : vector<512x64xbf16>, vector<64x64xbf16>, vector<512x64xf32> -> vector<512x64xf32>
    %c2_24 = arith.constant 2 : index
    %c0_25 = arith.constant 0 : index
    %c0_26 = arith.constant 0 : index
    %35 = vector.load %arg5[%c2_24, %c0_25, %c0_26] : memref<7x1x64xf32, #tpu.memory_space<vmem>>, vector<1x1x64xf32>
    %36 = vector.shape_cast %35 : vector<1x1x64xf32> to vector<1x64xf32>
    %37 = vector.broadcast %36 : vector<1x64xf32> to vector<512x64xf32>
    %38 = arith.addf %34, %37 : vector<512x64xf32>
    %cst_27 = arith.constant 0.000000e+00 : f32
    %39 = vector.broadcast %cst_27 : f32 to vector<512x64xf32>
    %40 = arith.maximumf %38, %39 : vector<512x64xf32>
    %41 = arith.truncf %40 : vector<512x64xf32> to vector<512x64xbf16>
    %c3 = arith.constant 3 : index
    %c0_28 = arith.constant 0 : index
    %c0_29 = arith.constant 0 : index
    %42 = vector.load %arg4[%c3, %c0_28, %c0_29] : memref<7x64x64xbf16, #tpu.memory_space<vmem>>, vector<1x64x64xbf16>
    %43 = vector.shape_cast %42 : vector<1x64x64xbf16> to vector<64x64xbf16>
    %cst_30 = arith.constant dense<0.000000e+00> : vector<512x64xf32>
    %44 = tpu.matmul %41, %43, %cst_30 {dimension_numbers = #tpu.dot_dimension_numbers<[1], [0], [0], [1], [0, 0, 1, 1], [], []>} : vector<512x64xbf16>, vector<64x64xbf16>, vector<512x64xf32> -> vector<512x64xf32>
    %45 = arith.addf %44, %10 : vector<512x64xf32>
    %c3_31 = arith.constant 3 : index
    %c0_32 = arith.constant 0 : index
    %c0_33 = arith.constant 0 : index
    %46 = vector.load %arg5[%c3_31, %c0_32, %c0_33] : memref<7x1x64xf32, #tpu.memory_space<vmem>>, vector<1x1x64xf32>
    %47 = vector.shape_cast %46 : vector<1x1x64xf32> to vector<1x64xf32>
    %48 = vector.broadcast %47 : vector<1x64xf32> to vector<512x64xf32>
    %49 = arith.addf %45, %48 : vector<512x64xf32>
    %cst_34 = arith.constant 0.000000e+00 : f32
    %50 = vector.broadcast %cst_34 : f32 to vector<512x64xf32>
    %51 = arith.maximumf %49, %50 : vector<512x64xf32>
    %52 = arith.truncf %51 : vector<512x64xf32> to vector<512x64xbf16>
    %c4 = arith.constant 4 : index
    %c0_35 = arith.constant 0 : index
    %c0_36 = arith.constant 0 : index
    %53 = vector.load %arg4[%c4, %c0_35, %c0_36] : memref<7x64x64xbf16, #tpu.memory_space<vmem>>, vector<1x64x64xbf16>
    %54 = vector.shape_cast %53 : vector<1x64x64xbf16> to vector<64x64xbf16>
    %cst_37 = arith.constant dense<0.000000e+00> : vector<512x64xf32>
    %55 = tpu.matmul %52, %54, %cst_37 {dimension_numbers = #tpu.dot_dimension_numbers<[1], [0], [0], [1], [0, 0, 1, 1], [], []>} : vector<512x64xbf16>, vector<64x64xbf16>, vector<512x64xf32> -> vector<512x64xf32>
    %c4_38 = arith.constant 4 : index
    %c0_39 = arith.constant 0 : index
    %c0_40 = arith.constant 0 : index
    %56 = vector.load %arg5[%c4_38, %c0_39, %c0_40] : memref<7x1x64xf32, #tpu.memory_space<vmem>>, vector<1x1x64xf32>
    %57 = vector.shape_cast %56 : vector<1x1x64xf32> to vector<1x64xf32>
    %58 = vector.broadcast %57 : vector<1x64xf32> to vector<512x64xf32>
    %59 = arith.addf %55, %58 : vector<512x64xf32>
    %cst_41 = arith.constant 0.000000e+00 : f32
    %60 = vector.broadcast %cst_41 : f32 to vector<512x64xf32>
    %61 = arith.maximumf %59, %60 : vector<512x64xf32>
    %62 = arith.truncf %61 : vector<512x64xf32> to vector<512x64xbf16>
    %c5 = arith.constant 5 : index
    %c0_42 = arith.constant 0 : index
    %c0_43 = arith.constant 0 : index
    %63 = vector.load %arg4[%c5, %c0_42, %c0_43] : memref<7x64x64xbf16, #tpu.memory_space<vmem>>, vector<1x64x64xbf16>
    %64 = vector.shape_cast %63 : vector<1x64x64xbf16> to vector<64x64xbf16>
    %cst_44 = arith.constant dense<0.000000e+00> : vector<512x64xf32>
    %65 = tpu.matmul %62, %64, %cst_44 {dimension_numbers = #tpu.dot_dimension_numbers<[1], [0], [0], [1], [0, 0, 1, 1], [], []>} : vector<512x64xbf16>, vector<64x64xbf16>, vector<512x64xf32> -> vector<512x64xf32>
    %c5_45 = arith.constant 5 : index
    %c0_46 = arith.constant 0 : index
    %c0_47 = arith.constant 0 : index
    %66 = vector.load %arg5[%c5_45, %c0_46, %c0_47] : memref<7x1x64xf32, #tpu.memory_space<vmem>>, vector<1x1x64xf32>
    %67 = vector.shape_cast %66 : vector<1x1x64xf32> to vector<1x64xf32>
    %68 = vector.broadcast %67 : vector<1x64xf32> to vector<512x64xf32>
    %69 = arith.addf %65, %68 : vector<512x64xf32>
    %cst_48 = arith.constant 0.000000e+00 : f32
    %70 = vector.broadcast %cst_48 : f32 to vector<512x64xf32>
    %71 = arith.maximumf %69, %70 : vector<512x64xf32>
    %72 = arith.truncf %71 : vector<512x64xf32> to vector<512x64xbf16>
    %c6 = arith.constant 6 : index
    %c0_49 = arith.constant 0 : index
    %c0_50 = arith.constant 0 : index
    %73 = vector.load %arg4[%c6, %c0_49, %c0_50] : memref<7x64x64xbf16, #tpu.memory_space<vmem>>, vector<1x64x64xbf16>
    %74 = vector.shape_cast %73 : vector<1x64x64xbf16> to vector<64x64xbf16>
    %cst_51 = arith.constant dense<0.000000e+00> : vector<512x64xf32>
    %75 = tpu.matmul %72, %74, %cst_51 {dimension_numbers = #tpu.dot_dimension_numbers<[1], [0], [0], [1], [0, 0, 1, 1], [], []>} : vector<512x64xbf16>, vector<64x64xbf16>, vector<512x64xf32> -> vector<512x64xf32>
    %c6_52 = arith.constant 6 : index
    %c0_53 = arith.constant 0 : index
    %c0_54 = arith.constant 0 : index
    %76 = vector.load %arg5[%c6_52, %c0_53, %c0_54] : memref<7x1x64xf32, #tpu.memory_space<vmem>>, vector<1x1x64xf32>
    %77 = vector.shape_cast %76 : vector<1x1x64xf32> to vector<1x64xf32>
    %78 = vector.broadcast %77 : vector<1x64xf32> to vector<512x64xf32>
    %79 = arith.addf %75, %78 : vector<512x64xf32>
    %cst_55 = arith.constant 0.000000e+00 : f32
    %80 = vector.broadcast %cst_55 : f32 to vector<512x64xf32>
    %81 = arith.maximumf %79, %80 : vector<512x64xf32>
    %c0_56 = arith.constant 0 : index
    %c0_57 = arith.constant 0 : index
    %82 = vector.load %arg6[%c0_56, %c0_57] : memref<1x64xf32, #tpu.memory_space<vmem>>, vector<1x64xf32>
    %83 = tpu.transpose %81, [1, 0] : vector<512x64xf32> -> vector<64x512xf32>
    %cst_58 = arith.constant dense<0.000000e+00> : vector<1x512xf32>
    %84 = tpu.matmul %82, %83, %cst_58 {dimension_numbers = #tpu.dot_dimension_numbers<[1], [0], [0], [1], [0, 0, 1, 1], [], []>} : vector<1x64xf32>, vector<64x512xf32>, vector<1x512xf32> -> vector<1x512xf32>
    %c0_59 = arith.constant 0 : index
    %c0_60 = arith.constant 0 : index
    %85 = vector.load %arg7[%c0_59, %c0_60] : memref<1x1xf32, #tpu.memory_space<vmem>>, vector<1x1xf32>
    %86 = vector.broadcast %85 : vector<1x1xf32> to vector<1x512xf32>
    %87 = arith.addf %84, %86 : vector<1x512xf32>
    %88 = vector.shape_cast %87 : vector<1x512xf32> to vector<1x1x512xf32>
    %c0_61 = arith.constant 0 : index
    %c0_62 = arith.constant 0 : index
    %c0_63 = arith.constant 0 : index
    %89 = vector.load %arg8[%c0_61, %c0_62, %c0_63] : memref<1x1x512xf32, #tpu.memory_space<vmem>>, vector<1x1x512xf32>
    tpu.vector_store %arg8[%c0_61, %c0_62, %c0_63], %88 {strides = array<i32>} : memref<1x1x512xf32, #tpu.memory_space<vmem>>, vector<1x1x512xf32>,
    return
  }
  func.func @transform_0(%arg0: i32) -> (i32, i32) {
    %c0_i32 = arith.constant 0 : i32
    %c0_i32_0 = arith.constant 0 : i32
    return %arg0, %c0_i32 : i32, i32
  }
  func.func @transform_1(%arg0: i32) -> (i32, i32) {
    %c0_i32 = arith.constant 0 : i32
    %c0_i32_0 = arith.constant 0 : i32
    %c0_i32_1 = arith.constant 0 : i32
    return %c0_i32, %c0_i32_0 : i32, i32
  }
  func.func @transform_2(%arg0: i32) -> (i32, i32) {
    %c0_i32 = arith.constant 0 : i32
    %c0_i32_0 = arith.constant 0 : i32
    %c0_i32_1 = arith.constant 0 : i32
    return %c0_i32, %c0_i32_0 : i32, i32
  }
  func.func @transform_3(%arg0: i32) -> (i32, i32, i32) {
    %c0_i32 = arith.constant 0 : i32
    %c0_i32_0 = arith.constant 0 : i32
    %c0_i32_1 = arith.constant 0 : i32
    %c0_i32_2 = arith.constant 0 : i32
    return %c0_i32, %c0_i32_0, %c0_i32_1 : i32, i32, i32
  }
  func.func @transform_4(%arg0: i32) -> (i32, i32, i32) {
    %c0_i32 = arith.constant 0 : i32
    %c0_i32_0 = arith.constant 0 : i32
    %c0_i32_1 = arith.constant 0 : i32
    %c0_i32_2 = arith.constant 0 : i32
    return %c0_i32, %c0_i32_0, %c0_i32_1 : i32, i32, i32
  }
  func.func @transform_5(%arg0: i32) -> (i32, i32) {
    %c0_i32 = arith.constant 0 : i32
    %c0_i32_0 = arith.constant 0 : i32
    %c0_i32_1 = arith.constant 0 : i32
    return %c0_i32, %c0_i32_0 : i32, i32
  }
  func.func @transform_6(%arg0: i32) -> (i32, i32) {
    %c0_i32 = arith.constant 0 : i32
    %c0_i32_0 = arith.constant 0 : i32
    %c0_i32_1 = arith.constant 0 : i32
    return %c0_i32, %c0_i32_0 : i32, i32
  }
  func.func @transform_7(%arg0: i32) -> (i32, i32, i32) {
    %c0_i32 = arith.constant 0 : i32
    %c0_i32_0 = arith.constant 0 : i32
    %c0_i32_1 = arith.constant 0 : i32
    return %arg0, %c0_i32, %c0_i32_0 : i32, i32, i32
  }
}

</mosaic_0001>

<llo_original>
// kernel: tpu_custom_call.1
$region0: #{tpu_custom_call.1}
  #allocation0 [shape = 'u32[]', space=smem, size = 0x4, offset = 0x4, fixed_abs, tag = 'smem constant byte address 0x4 - core index']
  #allocation1 [shape = 'u32[144,128]{1,0:T(1,128)}', space=vmem, size = 0x12000, scoped, tag = 'internal scratch']
  #allocation2 [shape = 'f32[1,1]{1,0:T(1,128)S(1)}', space=vmem, size = 0x200, scoped, tag = 'scoped memory for tpu_custom_call.1']
  %s0 = inlined_call_operand.vmem [shape: f32[1024,3], index: 0, kind: input, shape index: {}]
  %s1 = inlined_call_operand.vmem [shape: bf16[3,128], index: 1, kind: input, shape index: {}]
  %s2 = inlined_call_operand.vmem [shape: f32[1,128], index: 2, kind: input, shape index: {}]
  %s3 = inlined_call_operand.vmem [shape: bf16[7,64,64], index: 3, kind: input, shape index: {}]
  %s4 = inlined_call_operand.vmem [shape: f32[7,1,64], index: 4, kind: input, shape index: {}]
  %s5 = inlined_call_operand.vmem [shape: f32[1,64], index: 5, kind: input, shape index: {}]
  %s6 = inlined_call_operand.<no memory space> [shape: f32[1,1], index: 6, kind: input, shape index: {}]
  %s7 = inlined_call_operand.hbm [shape: f32[2,1,512], index: 7, kind: output, shape index: {}]
  %s8 = sld [smem:[#allocation0]]
  $region61: #{tpu_custom_call.1} parent=0
    _
  %s10 = ssub.s32 1, %s8
  %s11 = scalar_select 0, %s10, %s8
  %v12 = vstv %s6
  %13 = vst [vmem:[#allocation2] sm:$0x1] %v12
  $region1: #{tpu_custom_call.1} parent=0
    #allocation3 [shape = 'u8[4096]{0}', space=vmem, size = 0x1000, scoped, tag = 'output window, operand 0']
    #allocation4 [shape = 's32[2]{0}', space=sflag, size = 0x8, scoped, tag = 'scoped memory for tpu_custom_call.1']
    %14 = vsyncpa [#allocation4], 0
    %s15 = scalar_lea.sflag [#allocation4], 1
    %16 = vsyncpa %s15, 0
    loop: start=0, step=1, limit=4
    $region2: #{tpu_custom_call.1} parent=1 // loop_pre_header
      _
    $region3: #{tpu_custom_call.1} parent=1 // loop_header
      %s18 = sphi 0, %s22
      %p19 = scmp.ge.s32.totalorder %s18, 4
      %s28 = sphi 0, %s30
      %s31 = sphi 0, %s28
      %s32 = sphi 0, %s31
      %s48 = sphi 0, %s32
      %s52 = sphi 0, %s52
      %s54 = sphi 0, %s52
      %s55 = sphi 0, %s54
      %s69 = sphi 0, %s55
      %s73 = sphi 0, %s73
      %s75 = sphi 0, %s73
      %s76 = sphi 0, %s75
      %s90 = sphi 0, %s76
      %s94 = sphi 0, %s94
      %s96 = sphi 0, %s94
      %s97 = sphi 0, %s96
      %s111 = sphi 0, %s97
      %s115 = sphi 0, %s115
      %s117 = sphi 0, %s115
      %s118 = sphi 0, %s117
      %s132 = sphi 0, %s118
      %s136 = sphi 0, %s136
      %s138 = sphi 0, %s136
      %s139 = sphi 0, %s138
      %s153 = sphi 0, %s139
      %s157 = sphi 0, %s157
      %s159 = sphi 0, %s157
      %s160 = sphi 0, %s159
      %s174 = sphi 0, %s160
      %s180 = sphi 0, %s182
      %s183 = sphi 0, %s180
      %s184 = sphi 0, %s183
      %s200 = sphi 0, %s184
    $region4: #{tpu_custom_call.1} parent=1 // loop_header_branch
      %21 = sbr.rel (%p19) target = $region8
    $region5: #{tpu_custom_call.1} parent=1 // loop_body
      %s23 = ssub.s32 %s18, 1
      %s24 = ssub.s32 %s18, 2
      %s25 = sadd.s32 %s18, 1
      %s26 = ssub.s32 %s18, %s25
      %p27 = scmp.eq.s32.totalorder %s26, 0
      %s29 = sadd.s32 %s28, 1
      %s30 = scalar_select %p27, %s28, %s29
      %p33 = pneg %p27
      %p34 = scmp.eq.s32.totalorder %s18, 1
      %p35 = por %p33, %p34
      %p36 = scmp.ne.s32.totalorder %s28, %s31
      %p37 = scmp.eq.s32.totalorder %s18, 0
      %p38 = por %p36, %p37
      %p39 = scmp.ne.s32.totalorder %s28, %s31
      %p40 = scmp.eq.s32.totalorder %s23, 1
      %p41 = por %p39, %p40
      %p42 = scmp.ne.s32.totalorder %s31, %s32
      %p43 = scmp.eq.s32.totalorder %s23, 0
      %p44 = por %p42, %p43
      %p45 = scmp.ne.s32.totalorder %s31, %s32
      %p46 = scmp.eq.s32.totalorder %s24, 1
      %p47 = por %p45, %p46
      %p49 = scmp.ne.s32.totalorder %s32, %s48
      %p50 = scmp.eq.s32.totalorder %s24, 0
      %p51 = por %p49, %p50
      %s53 = sadd.s32 %s52, 1
      %p56 = scmp.eq.s32.totalorder %s18, 1
      %p57 = scmp.ne.s32.totalorder %s52, %s54
      %p58 = scmp.eq.s32.totalorder %s18, 0
      %p59 = por %p57, %p58
      %p60 = scmp.ne.s32.totalorder %s52, %s54
      %p61 = scmp.eq.s32.totalorder %s23, 1
      %p62 = por %p60, %p61
      %p63 = scmp.ne.s32.totalorder %s54, %s55
      %p64 = scmp.eq.s32.totalorder %s23, 0
      %p65 = por %p63, %p64
      %p66 = scmp.ne.s32.totalorder %s54, %s55
      %p67 = scmp.eq.s32.totalorder %s24, 1
      %p68 = por %p66, %p67
      %p70 = scmp.ne.s32.totalorder %s55, %s69
      %p71 = scmp.eq.s32.totalorder %s24, 0
      %p72 = por %p70, %p71
      %s74 = sadd.s32 %s73, 1
      %p77 = scmp.eq.s32.totalorder %s18, 1
      %p78 = scmp.ne.s32.totalorder %s73, %s75
      %p79 = scmp.eq.s32.totalorder %s18, 0
      %p80 = por %p78, %p79
      %p81 = scmp.ne.s32.totalorder %s73, %s75
      %p82 = scmp.eq.s32.totalorder %s23, 1
      %p83 = por %p81, %p82
      %p84 = scmp.ne.s32.totalorder %s75, %s76
      %p85 = scmp.eq.s32.totalorder %s23, 0
      %p86 = por %p84, %p85
      %p87 = scmp.ne.s32.totalorder %s75, %s76
      %p88 = scmp.eq.s32.totalorder %s24, 1
      %p89 = por %p87, %p88
      %p91 = scmp.ne.s32.totalorder %s76, %s90
      %p92 = scmp.eq.s32.totalorder %s24, 0
      %p93 = por %p91, %p92
      %s95 = sadd.s32 %s94, 1
      %p98 = scmp.eq.s32.totalorder %s18, 1
      %p99 = scmp.ne.s32.totalorder %s94, %s96
      %p100 = scmp.eq.s32.totalorder %s18, 0
      %p101 = por %p99, %p100
      %p102 = scmp.ne.s32.totalorder %s94, %s96
      %p103 = scmp.eq.s32.totalorder %s23, 1
      %p104 = por %p102, %p103
      %p105 = scmp.ne.s32.totalorder %s96, %s97
      %p106 = scmp.eq.s32.totalorder %s23, 0
      %p107 = por %p105, %p106
      %p108 = scmp.ne.s32.totalorder %s96, %s97
      %p109 = scmp.eq.s32.totalorder %s24, 1
      %p110 = por %p108, %p109
      %p112 = scmp.ne.s32.totalorder %s97, %s111
      %p113 = scmp.eq.s32.totalorder %s24, 0
      %p114 = por %p112, %p113
      %s116 = sadd.s32 %s115, 1
      %p119 = scmp.eq.s32.totalorder %s18, 1
      %p120 = scmp.ne.s32.totalorder %s115, %s117
      %p121 = scmp.eq.s32.totalorder %s18, 0
      %p122 = por %p120, %p121
      %p123 = scmp.ne.s32.totalorder %s115, %s117
      %p124 = scmp.eq.s32.totalorder %s23, 1
      %p125 = por %p123, %p124
      %p126 = scmp.ne.s32.totalorder %s117, %s118
      %p127 = scmp.eq.s32.totalorder %s23, 0
      %p128 = por %p126, %p127
      %p129 = scmp.ne.s32.totalorder %s117, %s118
      %p130 = scmp.eq.s32.totalorder %s24, 1
      %p131 = por %p129, %p130
      %p133 = scmp.ne.s32.totalorder %s118, %s132
      %p134 = scmp.eq.s32.totalorder %s24, 0
      %p135 = por %p133, %p134
      %s137 = sadd.s32 %s136, 1
      %p140 = scmp.eq.s32.totalorder %s18, 1
      %p141 = scmp.ne.s32.totalorder %s136, %s138
      %p142 = scmp.eq.s32.totalorder %s18, 0
      %p143 = por %p141, %p142
      %p144 = scmp.ne.s32.totalorder %s136, %s138
      %p145 = scmp.eq.s32.totalorder %s23, 1
      %p146 = por %p144, %p145
      %p147 = scmp.ne.s32.totalorder %s138, %s139
      %p148 = scmp.eq.s32.totalorder %s23, 0
      %p149 = por %p147, %p148
      %p150 = scmp.ne.s32.totalorder %s138, %s139
      %p151 = scmp.eq.s32.totalorder %s24, 1
      %p152 = por %p150, %p151
      %p154 = scmp.ne.s32.totalorder %s139, %s153
      %p155 = scmp.eq.s32.totalorder %s24, 0
      %p156 = por %p154, %p155
      %s158 = sadd.s32 %s157, 1
      %p161 = scmp.eq.s32.totalorder %s18, 1
      %p162 = scmp.ne.s32.totalorder %s157, %s159
      %p163 = scmp.eq.s32.totalorder %s18, 0
      %p164 = por %p162, %p163
      %p165 = scmp.ne.s32.totalorder %s157, %s159
      %p166 = scmp.eq.s32.totalorder %s23, 1
      %p167 = por %p165, %p166
      %p168 = scmp.ne.s32.totalorder %s159, %s160
      %p169 = scmp.eq.s32.totalorder %s23, 0
      %p170 = por %p168, %p169
      %p171 = scmp.ne.s32.totalorder %s159, %s160
      %p172 = scmp.eq.s32.totalorder %s24, 1
      %p173 = por %p171, %p172
      %p175 = scmp.ne.s32.totalorder %s160, %s174
      %p176 = scmp.eq.s32.totalorder %s24, 0
      %p177 = por %p175, %p176
      %s178 = ssub.s32 %s18, %s25
      %p179 = scmp.eq.s32.totalorder %s178, 0
      %s181 = sadd.s32 %s180, 1
      %s182 = scalar_select %p179, %s180, %s181
      %p185 = pneg %p179
      %p186 = scmp.eq.s32.totalorder %s18, 1
      %p187 = por %p185, %p186
      %p188 = scmp.ne.s32.totalorder %s180, %s183
      %p189 = scmp.eq.s32.totalorder %s18, 0
      %p190 = por %p188, %p189
      %p191 = scmp.ne.s32.totalorder %s180, %s183
      %p192 = scmp.eq.s32.totalorder %s23, 1
      %p193 = por %p191, %p192
      %p194 = scmp.ne.s32.totalorder %s183, %s184
      %p195 = scmp.eq.s32.totalorder %s23, 0
      %p196 = por %p194, %p195
      %p197 = scmp.ne.s32.totalorder %s183, %s184
      %p198 = scmp.eq.s32.totalorder %s24, 1
      %p199 = por %p197, %p198
      %p201 = scmp.ne.s32.totalorder %s184, %s200
      %p202 = scmp.eq.s32.totalorder %s24, 0
      %p203 = por %p201, %p202
      %p204 = scmp.le.s32.totalorder 1, %s18
      %p205 = scmp.lt.s32.totalorder %s18, 3
      %p206 = pnand %p204, %p205
      %p207 = pneg %p206
      // Predicated region
      $region9: #{tpu_custom_call.1} parent=5 // pred_check
        _
      $region10: #{tpu_custom_call.1} parent=5 // pred_check_branch
        %209 = sbr.rel (%p206) target = $region12
      $region11: #{tpu_custom_call.1} parent=5 // pred_region
        %s210 = ssub.s32 %s18, 1
        // Predicated region
        $region13: #{tpu_custom_call.1} parent=11 // pred_check
          %p211 = pneg %p65
        $region14: #{tpu_custom_call.1} parent=11 // pred_check_branch
          %213 = sbr.rel (%p211) target = $region16
        $region15: #{tpu_custom_call.1} parent=11 // pred_region
          _
        $region16: #{tpu_custom_call.1} parent=11 // pred_fallthru
          _
        // Predicated region
        $region17: #{tpu_custom_call.1} parent=11 // pred_check
          %p214 = pneg %p86
        $region18: #{tpu_custom_call.1} parent=11 // pred_check_branch
          %216 = sbr.rel (%p214) target = $region20
        $region19: #{tpu_custom_call.1} parent=11 // pred_region
          _
        $region20: #{tpu_custom_call.1} parent=11 // pred_fallthru
          _
        // Predicated region
        $region21: #{tpu_custom_call.1} parent=11 // pred_check
          %p217 = pneg %p107
        $region22: #{tpu_custom_call.1} parent=11 // pred_check_branch
          %219 = sbr.rel (%p217) target = $region24
        $region23: #{tpu_custom_call.1} parent=11 // pred_region
          _
        $region24: #{tpu_custom_call.1} parent=11 // pred_fallthru
          _
        // Predicated region
        $region25: #{tpu_custom_call.1} parent=11 // pred_check
          %p220 = pneg %p128
        $region26: #{tpu_custom_call.1} parent=11 // pred_check_branch
          %222 = sbr.rel (%p220) target = $region28
        $region27: #{tpu_custom_call.1} parent=11 // pred_region
          _
        $region28: #{tpu_custom_call.1} parent=11 // pred_fallthru
          _
        // Predicated region
        $region29: #{tpu_custom_call.1} parent=11 // pred_check
          %p223 = pneg %p149
        $region30: #{tpu_custom_call.1} parent=11 // pred_check_branch
          %225 = sbr.rel (%p223) target = $region32
        $region31: #{tpu_custom_call.1} parent=11 // pred_region
          _
        $region32: #{tpu_custom_call.1} parent=11 // pred_fallthru
          _
        // Predicated region
        $region33: #{tpu_custom_call.1} parent=11 // pred_check
          %p226 = pneg %p170
        $region34: #{tpu_custom_call.1} parent=11 // pred_check_branch
          %228 = sbr.rel (%p226) target = $region36
        $region35: #{tpu_custom_call.1} parent=11 // pred_region
          _
        $region36: #{tpu_custom_call.1} parent=11 // pred_fallthru
          _
      $region12: #{tpu_custom_call.1} parent=5 // pred_fallthru
        _
      %p229 = scmp.lt.s32.totalorder %s18, 2
      // Predicated region
      $region37: #{tpu_custom_call.1} parent=5 // pred_check
        %p230 = pneg %p229
      $region38: #{tpu_custom_call.1} parent=5 // pred_check_branch
        %232 = sbr.rel (%p230) target = $region40
      $region39: #{tpu_custom_call.1} parent=5 // pred_region
        // Predicated region
        $region41: #{tpu_custom_call.1} parent=39 // pred_check
          %p233 = pneg %p38
        $region42: #{tpu_custom_call.1} parent=39 // pred_check_branch
          %235 = sbr.rel (%p233) target = $region44
        $region43: #{tpu_custom_call.1} parent=39 // pred_region
          %s236 = smul.u32 64, %s18
          %p237 = scmp.lt.s32.totalorder %s236, 127
          %s238 = scalar_select %p237, %s236, 127
          %s239 = smul.addr %s238, 8
          %s240 = scalar_lea.vmem %s0, %s239
          %s241 = smul.u32 64, %s18
        $region44: #{tpu_custom_call.1} parent=39 // pred_fallthru
          _
      $region40: #{tpu_custom_call.1} parent=5 // pred_fallthru
        _
      %p242 = scmp.le.s32.totalorder 1, %s18
      %p243 = scmp.lt.s32.totalorder %s18, 3
      %p244 = pnand %p242, %p243
      %p245 = pneg %p244
      // Predicated region
      $region45: #{tpu_custom_call.1} parent=5 // pred_check
        _
      $region46: #{tpu_custom_call.1} parent=5 // pred_check_branch
        %247 = sbr.rel (%p244) target = $region48
      $region47: #{tpu_custom_call.1} parent=5 // pred_region
        %s248 = ssub.s32 %s18, 1
        %s249 = smul.u32 64, %s23
        %p250 = scmp.lt.s32.totalorder %s249, 127
        %s251 = scalar_select %p250, %s249, 127
        %s252 = smul.addr %s251, 8
        %s253 = scalar_lea.vmem %s0, %s252
        %p254 = pneg %p44
        %p255 = pneg %p41
        %p256 = pneg %p65
        %p257 = pneg %p62
        %p258 = pneg %p86
        %p259 = pneg %p83
        %p260 = pneg %p107
        %p261 = pneg %p104
        %p262 = pneg %p128
        %p263 = pneg %p125
        %p264 = pneg %p149
        %p265 = pneg %p146
        %p266 = pneg %p170
        %p267 = pneg %p167
        %p268 = pneg %p196
        %p269 = pneg %p193
        %s270 = sand.u32 %s183, 1
        %s271 = scalar_lea.sflag [#allocation4], %s270
        %s272 = sand.u32 %s183, 1
        %s273 = smul.addr %s272, 4
        %s274 = scalar_lea.vmem [#allocation3], %s273
        %s275 = smul.u32 64, %s23
        %p276 = scmp.lt.s32.totalorder %s275, 127
        %s277 = scalar_select %p276, %s275, 127
        %s278 = smul.addr %s277, 8
        %s279 = scalar_lea.vmem %s0, %s278
        %s280 = smul.u32 64, %s23
        %v282 = vld [vmem:[%s279] sm:$0xff]
        %v283 = vld [vmem:[%s279 + $0x8] sm:$0xff]
        %v284 = vld [vmem:[%s279 + $0x10] sm:$0xff]
        %v285 = vld [vmem:[%s279 + $0x18] sm:$0xff]
        %v286 = vld [vmem:[%s279 + $0x20] sm:$0xff]
        %v287 = vld [vmem:[%s279 + $0x28] sm:$0xff]
        %v288 = vld [vmem:[%s279 + $0x30] sm:$0xff]
        %v289 = vld [vmem:[%s279 + $0x38] sm:$0xff]
        %v290 = vld [vmem:[%s279 + $0x40] sm:$0xff]
        %v291 = vld [vmem:[%s279 + $0x48] sm:$0xff]
        %v292 = vld [vmem:[%s279 + $0x50] sm:$0xff]
        %v293 = vld [vmem:[%s279 + $0x58] sm:$0xff]
        %v294 = vld [vmem:[%s279 + $0x60] sm:$0xff]
        %v295 = vld [vmem:[%s279 + $0x68] sm:$0xff]
        %v296 = vld [vmem:[%s279 + $0x70] sm:$0xff]
        %v297 = vld [vmem:[%s279 + $0x78] sm:$0xff]
        %v298 = vld [vmem:[%s279 + $0x80] sm:$0xff]
        %v299 = vld [vmem:[%s279 + $0x88] sm:$0xff]
        %v300 = vld [vmem:[%s279 + $0x90] sm:$0xff]
        %v301 = vld [vmem:[%s279 + $0x98] sm:$0xff]
        %v302 = vld [vmem:[%s279 + $0xa0] sm:$0xff]
        %v303 = vld [vmem:[%s279 + $0xa8] sm:$0xff]
        %v304 = vld [vmem:[%s279 + $0xb0] sm:$0xff]
        %v305 = vld [vmem:[%s279 + $0xb8] sm:$0xff]
        %v306 = vld [vmem:[%s279 + $0xc0] sm:$0xff]
        %v307 = vld [vmem:[%s279 + $0xc8] sm:$0xff]
        %v308 = vld [vmem:[%s279 + $0xd0] sm:$0xff]
        %v309 = vld [vmem:[%s279 + $0xd8] sm:$0xff]
        %v310 = vld [vmem:[%s279 + $0xe0] sm:$0xff]
        %v311 = vld [vmem:[%s279 + $0xe8] sm:$0xff]
        %v312 = vld [vmem:[%s279 + $0xf0] sm:$0xff]
        %v313 = vld [vmem:[%s279 + $0xf8] sm:$0xff]
        %v314 = vld [vmem:[%s279 + $0x100] sm:$0xff]
        %v315 = vld [vmem:[%s279 + $0x108] sm:$0xff]
        %v316 = vld [vmem:[%s279 + $0x110] sm:$0xff]
        %v317 = vld [vmem:[%s279 + $0x118] sm:$0xff]
        %v318 = vld [vmem:[%s279 + $0x120] sm:$0xff]
        %v319 = vld [vmem:[%s279 + $0x128] sm:$0xff]
        %v320 = vld [vmem:[%s279 + $0x130] sm:$0xff]
        %v321 = vld [vmem:[%s279 + $0x138] sm:$0xff]
        %v322 = vld [vmem:[%s279 + $0x140] sm:$0xff]
        %v323 = vld [vmem:[%s279 + $0x148] sm:$0xff]
        %v324 = vld [vmem:[%s279 + $0x150] sm:$0xff]
        %v325 = vld [vmem:[%s279 + $0x158] sm:$0xff]
        %v326 = vld [vmem:[%s279 + $0x160] sm:$0xff]
        %v327 = vld [vmem:[%s279 + $0x168] sm:$0xff]
        %v328 = vld [vmem:[%s279 + $0x170] sm:$0xff]
        %v329 = vld [vmem:[%s279 + $0x178] sm:$0xff]
        %v330 = vld [vmem:[%s279 + $0x180] sm:$0xff]
        %v331 = vld [vmem:[%s279 + $0x188] sm:$0xff]
        %v332 = vld [vmem:[%s279 + $0x190] sm:$0xff]
        %v333 = vld [vmem:[%s279 + $0x198] sm:$0xff]
        %v334 = vld [vmem:[%s279 + $0x1a0] sm:$0xff]
        %v335 = vld [vmem:[%s279 + $0x1a8] sm:$0xff]
        %v336 = vld [vmem:[%s279 + $0x1b0] sm:$0xff]
        %v337 = vld [vmem:[%s279 + $0x1b8] sm:$0xff]
        %v338 = vld [vmem:[%s279 + $0x1c0] sm:$0xff]
        %v339 = vld [vmem:[%s279 + $0x1c8] sm:$0xff]
        %v340 = vld [vmem:[%s279 + $0x1d0] sm:$0xff]
        %v341 = vld [vmem:[%s279 + $0x1d8] sm:$0xff]
        %v342 = vld [vmem:[%s279 + $0x1e0] sm:$0xff]
        %v343 = vld [vmem:[%s279 + $0x1e8] sm:$0xff]
        %v344 = vld [vmem:[%s279 + $0x1f0] sm:$0xff]
        %v345 = vld [vmem:[%s279 + $0x1f8] sm:$0xff]
        %v346 = vpack.c.bf16 %v283, %v282
        %v347 = vpack.c.bf16 %v285, %v284
        %v348 = vpack.c.bf16 %v287, %v286
        %v349 = vpack.c.bf16 %v289, %v288
        %v350 = vpack.c.bf16 %v291, %v290
        %v351 = vpack.c.bf16 %v293, %v292
        %v352 = vpack.c.bf16 %v295, %v294
        %v353 = vpack.c.bf16 %v297, %v296
        %v354 = vpack.c.bf16 %v299, %v298
        %v355 = vpack.c.bf16 %v301, %v300
        %v356 = vpack.c.bf16 %v303, %v302
        %v357 = vpack.c.bf16 %v305, %v304
        %v358 = vpack.c.bf16 %v307, %v306
        %v359 = vpack.c.bf16 %v309, %v308
        %v360 = vpack.c.bf16 %v311, %v310
        %v361 = vpack.c.bf16 %v313, %v312
        %v362 = vpack.c.bf16 %v315, %v314
        %v363 = vpack.c.bf16 %v317, %v316
        %v364 = vpack.c.bf16 %v319, %v318
        %v365 = vpack.c.bf16 %v321, %v320
        %v366 = vpack.c.bf16 %v323, %v322
        %v367 = vpack.c.bf16 %v325, %v324
        %v368 = vpack.c.bf16 %v327, %v326
        %v369 = vpack.c.bf16 %v329, %v328
        %v370 = vpack.c.bf16 %v331, %v330
        %v371 = vpack.c.bf16 %v333, %v332
        %v372 = vpack.c.bf16 %v335, %v334
        %v373 = vpack.c.bf16 %v337, %v336
        %v374 = vpack.c.bf16 %v339, %v338
        %v375 = vpack.c.bf16 %v341, %v340
        %v376 = vpack.c.bf16 %v343, %v342
        %v377 = vpack.c.bf16 %v345, %v344
        %v378 = vld [vmem:[%s1] sm:$0x3]
        %v379 = vld [vmem:[%s2] sm:$0x1]
        %v381 = vlaneseq
        %v382 = vshrl.u32 %v381, 7
        %v383 = vsub.s32 0, %v382
        %v384 = vrot.slane %v379, %v383
        %vm386 = vcmask 23552
        %v388 = vsel %vm386, %v346, 0
        %v391 = vsel %vm386, %v347, 0
        %v394 = vsel %vm386, %v348, 0
        %v397 = vsel %vm386, %v349, 0
        %v400 = vsel %vm386, %v350, 0
        %v403 = vsel %vm386, %v351, 0
        %v406 = vsel %vm386, %v352, 0
        %v409 = vsel %vm386, %v353, 0
        %v412 = vsel %vm386, %v354, 0
        %v415 = vsel %vm386, %v355, 0
        %v418 = vsel %vm386, %v356, 0
        %v421 = vsel %vm386, %v357, 0
        %v424 = vsel %vm386, %v358, 0
        %v427 = vsel %vm386, %v359, 0
        %v430 = vsel %vm386, %v360, 0
        %v433 = vsel %vm386, %v361, 0
        %v436 = vsel %vm386, %v362, 0
        %v439 = vsel %vm386, %v363, 0
        %v442 = vsel %vm386, %v364, 0
        %v445 = vsel %vm386, %v365, 0
        %v448 = vsel %vm386, %v366, 0
        %v451 = vsel %vm386, %v367, 0
        %v454 = vsel %vm386, %v368, 0
        %v457 = vsel %vm386, %v369, 0
        %v460 = vsel %vm386, %v370, 0
        %v463 = vsel %vm386, %v371, 0
        %v466 = vsel %vm386, %v372, 0
        %v469 = vsel %vm386, %v373, 0
        %v472 = vsel %vm386, %v374, 0
        %v475 = vsel %vm386, %v375, 0
        %v478 = vsel %vm386, %v376, 0
        %v481 = vsel %vm386, %v377, 0
        %vm483 = vcmask 1040384
        %vm484 = vcmask 1041408
        %v485 = vsel %vm483, 4294967295, 65535
        %v486 = vsel %vm484, %v485, 0
        %v488 = vand.u32 %v378, %v486
        %490 = vmatprep.subr.bf16.mxu0 0
        %491 = vmatpush1.bf16.msra.mxu0 %v488
        %492 = vmatprep.subr.bf16.mxu0 0
        %493 = vmatpush1.bf16.msra.mxu0 0
        %494 = vmatprep.subr.bf16.mxu0 0
        %495 = vmatpush1.bf16.msra.mxu0 0
        %496 = vmatprep.subr.bf16.mxu0 0
        %497 = vmatpush1.bf16.msra.mxu0 0
        %498 = vmatprep.subr.bf16.mxu0 0
        %499 = vmatpush1.bf16.msra.mxu0 0
        %500 = vmatprep.subr.bf16.mxu0 0
        %501 = vmatpush1.bf16.msra.mxu0 0
        %502 = vmatprep.subr.bf16.mxu0 0
        %503 = vmatpush1.bf16.msra.mxu0 0
        %504 = vmatprep.subr.bf16.mxu0 0
        %505 = vmatpush1.bf16.msra.mxu0 0
        %506 = vmatprep.subr.bf16.mxu0 0
        %507 = vmatpush1.bf16.msra.mxu0 0
        %508 = vmatprep.subr.bf16.mxu0 0
        %509 = vmatpush1.bf16.msra.mxu0 0
        %510 = vmatprep.subr.bf16.mxu0 0
        %511 = vmatpush1.bf16.msra.mxu0 0
        %512 = vmatprep.subr.bf16.mxu0 0
        %513 = vmatpush1.bf16.msra.mxu0 0
        %514 = vmatprep.subr.bf16.mxu0 0
        %515 = vmatpush1.bf16.msra.mxu0 0
        %516 = vmatprep.subr.bf16.mxu0 0
        %517 = vmatpush1.bf16.msra.mxu0 0
        %518 = vmatprep.subr.bf16.mxu0 0
        %519 = vmatpush1.bf16.msra.mxu0 0
        %520 = vmatprep.subr.bf16.mxu0 0
        %521 = vmatpush1.bf16.msra.mxu0 0
        %522 = vmatprep.mubr.bf16.mxu0 0
        %523 = vmatmul.mubr.bf16.gmra.mrb[0].mxu0 %v388
        %v524 = vpop.f32.mrb[0].mxu0
        %v525 = vadd.f32 %v384, %v524
        %v526 = vpop.f32.mrb[0].mxu0
        %v527 = vpop.f32.mrb[0].mxu0
        %v528 = vadd.f32 %v384, %v527
        %v529 = vpop.f32.mrb[0].mxu0
        %530 = vmatprep.mubr.bf16.mxu0 0
        %531 = vmatmul.mubr.bf16.gmra.mrb[0].mxu0 %v391
        %v532 = vpop.f32.mrb[0].mxu0
        %v533 = vadd.f32 %v384, %v532
        %v534 = vpop.f32.mrb[0].mxu0
        %v535 = vpop.f32.mrb[0].mxu0
        %v536 = vadd.f32 %v384, %v535
        %v537 = vpop.f32.mrb[0].mxu0
        %538 = vmatprep.mubr.bf16.mxu0 0
        %539 = vmatmul.mubr.bf16.gmra.mrb[0].mxu0 %v394
        %v540 = vpop.f32.mrb[0].mxu0
        %v541 = vadd.f32 %v384, %v540
        %v542 = vpop.f32.mrb[0].mxu0
        %v543 = vpop.f32.mrb[0].mxu0
        %v544 = vadd.f32 %v384, %v543
        %v545 = vpop.f32.mrb[0].mxu0
        %546 = vmatprep.mubr.bf16.mxu0 0
        %547 = vmatmul.mubr.bf16.gmra.mrb[0].mxu0 %v397
        %v548 = vpop.f32.mrb[0].mxu0
        %v549 = vadd.f32 %v384, %v548
        %v550 = vpop.f32.mrb[0].mxu0
        %v551 = vpop.f32.mrb[0].mxu0
        %v552 = vadd.f32 %v384, %v551
        %v553 = vpop.f32.mrb[0].mxu0
        %554 = vmatprep.mubr.bf16.mxu0 0
        %555 = vmatmul.mubr.bf16.gmra.mrb[0].mxu0 %v400
        %v556 = vpop.f32.mrb[0].mxu0
        %v557 = vadd.f32 %v384, %v556
        %v558 = vpop.f32.mrb[0].mxu0
        %v559 = vpop.f32.mrb[0].mxu0
        %v560 = vadd.f32 %v384, %v559
        %v561 = vpop.f32.mrb[0].mxu0
        %562 = vmatprep.mubr.bf16.mxu0 0
        %563 = vmatmul.mubr.bf16.gmra.mrb[0].mxu0 %v403
        %v564 = vpop.f32.mrb[0].mxu0
        %v565 = vadd.f32 %v384, %v564
        %v566 = vpop.f32.mrb[0].mxu0
        %v567 = vpop.f32.mrb[0].mxu0
        %v568 = vadd.f32 %v384, %v567
        %v569 = vpop.f32.mrb[0].mxu0
        %570 = vmatprep.mubr.bf16.mxu0 0
        %571 = vmatmul.mubr.bf16.gmra.mrb[0].mxu0 %v406
        %v572 = vpop.f32.mrb[0].mxu0
        %v573 = vadd.f32 %v384, %v572
        %v574 = vpop.f32.mrb[0].mxu0
        %v575 = vpop.f32.mrb[0].mxu0
        %v576 = vadd.f32 %v384, %v575
        %v577 = vpop.f32.mrb[0].mxu0
        %578 = vmatprep.mubr.bf16.mxu0 0
        %579 = vmatmul.mubr.bf16.gmra.mrb[0].mxu0 %v409
        %v580 = vpop.f32.mrb[0].mxu0
        %v581 = vadd.f32 %v384, %v580
        %v582 = vpop.f32.mrb[0].mxu0
        %v583 = vpop.f32.mrb[0].mxu0
        %v584 = vadd.f32 %v384, %v583
        %v585 = vpop.f32.mrb[0].mxu0
        %586 = vmatprep.mubr.bf16.mxu0 0
        %587 = vmatmul.mubr.bf16.gmra.mrb[0].mxu0 %v412
        %v588 = vpop.f32.mrb[0].mxu0
        %v589 = vadd.f32 %v384, %v588
        %v590 = vpop.f32.mrb[0].mxu0
        %v591 = vpop.f32.mrb[0].mxu0
        %v592 = vadd.f32 %v384, %v591
        %v593 = vpop.f32.mrb[0].mxu0
        %594 = vmatprep.mubr.bf16.mxu0 0
        %595 = vmatmul.mubr.bf16.gmra.mrb[0].mxu0 %v415
        %v596 = vpop.f32.mrb[0].mxu0
        %v597 = vadd.f32 %v384, %v596
        %v598 = vpop.f32.mrb[0].mxu0
        %v599 = vpop.f32.mrb[0].mxu0
        %v600 = vadd.f32 %v384, %v599
        %v601 = vpop.f32.mrb[0].mxu0
        %602 = vmatprep.mubr.bf16.mxu0 0
        %603 = vmatmul.mubr.bf16.gmra.mrb[0].mxu0 %v418
        %v604 = vpop.f32.mrb[0].mxu0
        %v605 = vadd.f32 %v384, %v604
        %v606 = vpop.f32.mrb[0].mxu0
        %v607 = vpop.f32.mrb[0].mxu0
        %v608 = vadd.f32 %v384, %v607
        %v609 = vpop.f32.mrb[0].mxu0
        %610 = vmatprep.mubr.bf16.mxu0 0
        %611 = vmatmul.mubr.bf16.gmra.mrb[0].mxu0 %v421
        %v612 = vpop.f32.mrb[0].mxu0
        %v613 = vadd.f32 %v384, %v612
        %v614 = vpop.f32.mrb[0].mxu0
        %v615 = vpop.f32.mrb[0].mxu0
        %v616 = vadd.f32 %v384, %v615
        %v617 = vpop.f32.mrb[0].mxu0
        %618 = vmatprep.mubr.bf16.mxu0 0
        %619 = vmatmul.mubr.bf16.gmra.mrb[0].mxu0 %v424
        %v620 = vpop.f32.mrb[0].mxu0
        %v621 = vadd.f32 %v384, %v620
        %v622 = vpop.f32.mrb[0].mxu0
        %v623 = vpop.f32.mrb[0].mxu0
        %v624 = vadd.f32 %v384, %v623
        %v625 = vpop.f32.mrb[0].mxu0
        %626 = vmatprep.mubr.bf16.mxu0 0
        %627 = vmatmul.mubr.bf16.gmra.mrb[0].mxu0 %v427
        %v628 = vpop.f32.mrb[0].mxu0
        %v629 = vadd.f32 %v384, %v628
        %v630 = vpop.f32.mrb[0].mxu0
        %v631 = vpop.f32.mrb[0].mxu0
        %v632 = vadd.f32 %v384, %v631
        %v633 = vpop.f32.mrb[0].mxu0
        %634 = vmatprep.mubr.bf16.mxu0 0
        %635 = vmatmul.mubr.bf16.gmra.mrb[0].mxu0 %v430
        %v636 = vpop.f32.mrb[0].mxu0
        %v637 = vadd.f32 %v384, %v636
        %v638 = vpop.f32.mrb[0].mxu0
        %v639 = vpop.f32.mrb[0].mxu0
        %v640 = vadd.f32 %v384, %v639
        %v641 = vpop.f32.mrb[0].mxu0
        %642 = vmatprep.mubr.bf16.mxu0 0
        %643 = vmatmul.mubr.bf16.gmra.mrb[0].mxu0 %v433
        %v644 = vpop.f32.mrb[0].mxu0
        %v645 = vadd.f32 %v384, %v644
        %v646 = vpop.f32.mrb[0].mxu0
        %v647 = vpop.f32.mrb[0].mxu0
        %v648 = vadd.f32 %v384, %v647
        %v649 = vpop.f32.mrb[0].mxu0
        %650 = vmatprep.mubr.bf16.mxu0 0
        %651 = vmatmul.mubr.bf16.gmra.mrb[0].mxu0 %v436
        %v652 = vpop.f32.mrb[0].mxu0
        %v653 = vadd.f32 %v384, %v652
        %v654 = vpop.f32.mrb[0].mxu0
        %v655 = vpop.f32.mrb[0].mxu0
        %v656 = vadd.f32 %v384, %v655
        %v657 = vpop.f32.mrb[0].mxu0
        %658 = vmatprep.mubr.bf16.mxu0 0
        %659 = vmatmul.mubr.bf16.gmra.mrb[0].mxu0 %v439
        %v660 = vpop.f32.mrb[0].mxu0
        %v661 = vadd.f32 %v384, %v660
        %v662 = vpop.f32.mrb[0].mxu0
        %v663 = vpop.f32.mrb[0].mxu0
        %v664 = vadd.f32 %v384, %v663
        %v665 = vpop.f32.mrb[0].mxu0
        %666 = vmatprep.mubr.bf16.mxu0 0
        %667 = vmatmul.mubr.bf16.gmra.mrb[0].mxu0 %v442
        %v668 = vpop.f32.mrb[0].mxu0
        %v669 = vadd.f32 %v384, %v668
        %v670 = vpop.f32.mrb[0].mxu0
        %v671 = vpop.f32.mrb[0].mxu0
        %v672 = vadd.f32 %v384, %v671
        %v673 = vpop.f32.mrb[0].mxu0
        %674 = vmatprep.mubr.bf16.mxu0 0
        %675 = vmatmul.mubr.bf16.gmra.mrb[0].mxu0 %v445
        %v676 = vpop.f32.mrb[0].mxu0
        %v677 = vadd.f32 %v384, %v676
        %v678 = vpop.f32.mrb[0].mxu0
        %v679 = vpop.f32.mrb[0].mxu0
        %v680 = vadd.f32 %v384, %v679
        %v681 = vpop.f32.mrb[0].mxu0
        %682 = vmatprep.mubr.bf16.mxu0 0
        %683 = vmatmul.mubr.bf16.gmra.mrb[0].mxu0 %v448
        %v684 = vpop.f32.mrb[0].mxu0
        %v685 = vadd.f32 %v384, %v684
        %v686 = vpop.f32.mrb[0].mxu0
        %v687 = vpop.f32.mrb[0].mxu0
        %v688 = vadd.f32 %v384, %v687
        %v689 = vpop.f32.mrb[0].mxu0
        %690 = vmatprep.mubr.bf16.mxu0 0
        %691 = vmatmul.mubr.bf16.gmra.mrb[0].mxu0 %v451
        %v692 = vpop.f32.mrb[0].mxu0
        %v693 = vadd.f32 %v384, %v692
        %v694 = vpop.f32.mrb[0].mxu0
        %v695 = vpop.f32.mrb[0].mxu0
        %v696 = vadd.f32 %v384, %v695
        %v697 = vpop.f32.mrb[0].mxu0
        %698 = vmatprep.mubr.bf16.mxu0 0
        %699 = vmatmul.mubr.bf16.gmra.mrb[0].mxu0 %v454
        %v700 = vpop.f32.mrb[0].mxu0
        %v701 = vadd.f32 %v384, %v700
        %v702 = vpop.f32.mrb[0].mxu0
        %v703 = vpop.f32.mrb[0].mxu0
        %v704 = vadd.f32 %v384, %v703
        %v705 = vpop.f32.mrb[0].mxu0
        %706 = vmatprep.mubr.bf16.mxu0 0
        %707 = vmatmul.mubr.bf16.gmra.mrb[0].mxu0 %v457
        %v708 = vpop.f32.mrb[0].mxu0
        %v709 = vadd.f32 %v384, %v708
        %v710 = vpop.f32.mrb[0].mxu0
        %v711 = vpop.f32.mrb[0].mxu0
        %v712 = vadd.f32 %v384, %v711
        %v713 = vpop.f32.mrb[0].mxu0
        %714 = vmatprep.mubr.bf16.mxu0 0
        %715 = vmatmul.mubr.bf16.gmra.mrb[0].mxu0 %v460
        %v716 = vpop.f32.mrb[0].mxu0
        %v717 = vadd.f32 %v384, %v716
        %v718 = vpop.f32.mrb[0].mxu0
        %v719 = vpop.f32.mrb[0].mxu0
        %v720 = vadd.f32 %v384, %v719
        %v721 = vpop.f32.mrb[0].mxu0
        %722 = vmatprep.mubr.bf16.mxu0 0
        %723 = vmatmul.mubr.bf16.gmra.mrb[0].mxu0 %v463
        %v724 = vpop.f32.mrb[0].mxu0
        %v725 = vadd.f32 %v384, %v724
        %v726 = vpop.f32.mrb[0].mxu0
        %v727 = vpop.f32.mrb[0].mxu0
        %v728 = vadd.f32 %v384, %v727
        %v729 = vpop.f32.mrb[0].mxu0
        %730 = vmatprep.mubr.bf16.mxu0 0
        %731 = vmatmul.mubr.bf16.gmra.mrb[0].mxu0 %v466
        %v732 = vpop.f32.mrb[0].mxu0
        %v733 = vadd.f32 %v384, %v732
        %v734 = vpop.f32.mrb[0].mxu0
        %v735 = vpop.f32.mrb[0].mxu0
        %v736 = vadd.f32 %v384, %v735
        %v737 = vpop.f32.mrb[0].mxu0
        %738 = vmatprep.mubr.bf16.mxu0 0
        %739 = vmatmul.mubr.bf16.gmra.mrb[0].mxu0 %v469
        %v740 = vpop.f32.mrb[0].mxu0
        %v741 = vadd.f32 %v384, %v740
        %v742 = vpop.f32.mrb[0].mxu0
        %v743 = vpop.f32.mrb[0].mxu0
        %v744 = vadd.f32 %v384, %v743
        %v745 = vpop.f32.mrb[0].mxu0
        %746 = vmatprep.mubr.bf16.mxu0 0
        %747 = vmatmul.mubr.bf16.gmra.mrb[0].mxu0 %v472
        %v748 = vpop.f32.mrb[0].mxu0
        %v749 = vadd.f32 %v384, %v748
        %v750 = vpop.f32.mrb[0].mxu0
        %v751 = vpop.f32.mrb[0].mxu0
        %v752 = vadd.f32 %v384, %v751
        %v753 = vpop.f32.mrb[0].mxu0
        %754 = vmatprep.mubr.bf16.mxu0 0
        %755 = vmatmul.mubr.bf16.gmra.mrb[0].mxu0 %v475
        %v756 = vpop.f32.mrb[0].mxu0
        %v757 = vadd.f32 %v384, %v756
        %v758 = vpop.f32.mrb[0].mxu0
        %v759 = vpop.f32.mrb[0].mxu0
        %v760 = vadd.f32 %v384, %v759
        %v761 = vpop.f32.mrb[0].mxu0
        %762 = vmatprep.mubr.bf16.mxu0 0
        %763 = vmatmul.mubr.bf16.gmra.mrb[0].mxu0 %v478
        %v764 = vpop.f32.mrb[0].mxu0
        %v765 = vadd.f32 %v384, %v764
        %v766 = vpop.f32.mrb[0].mxu0
        %v767 = vpop.f32.mrb[0].mxu0
        %v768 = vadd.f32 %v384, %v767
        %v769 = vpop.f32.mrb[0].mxu0
        %770 = vmatprep.mubr.bf16.mxu0 0
        %771 = vmatmul.mubr.bf16.gmra.mrb[0].mxu0 %v481
        %v772 = vpop.f32.mrb[0].mxu0
        %v773 = vadd.f32 %v384, %v772
        %v774 = vpop.f32.mrb[0].mxu0
        %v775 = vpop.f32.mrb[0].mxu0
        %v776 = vadd.f32 %v384, %v775
        %v777 = vpop.f32.mrb[0].mxu0
        %778 = vdwg.mxu0
        %v779 = vmax.f32 %v525, 0.0
        %v780 = vmax.f32 %v528, 0.0
        %v781 = vmax.f32 %v533, 0.0
        %v782 = vmax.f32 %v536, 0.0
        %v783 = vmax.f32 %v541, 0.0
        %v784 = vmax.f32 %v544, 0.0
        %v785 = vmax.f32 %v549, 0.0
        %v786 = vmax.f32 %v552, 0.0
        %v787 = vmax.f32 %v557, 0.0
        %v788 = vmax.f32 %v560, 0.0
        %v789 = vmax.f32 %v565, 0.0
        %v790 = vmax.f32 %v568, 0.0
        %v791 = vmax.f32 %v573, 0.0
        %v792 = vmax.f32 %v576, 0.0
        %v793 = vmax.f32 %v581, 0.0
        %v794 = vmax.f32 %v584, 0.0
        %v795 = vmax.f32 %v589, 0.0
        %v796 = vmax.f32 %v592, 0.0
        %v797 = vmax.f32 %v597, 0.0
        %v798 = vmax.f32 %v600, 0.0
        %v799 = vmax.f32 %v605, 0.0
        %v800 = vmax.f32 %v608, 0.0
        %v801 = vmax.f32 %v613, 0.0
        %v802 = vmax.f32 %v616, 0.0
        %v803 = vmax.f32 %v621, 0.0
        %v804 = vmax.f32 %v624, 0.0
        %v805 = vmax.f32 %v629, 0.0
        %v806 = vmax.f32 %v632, 0.0
        %v807 = vmax.f32 %v637, 0.0
        %v808 = vmax.f32 %v640, 0.0
        %v809 = vmax.f32 %v645, 0.0
        %v810 = vmax.f32 %v648, 0.0
        %v811 = vmax.f32 %v653, 0.0
        %v812 = vmax.f32 %v656, 0.0
        %v813 = vmax.f32 %v661, 0.0
        %v814 = vmax.f32 %v664, 0.0
        %v815 = vmax.f32 %v669, 0.0
        %v816 = vmax.f32 %v672, 0.0
        %v817 = vmax.f32 %v677, 0.0
        %v818 = vmax.f32 %v680, 0.0
        %v819 = vmax.f32 %v685, 0.0
        %v820 = vmax.f32 %v688, 0.0
        %v821 = vmax.f32 %v693, 0.0
        %v822 = vmax.f32 %v696, 0.0
        %v823 = vmax.f32 %v701, 0.0
        %v824 = vmax.f32 %v704, 0.0
        %v825 = vmax.f32 %v709, 0.0
        %v826 = vmax.f32 %v712, 0.0
        %v827 = vmax.f32 %v717, 0.0
        %v828 = vmax.f32 %v720, 0.0
        %v829 = vmax.f32 %v725, 0.0
        %v830 = vmax.f32 %v728, 0.0
        %v831 = vmax.f32 %v733, 0.0
        %v832 = vmax.f32 %v736, 0.0
        %v833 = vmax.f32 %v741, 0.0
        %v834 = vmax.f32 %v744, 0.0
        %v835 = vmax.f32 %v749, 0.0
        %v836 = vmax.f32 %v752, 0.0
        %v837 = vmax.f32 %v757, 0.0
        %v838 = vmax.f32 %v760, 0.0
        %v839 = vmax.f32 %v765, 0.0
        %v840 = vmax.f32 %v768, 0.0
        %v841 = vmax.f32 %v773, 0.0
        %v842 = vmax.f32 %v776, 0.0
        %v843 = vpack.c.bf16 %v780, %v779
        %v844 = vpack.c.bf16 %v782, %v781
        %v845 = vpack.c.bf16 %v784, %v783
        %v846 = vpack.c.bf16 %v786, %v785
        %v847 = vpack.c.bf16 %v788, %v787
        %v848 = vpack.c.bf16 %v790, %v789
        %v849 = vpack.c.bf16 %v792, %v791
        %v850 = vpack.c.bf16 %v794, %v793
        %v851 = vpack.c.bf16 %v796, %v795
        %v852 = vpack.c.bf16 %v798, %v797
        %v853 = vpack.c.bf16 %v800, %v799
        %v854 = vpack.c.bf16 %v802, %v801
        %v855 = vpack.c.bf16 %v804, %v803
        %v856 = vpack.c.bf16 %v806, %v805
        %v857 = vpack.c.bf16 %v808, %v807
        %v858 = vpack.c.bf16 %v810, %v809
        %v859 = vpack.c.bf16 %v812, %v811
        %v860 = vpack.c.bf16 %v814, %v813
        %v861 = vpack.c.bf16 %v816, %v815
        %v862 = vpack.c.bf16 %v818, %v817
        %v863 = vpack.c.bf16 %v820, %v819
        %v864 = vpack.c.bf16 %v822, %v821
        %v865 = vpack.c.bf16 %v824, %v823
        %v866 = vpack.c.bf16 %v826, %v825
        %v867 = vpack.c.bf16 %v828, %v827
        %v868 = vpack.c.bf16 %v830, %v829
        %v869 = vpack.c.bf16 %v832, %v831
        %v870 = vpack.c.bf16 %v834, %v833
        %v871 = vpack.c.bf16 %v836, %v835
        %v872 = vpack.c.bf16 %v838, %v837
        %v873 = vpack.c.bf16 %v840, %v839
        %v874 = vpack.c.bf16 %v842, %v841
        %v875 = vld [vmem:[%s3] sm:$0xf]
        %v876 = vld [vmem:[%s3 + $0x4] sm:$0xf]
        %v877 = vld [vmem:[%s3 + $0x8] sm:$0xf]
        %v878 = vld [vmem:[%s3 + $0xc] sm:$0xf]
        %v879 = vld [vmem:[%s3 + $0x10] sm:$0xf]
        %v880 = vld [vmem:[%s3 + $0x14] sm:$0xf]
        %v881 = vld [vmem:[%s3 + $0x18] sm:$0xf]
        %v882 = vld [vmem:[%s3 + $0x1c] sm:$0xf]
        %v883 = vld [vmem:[%s4] sm:$0x1]
        %v885 = vlaneseq
        %v886 = vshrl.u32 %v885, 7
        %v887 = vsub.s32 0, %v886
        %v888 = vrot.slane %v883, %v887
        %v898 = vunpack.c.l.b16 %v875
        %v899 = vunpack.c.l.b16 %v876
        %v900 = vunpack.c.l.b16 %v877
        %v901 = vunpack.c.l.b16 %v878
        %v902 = vunpack.c.l.b16 %v879
        %v903 = vunpack.c.l.b16 %v880
        %v904 = vunpack.c.l.b16 %v881
        %v905 = vunpack.c.l.b16 %v882
        %v906 = vpack.c.b16 %v899, %v898
        %v907 = vpack.c.b16 %v901, %v900
        %v908 = vpack.c.b16 %v903, %v902
        %v909 = vpack.c.b16 %v905, %v904
        %vm914 = vcmask 523264
        %v916 = vsel %vm914, %v843, 0
        %v919 = vsel %vm914, %v844, 0
        %v922 = vsel %vm914, %v845, 0
        %v925 = vsel %vm914, %v846, 0
        %v928 = vsel %vm914, %v847, 0
        %v931 = vsel %vm914, %v848, 0
        %v934 = vsel %vm914, %v849, 0
        %v937 = vsel %vm914, %v850, 0
        %v940 = vsel %vm914, %v851, 0
        %v943 = vsel %vm914, %v852, 0
        %v946 = vsel %vm914, %v853, 0
        %v949 = vsel %vm914, %v854, 0
        %v952 = vsel %vm914, %v855, 0
        %v955 = vsel %vm914, %v856, 0
        %v958 = vsel %vm914, %v857, 0
        %v961 = vsel %vm914, %v858, 0
        %v964 = vsel %vm914, %v859, 0
        %v967 = vsel %vm914, %v860, 0
        %v970 = vsel %vm914, %v861, 0
        %v973 = vsel %vm914, %v862, 0
        %v976 = vsel %vm914, %v863, 0
        %v979 = vsel %vm914, %v864, 0
        %v982 = vsel %vm914, %v865, 0
        %v985 = vsel %vm914, %v866, 0
        %v988 = vsel %vm914, %v867, 0
        %v991 = vsel %vm914, %v868, 0
        %v994 = vsel %vm914, %v869, 0
        %v997 = vsel %vm914, %v870, 0
        %v1000 = vsel %vm914, %v871, 0
        %v1003 = vsel %vm914, %v872, 0
        %v1006 = vsel %vm914, %v873, 0
        %v1009 = vsel %vm914, %v874, 0
        %1011 = vmatprep.subr.bf16.mxu0 0
        %1012 = vmatpush1.bf16.msra.mxu0 %v906
        %1013 = vmatprep.subr.bf16.mxu0 0
        %1014 = vmatpush1.bf16.msra.mxu0 %v907
        %1015 = vmatprep.subr.bf16.mxu0 0
        %1016 = vmatpush1.bf16.msra.mxu0 %v908
        %1017 = vmatprep.subr.bf16.mxu0 0
        %1018 = vmatpush1.bf16.msra.mxu0 %v909
        %1019 = vmatprep.subr.bf16.mxu0 0
        %1020 = vmatpush1.bf16.msra.mxu0 0
        %1021 = vmatprep.subr.bf16.mxu0 0
        %1022 = vmatpush1.bf16.msra.mxu0 0
        %1023 = vmatprep.subr.bf16.mxu0 0
        %1024 = vmatpush1.bf16.msra.mxu0 0
        %1025 = vmatprep.subr.bf16.mxu0 0
        %1026 = vmatpush1.bf16.msra.mxu0 0
        %1027 = vmatprep.subr.bf16.mxu0 0
        %1028 = vmatpush1.bf16.msra.mxu0 0
        %1029 = vmatprep.subr.bf16.mxu0 0
        %1030 = vmatpush1.bf16.msra.mxu0 0
        %1031 = vmatprep.subr.bf16.mxu0 0
        %1032 = vmatpush1.bf16.msra.mxu0 0
        %1033 = vmatprep.subr.bf16.mxu0 0
        %1034 = vmatpush1.bf16.msra.mxu0 0
        %1035 = vmatprep.subr.bf16.mxu0 0
        %1036 = vmatpush1.bf16.msra.mxu0 0
        %1037 = vmatprep.subr.bf16.mxu0 0
        %1038 = vmatpush1.bf16.msra.mxu0 0
        %1039 = vmatprep.subr.bf16.mxu0 0
        %1040 = vmatpush1.bf16.msra.mxu0 0
        %1041 = vmatprep.subr.bf16.mxu0 0
        %1042 = vmatpush1.bf16.msra.mxu0 0
        %1043 = vmatprep.mubr.bf16.mxu0 0
        %1044 = vmatmul.mubr.bf16.gmra.mrb[0].mxu0 %v916
        %v1045 = vpop.f32.mrb[0].mxu0
        %v1046 = vadd.f32 %v888, %v1045
        %v1047 = vpop.f32.mrb[0].mxu0
        %v1048 = vpop.f32.mrb[0].mxu0
        %v1049 = vadd.f32 %v888, %v1048
        %v1050 = vpop.f32.mrb[0].mxu0
        %1051 = vmatprep.mubr.bf16.mxu0 0
        %1052 = vmatmul.mubr.bf16.gmra.mrb[0].mxu0 %v919
        %v1053 = vpop.f32.mrb[0].mxu0
        %v1054 = vadd.f32 %v888, %v1053
        %v1055 = vpop.f32.mrb[0].mxu0
        %v1056 = vpop.f32.mrb[0].mxu0
        %v1057 = vadd.f32 %v888, %v1056
        %v1058 = vpop.f32.mrb[0].mxu0
        %1059 = vmatprep.mubr.bf16.mxu0 0
        %1060 = vmatmul.mubr.bf16.gmra.mrb[0].mxu0 %v922
        %v1061 = vpop.f32.mrb[0].mxu0
        %v1062 = vadd.f32 %v888, %v1061
        %v1063 = vpop.f32.mrb[0].mxu0
        %v1064 = vpop.f32.mrb[0].mxu0
        %v1065 = vadd.f32 %v888, %v1064
        %v1066 = vpop.f32.mrb[0].mxu0
        %1067 = vmatprep.mubr.bf16.mxu0 0
        %1068 = vmatmul.mubr.bf16.gmra.mrb[0].mxu0 %v925
        %v1069 = vpop.f32.mrb[0].mxu0
        %v1070 = vadd.f32 %v888, %v1069
        %v1071 = vpop.f32.mrb[0].mxu0
        %v1072 = vpop.f32.mrb[0].mxu0
        %v1073 = vadd.f32 %v888, %v1072
        %v1074 = vpop.f32.mrb[0].mxu0
        %1075 = vmatprep.mubr.bf16.mxu0 0
        %1076 = vmatmul.mubr.bf16.gmra.mrb[0].mxu0 %v928
        %v1077 = vpop.f32.mrb[0].mxu0
        %v1078 = vadd.f32 %v888, %v1077
        %v1079 = vpop.f32.mrb[0].mxu0
        %v1080 = vpop.f32.mrb[0].mxu0
        %v1081 = vadd.f32 %v888, %v1080
        %v1082 = vpop.f32.mrb[0].mxu0
        %1083 = vmatprep.mubr.bf16.mxu0 0
        %1084 = vmatmul.mubr.bf16.gmra.mrb[0].mxu0 %v931
        %v1085 = vpop.f32.mrb[0].mxu0
        %v1086 = vadd.f32 %v888, %v1085
        %v1087 = vpop.f32.mrb[0].mxu0
        %v1088 = vpop.f32.mrb[0].mxu0
        %v1089 = vadd.f32 %v888, %v1088
        %v1090 = vpop.f32.mrb[0].mxu0
        %1091 = vmatprep.mubr.bf16.mxu0 0
        %1092 = vmatmul.mubr.bf16.gmra.mrb[0].mxu0 %v934
        %v1093 = vpop.f32.mrb[0].mxu0
        %v1094 = vadd.f32 %v888, %v1093
        %v1095 = vpop.f32.mrb[0].mxu0
        %v1096 = vpop.f32.mrb[0].mxu0
        %v1097 = vadd.f32 %v888, %v1096
        %v1098 = vpop.f32.mrb[0].mxu0
        %1099 = vmatprep.mubr.bf16.mxu0 0
        %1100 = vmatmul.mubr.bf16.gmra.mrb[0].mxu0 %v937
        %v1101 = vpop.f32.mrb[0].mxu0
        %v1102 = vadd.f32 %v888, %v1101
        %v1103 = vpop.f32.mrb[0].mxu0
        %v1104 = vpop.f32.mrb[0].mxu0
        %v1105 = vadd.f32 %v888, %v1104
        %v1106 = vpop.f32.mrb[0].mxu0
        %1107 = vmatprep.mubr.bf16.mxu0 0
        %1108 = vmatmul.mubr.bf16.gmra.mrb[0].mxu0 %v940
        %v1109 = vpop.f32.mrb[0].mxu0
        %v1110 = vadd.f32 %v888, %v1109
        %v1111 = vpop.f32.mrb[0].mxu0
        %v1112 = vpop.f32.mrb[0].mxu0
        %v1113 = vadd.f32 %v888, %v1112
        %v1114 = vpop.f32.mrb[0].mxu0
        %1115 = vmatprep.mubr.bf16.mxu0 0
        %1116 = vmatmul.mubr.bf16.gmra.mrb[0].mxu0 %v943
        %v1117 = vpop.f32.mrb[0].mxu0
        %v1118 = vadd.f32 %v888, %v1117
        %v1119 = vpop.f32.mrb[0].mxu0
        %v1120 = vpop.f32.mrb[0].mxu0
        %v1121 = vadd.f32 %v888, %v1120
        %v1122 = vpop.f32.mrb[0].mxu0
        %1123 = vmatprep.mubr.bf16.mxu0 0
        %1124 = vmatmul.mubr.bf16.gmra.mrb[0].mxu0 %v946
        %v1125 = vpop.f32.mrb[0].mxu0
        %v1126 = vadd.f32 %v888, %v1125
        %v1127 = vpop.f32.mrb[0].mxu0
        %v1128 = vpop.f32.mrb[0].mxu0
        %v1129 = vadd.f32 %v888, %v1128
        %v1130 = vpop.f32.mrb[0].mxu0
        %1131 = vmatprep.mubr.bf16.mxu0 0
        %1132 = vmatmul.mubr.bf16.gmra.mrb[0].mxu0 %v949
        %v1133 = vpop.f32.mrb[0].mxu0
        %v1134 = vadd.f32 %v888, %v1133
        %v1135 = vpop.f32.mrb[0].mxu0
        %v1136 = vpop.f32.mrb[0].mxu0
        %v1137 = vadd.f32 %v888, %v1136
        %v1138 = vpop.f32.mrb[0].mxu0
        %1139 = vmatprep.mubr.bf16.mxu0 0
        %1140 = vmatmul.mubr.bf16.gmra.mrb[0].mxu0 %v952
        %v1141 = vpop.f32.mrb[0].mxu0
        %v1142 = vadd.f32 %v888, %v1141
        %v1143 = vpop.f32.mrb[0].mxu0
        %v1144 = vpop.f32.mrb[0].mxu0
        %v1145 = vadd.f32 %v888, %v1144
        %v1146 = vpop.f32.mrb[0].mxu0
        %1147 = vmatprep.mubr.bf16.mxu0 0
        %1148 = vmatmul.mubr.bf16.gmra.mrb[0].mxu0 %v955
        %v1149 = vpop.f32.mrb[0].mxu0
        %v1150 = vadd.f32 %v888, %v1149
        %v1151 = vpop.f32.mrb[0].mxu0
        %v1152 = vpop.f32.mrb[0].mxu0
        %v1153 = vadd.f32 %v888, %v1152
        %v1154 = vpop.f32.mrb[0].mxu0
        %1155 = vmatprep.mubr.bf16.mxu0 0
        %1156 = vmatmul.mubr.bf16.gmra.mrb[0].mxu0 %v958
        %v1157 = vpop.f32.mrb[0].mxu0
        %v1158 = vadd.f32 %v888, %v1157
        %v1159 = vpop.f32.mrb[0].mxu0
        %v1160 = vpop.f32.mrb[0].mxu0
        %v1161 = vadd.f32 %v888, %v1160
        %v1162 = vpop.f32.mrb[0].mxu0
        %1163 = vmatprep.mubr.bf16.mxu0 0
        %1164 = vmatmul.mubr.bf16.gmra.mrb[0].mxu0 %v961
        %v1165 = vpop.f32.mrb[0].mxu0
        %v1166 = vadd.f32 %v888, %v1165
        %v1167 = vpop.f32.mrb[0].mxu0
        %v1168 = vpop.f32.mrb[0].mxu0
        %v1169 = vadd.f32 %v888, %v1168
        %v1170 = vpop.f32.mrb[0].mxu0
        %1171 = vmatprep.mubr.bf16.mxu0 0
        %1172 = vmatmul.mubr.bf16.gmra.mrb[0].mxu0 %v964
        %v1173 = vpop.f32.mrb[0].mxu0
        %v1174 = vadd.f32 %v888, %v1173
        %v1175 = vpop.f32.mrb[0].mxu0
        %v1176 = vpop.f32.mrb[0].mxu0
        %v1177 = vadd.f32 %v888, %v1176
        %v1178 = vpop.f32.mrb[0].mxu0
        %1179 = vmatprep.mubr.bf16.mxu0 0
        %1180 = vmatmul.mubr.bf16.gmra.mrb[0].mxu0 %v967
        %v1181 = vpop.f32.mrb[0].mxu0
        %v1182 = vadd.f32 %v888, %v1181
        %v1183 = vpop.f32.mrb[0].mxu0
        %v1184 = vpop.f32.mrb[0].mxu0
        %v1185 = vadd.f32 %v888, %v1184
        %v1186 = vpop.f32.mrb[0].mxu0
        %1187 = vmatprep.mubr.bf16.mxu0 0
        %1188 = vmatmul.mubr.bf16.gmra.mrb[0].mxu0 %v970
        %v1189 = vpop.f32.mrb[0].mxu0
        %v1190 = vadd.f32 %v888, %v1189
        %v1191 = vpop.f32.mrb[0].mxu0
        %v1192 = vpop.f32.mrb[0].mxu0
        %v1193 = vadd.f32 %v888, %v1192
        %v1194 = vpop.f32.mrb[0].mxu0
        %1195 = vmatprep.mubr.bf16.mxu0 0
        %1196 = vmatmul.mubr.bf16.gmra.mrb[0].mxu0 %v973
        %v1197 = vpop.f32.mrb[0].mxu0
        %v1198 = vadd.f32 %v888, %v1197
        %v1199 = vpop.f32.mrb[0].mxu0
        %v1200 = vpop.f32.mrb[0].mxu0
        %v1201 = vadd.f32 %v888, %v1200
        %v1202 = vpop.f32.mrb[0].mxu0
        %1203 = vmatprep.mubr.bf16.mxu0 0
        %1204 = vmatmul.mubr.bf16.gmra.mrb[0].mxu0 %v976
        %v1205 = vpop.f32.mrb[0].mxu0
        %v1206 = vadd.f32 %v888, %v1205
        %v1207 = vpop.f32.mrb[0].mxu0
        %v1208 = vpop.f32.mrb[0].mxu0
        %v1209 = vadd.f32 %v888, %v1208
        %v1210 = vpop.f32.mrb[0].mxu0
        %1211 = vmatprep.mubr.bf16.mxu0 0
        %1212 = vmatmul.mubr.bf16.gmra.mrb[0].mxu0 %v979
        %v1213 = vpop.f32.mrb[0].mxu0
        %v1214 = vadd.f32 %v888, %v1213
        %v1215 = vpop.f32.mrb[0].mxu0
        %v1216 = vpop.f32.mrb[0].mxu0
        %v1217 = vadd.f32 %v888, %v1216
        %v1218 = vpop.f32.mrb[0].mxu0
        %1219 = vmatprep.mubr.bf16.mxu0 0
        %1220 = vmatmul.mubr.bf16.gmra.mrb[0].mxu0 %v982
        %v1221 = vpop.f32.mrb[0].mxu0
        %v1222 = vadd.f32 %v888, %v1221
        %v1223 = vpop.f32.mrb[0].mxu0
        %v1224 = vpop.f32.mrb[0].mxu0
        %v1225 = vadd.f32 %v888, %v1224
        %v1226 = vpop.f32.mrb[0].mxu0
        %1227 = vmatprep.mubr.bf16.mxu0 0
        %1228 = vmatmul.mubr.bf16.gmra.mrb[0].mxu0 %v985
        %v1229 = vpop.f32.mrb[0].mxu0
        %v1230 = vadd.f32 %v888, %v1229
        %v1231 = vpop.f32.mrb[0].mxu0
        %v1232 = vpop.f32.mrb[0].mxu0
        %v1233 = vadd.f32 %v888, %v1232
        %v1234 = vpop.f32.mrb[0].mxu0
        %1235 = vmatprep.mubr.bf16.mxu0 0
        %1236 = vmatmul.mubr.bf16.gmra.mrb[0].mxu0 %v988
        %v1237 = vpop.f32.mrb[0].mxu0
        %v1238 = vadd.f32 %v888, %v1237
        %v1239 = vpop.f32.mrb[0].mxu0
        %v1240 = vpop.f32.mrb[0].mxu0
        %v1241 = vadd.f32 %v888, %v1240
        %v1242 = vpop.f32.mrb[0].mxu0
        %1243 = vmatprep.mubr.bf16.mxu0 0
        %1244 = vmatmul.mubr.bf16.gmra.mrb[0].mxu0 %v991
        %v1245 = vpop.f32.mrb[0].mxu0
        %v1246 = vadd.f32 %v888, %v1245
        %v1247 = vpop.f32.mrb[0].mxu0
        %v1248 = vpop.f32.mrb[0].mxu0
        %v1249 = vadd.f32 %v888, %v1248
        %v1250 = vpop.f32.mrb[0].mxu0
        %1251 = vmatprep.mubr.bf16.mxu0 0
        %1252 = vmatmul.mubr.bf16.gmra.mrb[0].mxu0 %v994
        %v1253 = vpop.f32.mrb[0].mxu0
        %v1254 = vadd.f32 %v888, %v1253
        %v1255 = vpop.f32.mrb[0].mxu0
        %v1256 = vpop.f32.mrb[0].mxu0
        %v1257 = vadd.f32 %v888, %v1256
        %v1258 = vpop.f32.mrb[0].mxu0
        %1259 = vmatprep.mubr.bf16.mxu0 0
        %1260 = vmatmul.mubr.bf16.gmra.mrb[0].mxu0 %v997
        %v1261 = vpop.f32.mrb[0].mxu0
        %v1262 = vadd.f32 %v888, %v1261
        %v1263 = vpop.f32.mrb[0].mxu0
        %v1264 = vpop.f32.mrb[0].mxu0
        %v1265 = vadd.f32 %v888, %v1264
        %v1266 = vpop.f32.mrb[0].mxu0
        %1267 = vmatprep.mubr.bf16.mxu0 0
        %1268 = vmatmul.mubr.bf16.gmra.mrb[0].mxu0 %v1000
        %v1269 = vpop.f32.mrb[0].mxu0
        %v1270 = vadd.f32 %v888, %v1269
        %v1271 = vpop.f32.mrb[0].mxu0
        %v1272 = vpop.f32.mrb[0].mxu0
        %v1273 = vadd.f32 %v888, %v1272
        %v1274 = vpop.f32.mrb[0].mxu0
        %1275 = vmatprep.mubr.bf16.mxu0 0
        %1276 = vmatmul.mubr.bf16.gmra.mrb[0].mxu0 %v1003
        %v1277 = vpop.f32.mrb[0].mxu0
        %v1278 = vadd.f32 %v888, %v1277
        %v1279 = vpop.f32.mrb[0].mxu0
        %v1280 = vpop.f32.mrb[0].mxu0
        %v1281 = vadd.f32 %v888, %v1280
        %v1282 = vpop.f32.mrb[0].mxu0
        %1283 = vmatprep.mubr.bf16.mxu0 0
        %1284 = vmatmul.mubr.bf16.gmra.mrb[0].mxu0 %v1006
        %v1285 = vpop.f32.mrb[0].mxu0
        %v1286 = vadd.f32 %v888, %v1285
        %v1287 = vpop.f32.mrb[0].mxu0
        %v1288 = vpop.f32.mrb[0].mxu0
        %v1289 = vadd.f32 %v888, %v1288
        %v1290 = vpop.f32.mrb[0].mxu0
        %1291 = vmatprep.mubr.bf16.mxu0 0
        %1292 = vmatmul.mubr.bf16.gmra.mrb[0].mxu0 %v1009
        %v1293 = vpop.f32.mrb[0].mxu0
        %v1294 = vadd.f32 %v888, %v1293
        %v1295 = vpop.f32.mrb[0].mxu0
        %v1296 = vpop.f32.mrb[0].mxu0
        %v1297 = vadd.f32 %v888, %v1296
        %v1298 = vpop.f32.mrb[0].mxu0
        %1299 = vdwg.mxu0
        %v1300 = vmax.f32 %v1046, 0.0
        %v1301 = vmax.f32 %v1049, 0.0
        %v1302 = vmax.f32 %v1054, 0.0
        %v1303 = vmax.f32 %v1057, 0.0
        %v1304 = vmax.f32 %v1062, 0.0
        %v1305 = vmax.f32 %v1065, 0.0
        %v1306 = vmax.f32 %v1070, 0.0
        %v1307 = vmax.f32 %v1073, 0.0
        %v1308 = vmax.f32 %v1078, 0.0
        %v1309 = vmax.f32 %v1081, 0.0
        %v1310 = vmax.f32 %v1086, 0.0
        %v1311 = vmax.f32 %v1089, 0.0
        %v1312 = vmax.f32 %v1094, 0.0
        %v1313 = vmax.f32 %v1097, 0.0
        %v1314 = vmax.f32 %v1102, 0.0
        %v1315 = vmax.f32 %v1105, 0.0
        %v1316 = vmax.f32 %v1110, 0.0
        %v1317 = vmax.f32 %v1113, 0.0
        %v1318 = vmax.f32 %v1118, 0.0
        %v1319 = vmax.f32 %v1121, 0.0
        %v1320 = vmax.f32 %v1126, 0.0
        %v1321 = vmax.f32 %v1129, 0.0
        %v1322 = vmax.f32 %v1134, 0.0
        %v1323 = vmax.f32 %v1137, 0.0
        %v1324 = vmax.f32 %v1142, 0.0
        %v1325 = vmax.f32 %v1145, 0.0
        %v1326 = vmax.f32 %v1150, 0.0
        %v1327 = vmax.f32 %v1153, 0.0
        %v1328 = vmax.f32 %v1158, 0.0
        %v1329 = vmax.f32 %v1161, 0.0
        %v1330 = vmax.f32 %v1166, 0.0
        %v1331 = vmax.f32 %v1169, 0.0
        %v1332 = vmax.f32 %v1174, 0.0
        %v1333 = vmax.f32 %v1177, 0.0
        %v1334 = vmax.f32 %v1182, 0.0
        %v1335 = vmax.f32 %v1185, 0.0
        %v1336 = vmax.f32 %v1190, 0.0
        %v1337 = vmax.f32 %v1193, 0.0
        %v1338 = vmax.f32 %v1198, 0.0
        %v1339 = vmax.f32 %v1201, 0.0
        %v1340 = vmax.f32 %v1206, 0.0
        %v1341 = vmax.f32 %v1209, 0.0
        %v1342 = vmax.f32 %v1214, 0.0
        %v1343 = vmax.f32 %v1217, 0.0
        %v1344 = vmax.f32 %v1222, 0.0
        %v1345 = vmax.f32 %v1225, 0.0
        %v1346 = vmax.f32 %v1230, 0.0
        %v1347 = vmax.f32 %v1233, 0.0
        %v1348 = vmax.f32 %v1238, 0.0
        %v1349 = vmax.f32 %v1241, 0.0
        %v1350 = vmax.f32 %v1246, 0.0
        %v1351 = vmax.f32 %v1249, 0.0
        %v1352 = vmax.f32 %v1254, 0.0
        %v1353 = vmax.f32 %v1257, 0.0
        %v1354 = vmax.f32 %v1262, 0.0
        %v1355 = vmax.f32 %v1265, 0.0
        %v1356 = vmax.f32 %v1270, 0.0
        %v1357 = vmax.f32 %v1273, 0.0
        %v1358 = vmax.f32 %v1278, 0.0
        %v1359 = vmax.f32 %v1281, 0.0
        %v1360 = vmax.f32 %v1286, 0.0
        %v1361 = vmax.f32 %v1289, 0.0
        %v1362 = vmax.f32 %v1294, 0.0
        %v1363 = vmax.f32 %v1297, 0.0
        %v1364 = vpack.c.bf16 %v1301, %v1300
        %v1365 = vpack.c.bf16 %v1303, %v1302
        %v1366 = vpack.c.bf16 %v1305, %v1304
        %v1367 = vpack.c.bf16 %v1307, %v1306
        %v1368 = vpack.c.bf16 %v1309, %v1308
        %v1369 = vpack.c.bf16 %v1311, %v1310
        %v1370 = vpack.c.bf16 %v1313, %v1312
        %v1371 = vpack.c.bf16 %v1315, %v1314
        %v1372 = vpack.c.bf16 %v1317, %v1316
        %v1373 = vpack.c.bf16 %v1319, %v1318
        %v1374 = vpack.c.bf16 %v1321, %v1320
        %v1375 = vpack.c.bf16 %v1323, %v1322
        %v1376 = vpack.c.bf16 %v1325, %v1324
        %v1377 = vpack.c.bf16 %v1327, %v1326
        %v1378 = vpack.c.bf16 %v1329, %v1328
        %v1379 = vpack.c.bf16 %v1331, %v1330
        %v1380 = vpack.c.bf16 %v1333, %v1332
        %v1381 = vpack.c.bf16 %v1335, %v1334
        %v1382 = vpack.c.bf16 %v1337, %v1336
        %v1383 = vpack.c.bf16 %v1339, %v1338
        %v1384 = vpack.c.bf16 %v1341, %v1340
        %v1385 = vpack.c.bf16 %v1343, %v1342
        %v1386 = vpack.c.bf16 %v1345, %v1344
        %v1387 = vpack.c.bf16 %v1347, %v1346
        %v1388 = vpack.c.bf16 %v1349, %v1348
        %v1389 = vpack.c.bf16 %v1351, %v1350
        %v1390 = vpack.c.bf16 %v1353, %v1352
        %v1391 = vpack.c.bf16 %v1355, %v1354
        %v1392 = vpack.c.bf16 %v1357, %v1356
        %v1393 = vpack.c.bf16 %v1359, %v1358
        %v1394 = vpack.c.bf16 %v1361, %v1360
        %v1395 = vpack.c.bf16 %v1363, %v1362
        %s1396 = scalar_lea.vmem %s3, 32
        %v1397 = vld [vmem:[%s1396] sm:$0xf]
        %v1398 = vld [vmem:[%s1396 + $0x4] sm:$0xf]
        %v1399 = vld [vmem:[%s1396 + $0x8] sm:$0xf]
        %v1400 = vld [vmem:[%s1396 + $0xc] sm:$0xf]
        %v1401 = vld [vmem:[%s1396 + $0x10] sm:$0xf]
        %v1402 = vld [vmem:[%s1396 + $0x14] sm:$0xf]
        %v1403 = vld [vmem:[%s1396 + $0x18] sm:$0xf]
        %v1404 = vld [vmem:[%s1396 + $0x1c] sm:$0xf]
        %s1405 = scalar_lea.vmem %s4, 1
        %v1406 = vld [vmem:[%s1405] sm:$0x1]
        %v1408 = vlaneseq
        %v1409 = vshrl.u32 %v1408, 7
        %v1410 = vsub.s32 0, %v1409
        %v1411 = vrot.slane %v1406, %v1410
        %v1421 = vunpack.c.l.b16 %v1397
        %v1422 = vunpack.c.l.b16 %v1398
        %v1423 = vunpack.c.l.b16 %v1399
        %v1424 = vunpack.c.l.b16 %v1400
        %v1425 = vunpack.c.l.b16 %v1401
        %v1426 = vunpack.c.l.b16 %v1402
        %v1427 = vunpack.c.l.b16 %v1403
        %v1428 = vunpack.c.l.b16 %v1404
        %v1429 = vpack.c.b16 %v1422, %v1421
        %v1430 = vpack.c.b16 %v1424, %v1423
        %v1431 = vpack.c.b16 %v1426, %v1425
        %v1432 = vpack.c.b16 %v1428, %v1427
        %v1438 = vsel %vm914, %v1364, 0
        %v1441 = vsel %vm914, %v1365, 0
        %v1444 = vsel %vm914, %v1366, 0
        %v1447 = vsel %vm914, %v1367, 0
        %v1450 = vsel %vm914, %v1368, 0
        %v1453 = vsel %vm914, %v1369, 0
        %v1456 = vsel %vm914, %v1370, 0
        %v1459 = vsel %vm914, %v1371, 0
        %v1462 = vsel %vm914, %v1372, 0
        %v1465 = vsel %vm914, %v1373, 0
        %v1468 = vsel %vm914, %v1374, 0
        %v1471 = vsel %vm914, %v1375, 0
        %v1474 = vsel %vm914, %v1376, 0
        %v1477 = vsel %vm914, %v1377, 0
        %v1480 = vsel %vm914, %v1378, 0
        %v1483 = vsel %vm914, %v1379, 0
        %v1486 = vsel %vm914, %v1380, 0
        %v1489 = vsel %vm914, %v1381, 0
        %v1492 = vsel %vm914, %v1382, 0
        %v1495 = vsel %vm914, %v1383, 0
        %v1498 = vsel %vm914, %v1384, 0
        %v1501 = vsel %vm914, %v1385, 0
        %v1504 = vsel %vm914, %v1386, 0
        %v1507 = vsel %vm914, %v1387, 0
        %v1510 = vsel %vm914, %v1388, 0
        %v1513 = vsel %vm914, %v1389, 0
        %v1516 = vsel %vm914, %v1390, 0
        %v1519 = vsel %vm914, %v1391, 0
        %v1522 = vsel %vm914, %v1392, 0
        %v1525 = vsel %vm914, %v1393, 0
        %v1528 = vsel %vm914, %v1394, 0
        %v1531 = vsel %vm914, %v1395, 0
        %1533 = vmatprep.subr.bf16.mxu0 0
        %1534 = vmatpush1.bf16.msra.mxu0 %v1429
        %1535 = vmatprep.subr.bf16.mxu0 0
        %1536 = vmatpush1.bf16.msra.mxu0 %v1430
        %1537 = vmatprep.subr.bf16.mxu0 0
        %1538 = vmatpush1.bf16.msra.mxu0 %v1431
        %1539 = vmatprep.subr.bf16.mxu0 0
        %1540 = vmatpush1.bf16.msra.mxu0 %v1432
        %1541 = vmatprep.subr.bf16.mxu0 0
        %1542 = vmatpush1.bf16.msra.mxu0 0
        %1543 = vmatprep.subr.bf16.mxu0 0
        %1544 = vmatpush1.bf16.msra.mxu0 0
        %1545 = vmatprep.subr.bf16.mxu0 0
        %1546 = vmatpush1.bf16.msra.mxu0 0
        %1547 = vmatprep.subr.bf16.mxu0 0
        %1548 = vmatpush1.bf16.msra.mxu0 0
        %1549 = vmatprep.subr.bf16.mxu0 0
        %1550 = vmatpush1.bf16.msra.mxu0 0
        %1551 = vmatprep.subr.bf16.mxu0 0
        %1552 = vmatpush1.bf16.msra.mxu0 0
        %1553 = vmatprep.subr.bf16.mxu0 0
        %1554 = vmatpush1.bf16.msra.mxu0 0
        %1555 = vmatprep.subr.bf16.mxu0 0
        %1556 = vmatpush1.bf16.msra.mxu0 0
        %1557 = vmatprep.subr.bf16.mxu0 0
        %1558 = vmatpush1.bf16.msra.mxu0 0
        %1559 = vmatprep.subr.bf16.mxu0 0
        %1560 = vmatpush1.bf16.msra.mxu0 0
        %1561 = vmatprep.subr.bf16.mxu0 0
        %1562 = vmatpush1.bf16.msra.mxu0 0
        %1563 = vmatprep.subr.bf16.mxu0 0
        %1564 = vmatpush1.bf16.msra.mxu0 0
        %1565 = vmatprep.mubr.bf16.mxu0 0
        %1566 = vmatmul.mubr.bf16.gmra.mrb[0].mxu0 %v1438
        %v1567 = vpop.f32.mrb[0].mxu0
        %v1568 = vadd.f32 %v1411, %v1567
        %v1569 = vpop.f32.mrb[0].mxu0
        %v1570 = vpop.f32.mrb[0].mxu0
        %v1571 = vadd.f32 %v1411, %v1570
        %v1572 = vpop.f32.mrb[0].mxu0
        %1573 = vmatprep.mubr.bf16.mxu0 0
        %1574 = vmatmul.mubr.bf16.gmra.mrb[0].mxu0 %v1441
        %v1575 = vpop.f32.mrb[0].mxu0
        %v1576 = vadd.f32 %v1411, %v1575
        %v1577 = vpop.f32.mrb[0].mxu0
        %v1578 = vpop.f32.mrb[0].mxu0
        %v1579 = vadd.f32 %v1411, %v1578
        %v1580 = vpop.f32.mrb[0].mxu0
        %1581 = vmatprep.mubr.bf16.mxu0 0
        %1582 = vmatmul.mubr.bf16.gmra.mrb[0].mxu0 %v1444
        %v1583 = vpop.f32.mrb[0].mxu0
        %v1584 = vadd.f32 %v1411, %v1583
        %v1585 = vpop.f32.mrb[0].mxu0
        %v1586 = vpop.f32.mrb[0].mxu0
        %v1587 = vadd.f32 %v1411, %v1586
        %v1588 = vpop.f32.mrb[0].mxu0
        %1589 = vmatprep.mubr.bf16.mxu0 0
        %1590 = vmatmul.mubr.bf16.gmra.mrb[0].mxu0 %v1447
        %v1591 = vpop.f32.mrb[0].mxu0
        %v1592 = vadd.f32 %v1411, %v1591
        %v1593 = vpop.f32.mrb[0].mxu0
        %v1594 = vpop.f32.mrb[0].mxu0
        %v1595 = vadd.f32 %v1411, %v1594
        %v1596 = vpop.f32.mrb[0].mxu0
        %1597 = vmatprep.mubr.bf16.mxu0 0
        %1598 = vmatmul.mubr.bf16.gmra.mrb[0].mxu0 %v1450
        %v1599 = vpop.f32.mrb[0].mxu0
        %v1600 = vadd.f32 %v1411, %v1599
        %v1601 = vpop.f32.mrb[0].mxu0
        %v1602 = vpop.f32.mrb[0].mxu0
        %v1603 = vadd.f32 %v1411, %v1602
        %v1604 = vpop.f32.mrb[0].mxu0
        %1605 = vmatprep.mubr.bf16.mxu0 0
        %1606 = vmatmul.mubr.bf16.gmra.mrb[0].mxu0 %v1453
        %v1607 = vpop.f32.mrb[0].mxu0
        %v1608 = vadd.f32 %v1411, %v1607
        %v1609 = vpop.f32.mrb[0].mxu0
        %v1610 = vpop.f32.mrb[0].mxu0
        %v1611 = vadd.f32 %v1411, %v1610
        %v1612 = vpop.f32.mrb[0].mxu0
        %1613 = vmatprep.mubr.bf16.mxu0 0
        %1614 = vmatmul.mubr.bf16.gmra.mrb[0].mxu0 %v1456
        %v1615 = vpop.f32.mrb[0].mxu0
        %v1616 = vadd.f32 %v1411, %v1615
        %v1617 = vpop.f32.mrb[0].mxu0
        %v1618 = vpop.f32.mrb[0].mxu0
        %v1619 = vadd.f32 %v1411, %v1618
        %v1620 = vpop.f32.mrb[0].mxu0
        %1621 = vmatprep.mubr.bf16.mxu0 0
        %1622 = vmatmul.mubr.bf16.gmra.mrb[0].mxu0 %v1459
        %v1623 = vpop.f32.mrb[0].mxu0
        %v1624 = vadd.f32 %v1411, %v1623
        %v1625 = vpop.f32.mrb[0].mxu0
        %v1626 = vpop.f32.mrb[0].mxu0
        %v1627 = vadd.f32 %v1411, %v1626
        %v1628 = vpop.f32.mrb[0].mxu0
        %1629 = vmatprep.mubr.bf16.mxu0 0
        %1630 = vmatmul.mubr.bf16.gmra.mrb[0].mxu0 %v1462
        %v1631 = vpop.f32.mrb[0].mxu0
        %v1632 = vadd.f32 %v1411, %v1631
        %v1633 = vpop.f32.mrb[0].mxu0
        %v1634 = vpop.f32.mrb[0].mxu0
        %v1635 = vadd.f32 %v1411, %v1634
        %v1636 = vpop.f32.mrb[0].mxu0
        %1637 = vmatprep.mubr.bf16.mxu0 0
        %1638 = vmatmul.mubr.bf16.gmra.mrb[0].mxu0 %v1465
        %v1639 = vpop.f32.mrb[0].mxu0
        %v1640 = vadd.f32 %v1411, %v1639
        %v1641 = vpop.f32.mrb[0].mxu0
        %v1642 = vpop.f32.mrb[0].mxu0
        %v1643 = vadd.f32 %v1411, %v1642
        %v1644 = vpop.f32.mrb[0].mxu0
        %1645 = vmatprep.mubr.bf16.mxu0 0
        %1646 = vmatmul.mubr.bf16.gmra.mrb[0].mxu0 %v1468
        %v1647 = vpop.f32.mrb[0].mxu0
        %v1648 = vadd.f32 %v1411, %v1647
        %v1649 = vpop.f32.mrb[0].mxu0
        %v1650 = vpop.f32.mrb[0].mxu0
        %v1651 = vadd.f32 %v1411, %v1650
        %v1652 = vpop.f32.mrb[0].mxu0
        %1653 = vmatprep.mubr.bf16.mxu0 0
        %1654 = vmatmul.mubr.bf16.gmra.mrb[0].mxu0 %v1471
        %v1655 = vpop.f32.mrb[0].mxu0
        %v1656 = vadd.f32 %v1411, %v1655
        %v1657 = vpop.f32.mrb[0].mxu0
        %v1658 = vpop.f32.mrb[0].mxu0
        %v1659 = vadd.f32 %v1411, %v1658
        %v1660 = vpop.f32.mrb[0].mxu0
        %1661 = vmatprep.mubr.bf16.mxu0 0
        %1662 = vmatmul.mubr.bf16.gmra.mrb[0].mxu0 %v1474
        %v1663 = vpop.f32.mrb[0].mxu0
        %v1664 = vadd.f32 %v1411, %v1663
        %v1665 = vpop.f32.mrb[0].mxu0
        %v1666 = vpop.f32.mrb[0].mxu0
        %v1667 = vadd.f32 %v1411, %v1666
        %v1668 = vpop.f32.mrb[0].mxu0
        %1669 = vmatprep.mubr.bf16.mxu0 0
        %1670 = vmatmul.mubr.bf16.gmra.mrb[0].mxu0 %v1477
        %v1671 = vpop.f32.mrb[0].mxu0
        %v1672 = vadd.f32 %v1411, %v1671
        %v1673 = vpop.f32.mrb[0].mxu0
        %v1674 = vpop.f32.mrb[0].mxu0
        %v1675 = vadd.f32 %v1411, %v1674
        %v1676 = vpop.f32.mrb[0].mxu0
        %1677 = vmatprep.mubr.bf16.mxu0 0
        %1678 = vmatmul.mubr.bf16.gmra.mrb[0].mxu0 %v1480
        %v1679 = vpop.f32.mrb[0].mxu0
        %v1680 = vadd.f32 %v1411, %v1679
        %v1681 = vpop.f32.mrb[0].mxu0
        %v1682 = vpop.f32.mrb[0].mxu0
        %v1683 = vadd.f32 %v1411, %v1682
        %v1684 = vpop.f32.mrb[0].mxu0
        %1685 = vmatprep.mubr.bf16.mxu0 0
        %1686 = vmatmul.mubr.bf16.gmra.mrb[0].mxu0 %v1483
        %v1687 = vpop.f32.mrb[0].mxu0
        %v1688 = vadd.f32 %v1411, %v1687
        %v1689 = vpop.f32.mrb[0].mxu0
        %v1690 = vpop.f32.mrb[0].mxu0
        %v1691 = vadd.f32 %v1411, %v1690
        %v1692 = vpop.f32.mrb[0].mxu0
        %1693 = vmatprep.mubr.bf16.mxu0 0
        %1694 = vmatmul.mubr.bf16.gmra.mrb[0].mxu0 %v1486
        %v1695 = vpop.f32.mrb[0].mxu0
        %v1696 = vadd.f32 %v1411, %v1695
        %v1697 = vpop.f32.mrb[0].mxu0
        %v1698 = vpop.f32.mrb[0].mxu0
        %v1699 = vadd.f32 %v1411, %v1698
        %v1700 = vpop.f32.mrb[0].mxu0
        %1701 = vmatprep.mubr.bf16.mxu0 0
        %1702 = vmatmul.mubr.bf16.gmra.mrb[0].mxu0 %v1489
        %v1703 = vpop.f32.mrb[0].mxu0
        %v1704 = vadd.f32 %v1411, %v1703
        %v1705 = vpop.f32.mrb[0].mxu0
        %v1706 = vpop.f32.mrb[0].mxu0
        %v1707 = vadd.f32 %v1411, %v1706
        %v1708 = vpop.f32.mrb[0].mxu0
        %1709 = vmatprep.mubr.bf16.mxu0 0
        %1710 = vmatmul.mubr.bf16.gmra.mrb[0].mxu0 %v1492
        %v1711 = vpop.f32.mrb[0].mxu0
        %v1712 = vadd.f32 %v1411, %v1711
        %v1713 = vpop.f32.mrb[0].mxu0
        %v1714 = vpop.f32.mrb[0].mxu0
        %v1715 = vadd.f32 %v1411, %v1714
        %v1716 = vpop.f32.mrb[0].mxu0
        %1717 = vmatprep.mubr.bf16.mxu0 0
        %1718 = vmatmul.mubr.bf16.gmra.mrb[0].mxu0 %v1495
        %v1719 = vpop.f32.mrb[0].mxu0
        %v1720 = vadd.f32 %v1411, %v1719
        %v1721 = vpop.f32.mrb[0].mxu0
        %v1722 = vpop.f32.mrb[0].mxu0
        %v1723 = vadd.f32 %v1411, %v1722
        %v1724 = vpop.f32.mrb[0].mxu0
        %1725 = vmatprep.mubr.bf16.mxu0 0
        %1726 = vmatmul.mubr.bf16.gmra.mrb[0].mxu0 %v1498
        %v1727 = vpop.f32.mrb[0].mxu0
        %v1728 = vadd.f32 %v1411, %v1727
        %v1729 = vpop.f32.mrb[0].mxu0
        %v1730 = vpop.f32.mrb[0].mxu0
        %v1731 = vadd.f32 %v1411, %v1730
        %v1732 = vpop.f32.mrb[0].mxu0
        %1733 = vmatprep.mubr.bf16.mxu0 0
        %1734 = vmatmul.mubr.bf16.gmra.mrb[0].mxu0 %v1501
        %v1735 = vpop.f32.mrb[0].mxu0
        %v1736 = vadd.f32 %v1411, %v1735
        %v1737 = vpop.f32.mrb[0].mxu0
        %v1738 = vpop.f32.mrb[0].mxu0
        %v1739 = vadd.f32 %v1411, %v1738
        %v1740 = vpop.f32.mrb[0].mxu0
        %1741 = vmatprep.mubr.bf16.mxu0 0
        %1742 = vmatmul.mubr.bf16.gmra.mrb[0].mxu0 %v1504
        %v1743 = vpop.f32.mrb[0].mxu0
        %v1744 = vadd.f32 %v1411, %v1743
        %v1745 = vpop.f32.mrb[0].mxu0
        %v1746 = vpop.f32.mrb[0].mxu0
        %v1747 = vadd.f32 %v1411, %v1746
        %v1748 = vpop.f32.mrb[0].mxu0
        %1749 = vmatprep.mubr.bf16.mxu0 0
        %1750 = vmatmul.mubr.bf16.gmra.mrb[0].mxu0 %v1507
        %v1751 = vpop.f32.mrb[0].mxu0
        %v1752 = vadd.f32 %v1411, %v1751
        %v1753 = vpop.f32.mrb[0].mxu0
        %v1754 = vpop.f32.mrb[0].mxu0
        %v1755 = vadd.f32 %v1411, %v1754
        %v1756 = vpop.f32.mrb[0].mxu0
        %1757 = vmatprep.mubr.bf16.mxu0 0
        %1758 = vmatmul.mubr.bf16.gmra.mrb[0].mxu0 %v1510
        %v1759 = vpop.f32.mrb[0].mxu0
        %v1760 = vadd.f32 %v1411, %v1759
        %v1761 = vpop.f32.mrb[0].mxu0
        %v1762 = vpop.f32.mrb[0].mxu0
        %v1763 = vadd.f32 %v1411, %v1762
        %v1764 = vpop.f32.mrb[0].mxu0
        %1765 = vmatprep.mubr.bf16.mxu0 0
        %1766 = vmatmul.mubr.bf16.gmra.mrb[0].mxu0 %v1513
        %v1767 = vpop.f32.mrb[0].mxu0
        %v1768 = vadd.f32 %v1411, %v1767
        %v1769 = vpop.f32.mrb[0].mxu0
        %v1770 = vpop.f32.mrb[0].mxu0
        %v1771 = vadd.f32 %v1411, %v1770
        %v1772 = vpop.f32.mrb[0].mxu0
        %1773 = vmatprep.mubr.bf16.mxu0 0
        %1774 = vmatmul.mubr.bf16.gmra.mrb[0].mxu0 %v1516
        %v1775 = vpop.f32.mrb[0].mxu0
        %v1776 = vadd.f32 %v1411, %v1775
        %v1777 = vpop.f32.mrb[0].mxu0
        %v1778 = vpop.f32.mrb[0].mxu0
        %v1779 = vadd.f32 %v1411, %v1778
        %v1780 = vpop.f32.mrb[0].mxu0
        %1781 = vmatprep.mubr.bf16.mxu0 0
        %1782 = vmatmul.mubr.bf16.gmra.mrb[0].mxu0 %v1519
        %v1783 = vpop.f32.mrb[0].mxu0
        %v1784 = vadd.f32 %v1411, %v1783
        %v1785 = vpop.f32.mrb[0].mxu0
        %v1786 = vpop.f32.mrb[0].mxu0
        %v1787 = vadd.f32 %v1411, %v1786
        %v1788 = vpop.f32.mrb[0].mxu0
        %1789 = vmatprep.mubr.bf16.mxu0 0
        %1790 = vmatmul.mubr.bf16.gmra.mrb[0].mxu0 %v1522
        %v1791 = vpop.f32.mrb[0].mxu0
        %v1792 = vadd.f32 %v1411, %v1791
        %v1793 = vpop.f32.mrb[0].mxu0
        %v1794 = vpop.f32.mrb[0].mxu0
        %v1795 = vadd.f32 %v1411, %v1794
        %v1796 = vpop.f32.mrb[0].mxu0
        %1797 = vmatprep.mubr.bf16.mxu0 0
        %1798 = vmatmul.mubr.bf16.gmra.mrb[0].mxu0 %v1525
        %v1799 = vpop.f32.mrb[0].mxu0
        %v1800 = vadd.f32 %v1411, %v1799
        %v1801 = vpop.f32.mrb[0].mxu0
        %v1802 = vpop.f32.mrb[0].mxu0
        %v1803 = vadd.f32 %v1411, %v1802
        %v1804 = vpop.f32.mrb[0].mxu0
        %1805 = vmatprep.mubr.bf16.mxu0 0
        %1806 = vmatmul.mubr.bf16.gmra.mrb[0].mxu0 %v1528
        %v1807 = vpop.f32.mrb[0].mxu0
        %v1808 = vadd.f32 %v1411, %v1807
        %v1809 = vpop.f32.mrb[0].mxu0
        %v1810 = vpop.f32.mrb[0].mxu0
        %v1811 = vadd.f32 %v1411, %v1810
        %v1812 = vpop.f32.mrb[0].mxu0
        %1813 = vmatprep.mubr.bf16.mxu0 0
        %1814 = vmatmul.mubr.bf16.gmra.mrb[0].mxu0 %v1531
        %v1815 = vpop.f32.mrb[0].mxu0
        %v1816 = vadd.f32 %v1411, %v1815
        %v1817 = vpop.f32.mrb[0].mxu0
        %v1818 = vpop.f32.mrb[0].mxu0
        %v1819 = vadd.f32 %v1411, %v1818
        %v1820 = vpop.f32.mrb[0].mxu0
        %1821 = vdwg.mxu0
        %v1822 = vmax.f32 %v1568, 0.0
        %v1823 = vmax.f32 %v1571, 0.0
        %v1824 = vmax.f32 %v1576, 0.0
        %v1825 = vmax.f32 %v1579, 0.0
        %v1826 = vmax.f32 %v1584, 0.0
        %v1827 = vmax.f32 %v1587, 0.0
        %v1828 = vmax.f32 %v1592, 0.0
        %v1829 = vmax.f32 %v1595, 0.0
        %v1830 = vmax.f32 %v1600, 0.0
        %v1831 = vmax.f32 %v1603, 0.0
        %v1832 = vmax.f32 %v1608, 0.0
        %v1833 = vmax.f32 %v1611, 0.0
        %v1834 = vmax.f32 %v1616, 0.0
        %v1835 = vmax.f32 %v1619, 0.0
        %v1836 = vmax.f32 %v1624, 0.0
        %v1837 = vmax.f32 %v1627, 0.0
        %v1838 = vmax.f32 %v1632, 0.0
        %v1839 = vmax.f32 %v1635, 0.0
        %v1840 = vmax.f32 %v1640, 0.0
        %v1841 = vmax.f32 %v1643, 0.0
        %v1842 = vmax.f32 %v1648, 0.0
        %v1843 = vmax.f32 %v1651, 0.0
        %v1844 = vmax.f32 %v1656, 0.0
        %v1845 = vmax.f32 %v1659, 0.0
        %v1846 = vmax.f32 %v1664, 0.0
        %v1847 = vmax.f32 %v1667, 0.0
        %v1848 = vmax.f32 %v1672, 0.0
        %v1849 = vmax.f32 %v1675, 0.0
        %v1850 = vmax.f32 %v1680, 0.0
        %v1851 = vmax.f32 %v1683, 0.0
        %v1852 = vmax.f32 %v1688, 0.0
        %v1853 = vmax.f32 %v1691, 0.0
        %v1854 = vmax.f32 %v1696, 0.0
        %v1855 = vmax.f32 %v1699, 0.0
        %v1856 = vmax.f32 %v1704, 0.0
        %v1857 = vmax.f32 %v1707, 0.0
        %v1858 = vmax.f32 %v1712, 0.0
        %v1859 = vmax.f32 %v1715, 0.0
        %v1860 = vmax.f32 %v1720, 0.0
        %v1861 = vmax.f32 %v1723, 0.0
        %v1862 = vmax.f32 %v1728, 0.0
        %v1863 = vmax.f32 %v1731, 0.0
        %v1864 = vmax.f32 %v1736, 0.0
        %v1865 = vmax.f32 %v1739, 0.0
        %v1866 = vmax.f32 %v1744, 0.0
        %v1867 = vmax.f32 %v1747, 0.0
        %v1868 = vmax.f32 %v1752, 0.0
        %v1869 = vmax.f32 %v1755, 0.0
        %v1870 = vmax.f32 %v1760, 0.0
        %v1871 = vmax.f32 %v1763, 0.0
        %v1872 = vmax.f32 %v1768, 0.0
        %v1873 = vmax.f32 %v1771, 0.0
        %v1874 = vmax.f32 %v1776, 0.0
        %v1875 = vmax.f32 %v1779, 0.0
        %v1876 = vmax.f32 %v1784, 0.0
        %v1877 = vmax.f32 %v1787, 0.0
        %v1878 = vmax.f32 %v1792, 0.0
        %v1879 = vmax.f32 %v1795, 0.0
        %v1880 = vmax.f32 %v1800, 0.0
        %v1881 = vmax.f32 %v1803, 0.0
        %v1882 = vmax.f32 %v1808, 0.0
        %v1883 = vmax.f32 %v1811, 0.0
        %v1884 = vmax.f32 %v1816, 0.0
        %v1885 = vmax.f32 %v1819, 0.0
        %v1886 = vpack.c.bf16 %v1823, %v1822
        %v1887 = vpack.c.bf16 %v1825, %v1824
        %v1888 = vpack.c.bf16 %v1827, %v1826
        %v1889 = vpack.c.bf16 %v1829, %v1828
        %v1890 = vpack.c.bf16 %v1831, %v1830
        %v1891 = vpack.c.bf16 %v1833, %v1832
        %v1892 = vpack.c.bf16 %v1835, %v1834
        %v1893 = vpack.c.bf16 %v1837, %v1836
        %v1894 = vpack.c.bf16 %v1839, %v1838
        %v1895 = vpack.c.bf16 %v1841, %v1840
        %v1896 = vpack.c.bf16 %v1843, %v1842
        %v1897 = vpack.c.bf16 %v1845, %v1844
        %v1898 = vpack.c.bf16 %v1847, %v1846
        %v1899 = vpack.c.bf16 %v1849, %v1848
        %v1900 = vpack.c.bf16 %v1851, %v1850
        %v1901 = vpack.c.bf16 %v1853, %v1852
        %v1902 = vpack.c.bf16 %v1855, %v1854
        %v1903 = vpack.c.bf16 %v1857, %v1856
        %v1904 = vpack.c.bf16 %v1859, %v1858
        %v1905 = vpack.c.bf16 %v1861, %v1860
        %v1906 = vpack.c.bf16 %v1863, %v1862
        %v1907 = vpack.c.bf16 %v1865, %v1864
        %v1908 = vpack.c.bf16 %v1867, %v1866
        %v1909 = vpack.c.bf16 %v1869, %v1868
        %v1910 = vpack.c.bf16 %v1871, %v1870
        %v1911 = vpack.c.bf16 %v1873, %v1872
        %v1912 = vpack.c.bf16 %v1875, %v1874
        %v1913 = vpack.c.bf16 %v1877, %v1876
        %v1914 = vpack.c.bf16 %v1879, %v1878
        %v1915 = vpack.c.bf16 %v1881, %v1880
        %v1916 = vpack.c.bf16 %v1883, %v1882
        %v1917 = vpack.c.bf16 %v1885, %v1884
        %s1918 = scalar_lea.vmem %s3, 64
        %v1919 = vld [vmem:[%s1918] sm:$0xf]
        %v1920 = vld [vmem:[%s1918 + $0x4] sm:$0xf]
        %v1921 = vld [vmem:[%s1918 + $0x8] sm:$0xf]
        %v1922 = vld [vmem:[%s1918 + $0xc] sm:$0xf]
        %v1923 = vld [vmem:[%s1918 + $0x10] sm:$0xf]
        %v1924 = vld [vmem:[%s1918 + $0x14] sm:$0xf]
        %v1925 = vld [vmem:[%s1918 + $0x18] sm:$0xf]
        %v1926 = vld [vmem:[%s1918 + $0x1c] sm:$0xf]
        %s1927 = scalar_lea.vmem %s4, 2
        %v1928 = vld [vmem:[%s1927] sm:$0x1]
        %v1930 = vlaneseq
        %v1931 = vshrl.u32 %v1930, 7
        %v1932 = vsub.s32 0, %v1931
        %v1933 = vrot.slane %v1928, %v1932
        %v1943 = vunpack.c.l.b16 %v1919
        %v1944 = vunpack.c.l.b16 %v1920
        %v1945 = vunpack.c.l.b16 %v1921
        %v1946 = vunpack.c.l.b16 %v1922
        %v1947 = vunpack.c.l.b16 %v1923
        %v1948 = vunpack.c.l.b16 %v1924
        %v1949 = vunpack.c.l.b16 %v1925
        %v1950 = vunpack.c.l.b16 %v1926
        %v1951 = vpack.c.b16 %v1944, %v1943
        %v1952 = vpack.c.b16 %v1946, %v1945
        %v1953 = vpack.c.b16 %v1948, %v1947
        %v1954 = vpack.c.b16 %v1950, %v1949
        %v1960 = vsel %vm914, %v1886, 0
        %v1963 = vsel %vm914, %v1887, 0
        %v1966 = vsel %vm914, %v1888, 0
        %v1969 = vsel %vm914, %v1889, 0
        %v1972 = vsel %vm914, %v1890, 0
        %v1975 = vsel %vm914, %v1891, 0
        %v1978 = vsel %vm914, %v1892, 0
        %v1981 = vsel %vm914, %v1893, 0
        %v1984 = vsel %vm914, %v1894, 0
        %v1987 = vsel %vm914, %v1895, 0
        %v1990 = vsel %vm914, %v1896, 0
        %v1993 = vsel %vm914, %v1897, 0
        %v1996 = vsel %vm914, %v1898, 0
        %v1999 = vsel %vm914, %v1899, 0
        %v2002 = vsel %vm914, %v1900, 0
        %v2005 = vsel %vm914, %v1901, 0
        %v2008 = vsel %vm914, %v1902, 0
        %v2011 = vsel %vm914, %v1903, 0
        %v2014 = vsel %vm914, %v1904, 0
        %v2017 = vsel %vm914, %v1905, 0
        %v2020 = vsel %vm914, %v1906, 0
        %v2023 = vsel %vm914, %v1907, 0
        %v2026 = vsel %vm914, %v1908, 0
        %v2029 = vsel %vm914, %v1909, 0
        %v2032 = vsel %vm914, %v1910, 0
        %v2035 = vsel %vm914, %v1911, 0
        %v2038 = vsel %vm914, %v1912, 0
        %v2041 = vsel %vm914, %v1913, 0
        %v2044 = vsel %vm914, %v1914, 0
        %v2047 = vsel %vm914, %v1915, 0
        %v2050 = vsel %vm914, %v1916, 0
        %v2053 = vsel %vm914, %v1917, 0
        %2055 = vmatprep.subr.bf16.mxu0 0
        %2056 = vmatpush1.bf16.msra.mxu0 %v1951
        %2057 = vmatprep.subr.bf16.mxu0 0
        %2058 = vmatpush1.bf16.msra.mxu0 %v1952
        %2059 = vmatprep.subr.bf16.mxu0 0
        %2060 = vmatpush1.bf16.msra.mxu0 %v1953
        %2061 = vmatprep.subr.bf16.mxu0 0
        %2062 = vmatpush1.bf16.msra.mxu0 %v1954
        %2063 = vmatprep.subr.bf16.mxu0 0
        %2064 = vmatpush1.bf16.msra.mxu0 0
        %2065 = vmatprep.subr.bf16.mxu0 0
        %2066 = vmatpush1.bf16.msra.mxu0 0
        %2067 = vmatprep.subr.bf16.mxu0 0
        %2068 = vmatpush1.bf16.msra.mxu0 0
        %2069 = vmatprep.subr.bf16.mxu0 0
        %2070 = vmatpush1.bf16.msra.mxu0 0
        %2071 = vmatprep.subr.bf16.mxu0 0
        %2072 = vmatpush1.bf16.msra.mxu0 0
        %2073 = vmatprep.subr.bf16.mxu0 0
        %2074 = vmatpush1.bf16.msra.mxu0 0
        %2075 = vmatprep.subr.bf16.mxu0 0
        %2076 = vmatpush1.bf16.msra.mxu0 0
        %2077 = vmatprep.subr.bf16.mxu0 0
        %2078 = vmatpush1.bf16.msra.mxu0 0
        %2079 = vmatprep.subr.bf16.mxu0 0
        %2080 = vmatpush1.bf16.msra.mxu0 0
        %2081 = vmatprep.subr.bf16.mxu0 0
        %2082 = vmatpush1.bf16.msra.mxu0 0
        %2083 = vmatprep.subr.bf16.mxu0 0
        %2084 = vmatpush1.bf16.msra.mxu0 0
        %2085 = vmatprep.subr.bf16.mxu0 0
        %2086 = vmatpush1.bf16.msra.mxu0 0
        %2087 = vmatprep.mubr.bf16.mxu0 0
        %2088 = vmatmul.mubr.bf16.gmra.mrb[0].mxu0 %v1960
        %v2089 = vpop.f32.mrb[0].mxu0
        %v2090 = vadd.f32 %v1933, %v2089
        %v2091 = vpop.f32.mrb[0].mxu0
        %v2092 = vpop.f32.mrb[0].mxu0
        %v2093 = vadd.f32 %v1933, %v2092
        %v2094 = vpop.f32.mrb[0].mxu0
        %2095 = vmatprep.mubr.bf16.mxu0 0
        %2096 = vmatmul.mubr.bf16.gmra.mrb[0].mxu0 %v1963
        %v2097 = vpop.f32.mrb[0].mxu0
        %v2098 = vadd.f32 %v1933, %v2097
        %v2099 = vpop.f32.mrb[0].mxu0
        %v2100 = vpop.f32.mrb[0].mxu0
        %v2101 = vadd.f32 %v1933, %v2100
        %v2102 = vpop.f32.mrb[0].mxu0
        %2103 = vmatprep.mubr.bf16.mxu0 0
        %2104 = vmatmul.mubr.bf16.gmra.mrb[0].mxu0 %v1966
        %v2105 = vpop.f32.mrb[0].mxu0
        %v2106 = vadd.f32 %v1933, %v2105
        %v2107 = vpop.f32.mrb[0].mxu0
        %v2108 = vpop.f32.mrb[0].mxu0
        %v2109 = vadd.f32 %v1933, %v2108
        %v2110 = vpop.f32.mrb[0].mxu0
        %2111 = vmatprep.mubr.bf16.mxu0 0
        %2112 = vmatmul.mubr.bf16.gmra.mrb[0].mxu0 %v1969
        %v2113 = vpop.f32.mrb[0].mxu0
        %v2114 = vadd.f32 %v1933, %v2113
        %v2115 = vpop.f32.mrb[0].mxu0
        %v2116 = vpop.f32.mrb[0].mxu0
        %v2117 = vadd.f32 %v1933, %v2116
        %v2118 = vpop.f32.mrb[0].mxu0
        %2119 = vmatprep.mubr.bf16.mxu0 0
        %2120 = vmatmul.mubr.bf16.gmra.mrb[0].mxu0 %v1972
        %v2121 = vpop.f32.mrb[0].mxu0
        %v2122 = vadd.f32 %v1933, %v2121
        %v2123 = vpop.f32.mrb[0].mxu0
        %v2124 = vpop.f32.mrb[0].mxu0
        %v2125 = vadd.f32 %v1933, %v2124
        %v2126 = vpop.f32.mrb[0].mxu0
        %2127 = vmatprep.mubr.bf16.mxu0 0
        %2128 = vmatmul.mubr.bf16.gmra.mrb[0].mxu0 %v1975
        %v2129 = vpop.f32.mrb[0].mxu0
        %v2130 = vadd.f32 %v1933, %v2129
        %v2131 = vpop.f32.mrb[0].mxu0
        %v2132 = vpop.f32.mrb[0].mxu0
        %v2133 = vadd.f32 %v1933, %v2132
        %v2134 = vpop.f32.mrb[0].mxu0
        %2135 = vmatprep.mubr.bf16.mxu0 0
        %2136 = vmatmul.mubr.bf16.gmra.mrb[0].mxu0 %v1978
        %v2137 = vpop.f32.mrb[0].mxu0
        %v2138 = vadd.f32 %v1933, %v2137
        %v2139 = vpop.f32.mrb[0].mxu0
        %v2140 = vpop.f32.mrb[0].mxu0
        %v2141 = vadd.f32 %v1933, %v2140
        %v2142 = vpop.f32.mrb[0].mxu0
        %2143 = vmatprep.mubr.bf16.mxu0 0
        %2144 = vmatmul.mubr.bf16.gmra.mrb[0].mxu0 %v1981
        %v2145 = vpop.f32.mrb[0].mxu0
        %v2146 = vadd.f32 %v1933, %v2145
        %v2147 = vpop.f32.mrb[0].mxu0
        %v2148 = vpop.f32.mrb[0].mxu0
        %v2149 = vadd.f32 %v1933, %v2148
        %v2150 = vpop.f32.mrb[0].mxu0
        %2151 = vmatprep.mubr.bf16.mxu0 0
        %2152 = vmatmul.mubr.bf16.gmra.mrb[0].mxu0 %v1984
        %v2153 = vpop.f32.mrb[0].mxu0
        %v2154 = vadd.f32 %v1933, %v2153
        %v2155 = vpop.f32.mrb[0].mxu0
        %v2156 = vpop.f32.mrb[0].mxu0
        %v2157 = vadd.f32 %v1933, %v2156
        %v2158 = vpop.f32.mrb[0].mxu0
        %2159 = vmatprep.mubr.bf16.mxu0 0
        %2160 = vmatmul.mubr.bf16.gmra.mrb[0].mxu0 %v1987
        %v2161 = vpop.f32.mrb[0].mxu0
        %v2162 = vadd.f32 %v1933, %v2161
        %v2163 = vpop.f32.mrb[0].mxu0
        %v2164 = vpop.f32.mrb[0].mxu0
        %v2165 = vadd.f32 %v1933, %v2164
        %v2166 = vpop.f32.mrb[0].mxu0
        %2167 = vmatprep.mubr.bf16.mxu0 0
        %2168 = vmatmul.mubr.bf16.gmra.mrb[0].mxu0 %v1990
        %v2169 = vpop.f32.mrb[0].mxu0
        %v2170 = vadd.f32 %v1933, %v2169
        %v2171 = vpop.f32.mrb[0].mxu0
        %v2172 = vpop.f32.mrb[0].mxu0
        %v2173 = vadd.f32 %v1933, %v2172
        %v2174 = vpop.f32.mrb[0].mxu0
        %2175 = vmatprep.mubr.bf16.mxu0 0
        %2176 = vmatmul.mubr.bf16.gmra.mrb[0].mxu0 %v1993
        %v2177 = vpop.f32.mrb[0].mxu0
        %v2178 = vadd.f32 %v1933, %v2177
        %v2179 = vpop.f32.mrb[0].mxu0
        %v2180 = vpop.f32.mrb[0].mxu0
        %v2181 = vadd.f32 %v1933, %v2180
        %v2182 = vpop.f32.mrb[0].mxu0
        %2183 = vmatprep.mubr.bf16.mxu0 0
        %2184 = vmatmul.mubr.bf16.gmra.mrb[0].mxu0 %v1996
        %v2185 = vpop.f32.mrb[0].mxu0
        %v2186 = vadd.f32 %v1933, %v2185
        %v2187 = vpop.f32.mrb[0].mxu0
        %v2188 = vpop.f32.mrb[0].mxu0
        %v2189 = vadd.f32 %v1933, %v2188
        %v2190 = vpop.f32.mrb[0].mxu0
        %2191 = vmatprep.mubr.bf16.mxu0 0
        %2192 = vmatmul.mubr.bf16.gmra.mrb[0].mxu0 %v1999
        %v2193 = vpop.f32.mrb[0].mxu0
        %v2194 = vadd.f32 %v1933, %v2193
        %v2195 = vpop.f32.mrb[0].mxu0
        %v2196 = vpop.f32.mrb[0].mxu0
        %v2197 = vadd.f32 %v1933, %v2196
        %v2198 = vpop.f32.mrb[0].mxu0
        %2199 = vmatprep.mubr.bf16.mxu0 0
        %2200 = vmatmul.mubr.bf16.gmra.mrb[0].mxu0 %v2002
        %v2201 = vpop.f32.mrb[0].mxu0
        %v2202 = vadd.f32 %v1933, %v2201
        %v2203 = vpop.f32.mrb[0].mxu0
        %v2204 = vpop.f32.mrb[0].mxu0
        %v2205 = vadd.f32 %v1933, %v2204
        %v2206 = vpop.f32.mrb[0].mxu0
        %2207 = vmatprep.mubr.bf16.mxu0 0
        %2208 = vmatmul.mubr.bf16.gmra.mrb[0].mxu0 %v2005
        %v2209 = vpop.f32.mrb[0].mxu0
        %v2210 = vadd.f32 %v1933, %v2209
        %v2211 = vpop.f32.mrb[0].mxu0
        %v2212 = vpop.f32.mrb[0].mxu0
        %v2213 = vadd.f32 %v1933, %v2212
        %v2214 = vpop.f32.mrb[0].mxu0
        %2215 = vmatprep.mubr.bf16.mxu0 0
        %2216 = vmatmul.mubr.bf16.gmra.mrb[0].mxu0 %v2008
        %v2217 = vpop.f32.mrb[0].mxu0
        %v2218 = vadd.f32 %v1933, %v2217
        %v2219 = vpop.f32.mrb[0].mxu0
        %v2220 = vpop.f32.mrb[0].mxu0
        %v2221 = vadd.f32 %v1933, %v2220
        %v2222 = vpop.f32.mrb[0].mxu0
        %2223 = vmatprep.mubr.bf16.mxu0 0
        %2224 = vmatmul.mubr.bf16.gmra.mrb[0].mxu0 %v2011
        %v2225 = vpop.f32.mrb[0].mxu0
        %v2226 = vadd.f32 %v1933, %v2225
        %v2227 = vpop.f32.mrb[0].mxu0
        %v2228 = vpop.f32.mrb[0].mxu0
        %v2229 = vadd.f32 %v1933, %v2228
        %v2230 = vpop.f32.mrb[0].mxu0
        %2231 = vmatprep.mubr.bf16.mxu0 0
        %2232 = vmatmul.mubr.bf16.gmra.mrb[0].mxu0 %v2014
        %v2233 = vpop.f32.mrb[0].mxu0
        %v2234 = vadd.f32 %v1933, %v2233
        %v2235 = vpop.f32.mrb[0].mxu0
        %v2236 = vpop.f32.mrb[0].mxu0
        %v2237 = vadd.f32 %v1933, %v2236
        %v2238 = vpop.f32.mrb[0].mxu0
        %2239 = vmatprep.mubr.bf16.mxu0 0
        %2240 = vmatmul.mubr.bf16.gmra.mrb[0].mxu0 %v2017
        %v2241 = vpop.f32.mrb[0].mxu0
        %v2242 = vadd.f32 %v1933, %v2241
        %v2243 = vpop.f32.mrb[0].mxu0
        %v2244 = vpop.f32.mrb[0].mxu0
        %v2245 = vadd.f32 %v1933, %v2244
        %v2246 = vpop.f32.mrb[0].mxu0
        %2247 = vmatprep.mubr.bf16.mxu0 0
        %2248 = vmatmul.mubr.bf16.gmra.mrb[0].mxu0 %v2020
        %v2249 = vpop.f32.mrb[0].mxu0
        %v2250 = vadd.f32 %v1933, %v2249
        %v2251 = vpop.f32.mrb[0].mxu0
        %v2252 = vpop.f32.mrb[0].mxu0
        %v2253 = vadd.f32 %v1933, %v2252
        %v2254 = vpop.f32.mrb[0].mxu0
        %2255 = vmatprep.mubr.bf16.mxu0 0
        %2256 = vmatmul.mubr.bf16.gmra.mrb[0].mxu0 %v2023
        %v2257 = vpop.f32.mrb[0].mxu0
        %v2258 = vadd.f32 %v1933, %v2257
        %v2259 = vpop.f32.mrb[0].mxu0
        %v2260 = vpop.f32.mrb[0].mxu0
        %v2261 = vadd.f32 %v1933, %v2260
        %v2262 = vpop.f32.mrb[0].mxu0
        %2263 = vmatprep.mubr.bf16.mxu0 0
        %2264 = vmatmul.mubr.bf16.gmra.mrb[0].mxu0 %v2026
        %v2265 = vpop.f32.mrb[0].mxu0
        %v2266 = vadd.f32 %v1933, %v2265
        %v2267 = vpop.f32.mrb[0].mxu0
        %v2268 = vpop.f32.mrb[0].mxu0
        %v2269 = vadd.f32 %v1933, %v2268
        %v2270 = vpop.f32.mrb[0].mxu0
        %2271 = vmatprep.mubr.bf16.mxu0 0
        %2272 = vmatmul.mubr.bf16.gmra.mrb[0].mxu0 %v2029
        %v2273 = vpop.f32.mrb[0].mxu0
        %v2274 = vadd.f32 %v1933, %v2273
        %v2275 = vpop.f32.mrb[0].mxu0
        %v2276 = vpop.f32.mrb[0].mxu0
        %v2277 = vadd.f32 %v1933, %v2276
        %v2278 = vpop.f32.mrb[0].mxu0
        %2279 = vmatprep.mubr.bf16.mxu0 0
        %2280 = vmatmul.mubr.bf16.gmra.mrb[0].mxu0 %v2032
        %v2281 = vpop.f32.mrb[0].mxu0
        %v2282 = vadd.f32 %v1933, %v2281
        %v2283 = vpop.f32.mrb[0].mxu0
        %v2284 = vpop.f32.mrb[0].mxu0
        %v2285 = vadd.f32 %v1933, %v2284
        %v2286 = vpop.f32.mrb[0].mxu0
        %2287 = vmatprep.mubr.bf16.mxu0 0
        %2288 = vmatmul.mubr.bf16.gmra.mrb[0].mxu0 %v2035
        %v2289 = vpop.f32.mrb[0].mxu0
        %v2290 = vadd.f32 %v1933, %v2289
        %v2291 = vpop.f32.mrb[0].mxu0
        %v2292 = vpop.f32.mrb[0].mxu0
        %v2293 = vadd.f32 %v1933, %v2292
        %v2294 = vpop.f32.mrb[0].mxu0
        %2295 = vmatprep.mubr.bf16.mxu0 0
        %2296 = vmatmul.mubr.bf16.gmra.mrb[0].mxu0 %v2038
        %v2297 = vpop.f32.mrb[0].mxu0
        %v2298 = vadd.f32 %v1933, %v2297
        %v2299 = vpop.f32.mrb[0].mxu0
        %v2300 = vpop.f32.mrb[0].mxu0
        %v2301 = vadd.f32 %v1933, %v2300
        %v2302 = vpop.f32.mrb[0].mxu0
        %2303 = vmatprep.mubr.bf16.mxu0 0
        %2304 = vmatmul.mubr.bf16.gmra.mrb[0].mxu0 %v2041
        %v2305 = vpop.f32.mrb[0].mxu0
        %v2306 = vadd.f32 %v1933, %v2305
        %v2307 = vpop.f32.mrb[0].mxu0
        %v2308 = vpop.f32.mrb[0].mxu0
        %v2309 = vadd.f32 %v1933, %v2308
        %v2310 = vpop.f32.mrb[0].mxu0
        %2311 = vmatprep.mubr.bf16.mxu0 0
        %2312 = vmatmul.mubr.bf16.gmra.mrb[0].mxu0 %v2044
        %v2313 = vpop.f32.mrb[0].mxu0
        %v2314 = vadd.f32 %v1933, %v2313
        %v2315 = vpop.f32.mrb[0].mxu0
        %v2316 = vpop.f32.mrb[0].mxu0
        %v2317 = vadd.f32 %v1933, %v2316
        %v2318 = vpop.f32.mrb[0].mxu0
        %2319 = vmatprep.mubr.bf16.mxu0 0
        %2320 = vmatmul.mubr.bf16.gmra.mrb[0].mxu0 %v2047
        %v2321 = vpop.f32.mrb[0].mxu0
        %v2322 = vadd.f32 %v1933, %v2321
        %v2323 = vpop.f32.mrb[0].mxu0
        %v2324 = vpop.f32.mrb[0].mxu0
        %v2325 = vadd.f32 %v1933, %v2324
        %v2326 = vpop.f32.mrb[0].mxu0
        %2327 = vmatprep.mubr.bf16.mxu0 0
        %2328 = vmatmul.mubr.bf16.gmra.mrb[0].mxu0 %v2050
        %v2329 = vpop.f32.mrb[0].mxu0
        %v2330 = vadd.f32 %v1933, %v2329
        %v2331 = vpop.f32.mrb[0].mxu0
        %v2332 = vpop.f32.mrb[0].mxu0
        %v2333 = vadd.f32 %v1933, %v2332
        %v2334 = vpop.f32.mrb[0].mxu0
        %2335 = vmatprep.mubr.bf16.mxu0 0
        %2336 = vmatmul.mubr.bf16.gmra.mrb[0].mxu0 %v2053
        %v2337 = vpop.f32.mrb[0].mxu0
        %v2338 = vadd.f32 %v1933, %v2337
        %v2339 = vpop.f32.mrb[0].mxu0
        %v2340 = vpop.f32.mrb[0].mxu0
        %v2341 = vadd.f32 %v1933, %v2340
        %v2342 = vpop.f32.mrb[0].mxu0
        %2343 = vdwg.mxu0
        %v2344 = vmax.f32 %v2090, 0.0
        %v2345 = vmax.f32 %v2093, 0.0
        %v2346 = vmax.f32 %v2098, 0.0
        %v2347 = vmax.f32 %v2101, 0.0
        %v2348 = vmax.f32 %v2106, 0.0
        %v2349 = vmax.f32 %v2109, 0.0
        %v2350 = vmax.f32 %v2114, 0.0
        %v2351 = vmax.f32 %v2117, 0.0
        %v2352 = vmax.f32 %v2122, 0.0
        %v2353 = vmax.f32 %v2125, 0.0
        %v2354 = vmax.f32 %v2130, 0.0
        %v2355 = vmax.f32 %v2133, 0.0
        %v2356 = vmax.f32 %v2138, 0.0
        %v2357 = vmax.f32 %v2141, 0.0
        %v2358 = vmax.f32 %v2146, 0.0
        %v2359 = vmax.f32 %v2149, 0.0
        %v2360 = vmax.f32 %v2154, 0.0
        %v2361 = vmax.f32 %v2157, 0.0
        %v2362 = vmax.f32 %v2162, 0.0
        %v2363 = vmax.f32 %v2165, 0.0
        %v2364 = vmax.f32 %v2170, 0.0
        %v2365 = vmax.f32 %v2173, 0.0
        %v2366 = vmax.f32 %v2178, 0.0
        %v2367 = vmax.f32 %v2181, 0.0
        %v2368 = vmax.f32 %v2186, 0.0
        %v2369 = vmax.f32 %v2189, 0.0
        %v2370 = vmax.f32 %v2194, 0.0
        %v2371 = vmax.f32 %v2197, 0.0
        %v2372 = vmax.f32 %v2202, 0.0
        %v2373 = vmax.f32 %v2205, 0.0
        %v2374 = vmax.f32 %v2210, 0.0
        %v2375 = vmax.f32 %v2213, 0.0
        %v2376 = vmax.f32 %v2218, 0.0
        %v2377 = vmax.f32 %v2221, 0.0
        %v2378 = vmax.f32 %v2226, 0.0
        %v2379 = vmax.f32 %v2229, 0.0
        %v2380 = vmax.f32 %v2234, 0.0
        %v2381 = vmax.f32 %v2237, 0.0
        %v2382 = vmax.f32 %v2242, 0.0
        %v2383 = vmax.f32 %v2245, 0.0
        %v2384 = vmax.f32 %v2250, 0.0
        %v2385 = vmax.f32 %v2253, 0.0
        %v2386 = vmax.f32 %v2258, 0.0
        %v2387 = vmax.f32 %v2261, 0.0
        %v2388 = vmax.f32 %v2266, 0.0
        %v2389 = vmax.f32 %v2269, 0.0
        %v2390 = vmax.f32 %v2274, 0.0
        %v2391 = vmax.f32 %v2277, 0.0
        %v2392 = vmax.f32 %v2282, 0.0
        %v2393 = vmax.f32 %v2285, 0.0
        %v2394 = vmax.f32 %v2290, 0.0
        %v2395 = vmax.f32 %v2293, 0.0
        %v2396 = vmax.f32 %v2298, 0.0
        %v2397 = vmax.f32 %v2301, 0.0
        %v2398 = vmax.f32 %v2306, 0.0
        %v2399 = vmax.f32 %v2309, 0.0
        %v2400 = vmax.f32 %v2314, 0.0
        %v2401 = vmax.f32 %v2317, 0.0
        %v2402 = vmax.f32 %v2322, 0.0
        %v2403 = vmax.f32 %v2325, 0.0
        %v2404 = vmax.f32 %v2330, 0.0
        %v2405 = vmax.f32 %v2333, 0.0
        %v2406 = vmax.f32 %v2338, 0.0
        %v2407 = vmax.f32 %v2341, 0.0
        %v2408 = vpack.c.bf16 %v2345, %v2344
        %v2409 = vpack.c.bf16 %v2347, %v2346
        %v2410 = vpack.c.bf16 %v2349, %v2348
        %v2411 = vpack.c.bf16 %v2351, %v2350
        %v2412 = vpack.c.bf16 %v2353, %v2352
        %v2413 = vpack.c.bf16 %v2355, %v2354
        %v2414 = vpack.c.bf16 %v2357, %v2356
        %v2415 = vpack.c.bf16 %v2359, %v2358
        %v2416 = vpack.c.bf16 %v2361, %v2360
        %v2417 = vpack.c.bf16 %v2363, %v2362
        %v2418 = vpack.c.bf16 %v2365, %v2364
        %v2419 = vpack.c.bf16 %v2367, %v2366
        %v2420 = vpack.c.bf16 %v2369, %v2368
        %v2421 = vpack.c.bf16 %v2371, %v2370
        %v2422 = vpack.c.bf16 %v2373, %v2372
        %v2423 = vpack.c.bf16 %v2375, %v2374
        %v2424 = vpack.c.bf16 %v2377, %v2376
        %v2425 = vpack.c.bf16 %v2379, %v2378
        %v2426 = vpack.c.bf16 %v2381, %v2380
        %v2427 = vpack.c.bf16 %v2383, %v2382
        %v2428 = vpack.c.bf16 %v2385, %v2384
        %v2429 = vpack.c.bf16 %v2387, %v2386
        %v2430 = vpack.c.bf16 %v2389, %v2388
        %v2431 = vpack.c.bf16 %v2391, %v2390
        %v2432 = vpack.c.bf16 %v2393, %v2392
        %v2433 = vpack.c.bf16 %v2395, %v2394
        %v2434 = vpack.c.bf16 %v2397, %v2396
        %v2435 = vpack.c.bf16 %v2399, %v2398
        %v2436 = vpack.c.bf16 %v2401, %v2400
        %v2437 = vpack.c.bf16 %v2403, %v2402
        %v2438 = vpack.c.bf16 %v2405, %v2404
        %v2439 = vpack.c.bf16 %v2407, %v2406
        %s2440 = scalar_lea.vmem %s3, 96
        %v2441 = vld [vmem:[%s2440] sm:$0xf]
        %v2442 = vld [vmem:[%s2440 + $0x4] sm:$0xf]
        %v2443 = vld [vmem:[%s2440 + $0x8] sm:$0xf]
        %v2444 = vld [vmem:[%s2440 + $0xc] sm:$0xf]
        %v2445 = vld [vmem:[%s2440 + $0x10] sm:$0xf]
        %v2446 = vld [vmem:[%s2440 + $0x14] sm:$0xf]
        %v2447 = vld [vmem:[%s2440 + $0x18] sm:$0xf]
        %v2448 = vld [vmem:[%s2440 + $0x1c] sm:$0xf]
        %v2457 = vunpack.c.l.b16 %v2441
        %v2458 = vunpack.c.l.b16 %v2442
        %v2459 = vunpack.c.l.b16 %v2443
        %v2460 = vunpack.c.l.b16 %v2444
        %v2461 = vunpack.c.l.b16 %v2445
        %v2462 = vunpack.c.l.b16 %v2446
        %v2463 = vunpack.c.l.b16 %v2447
        %v2464 = vunpack.c.l.b16 %v2448
        %v2465 = vpack.c.b16 %v2458, %v2457
        %v2466 = vpack.c.b16 %v2460, %v2459
        %v2467 = vpack.c.b16 %v2462, %v2461
        %v2468 = vpack.c.b16 %v2464, %v2463
        %2537 = vrot.lane.b32.xlu0 %v525, 64
        %v2538 = vpop.permute.xlu0 %2537
        %2539 = vrot.lane.b32.xlu0 %v528, 64
        %v2540 = vpop.permute.xlu0 %2539
        %2541 = vrot.lane.b32.xlu0 %v533, 64
        %v2542 = vpop.permute.xlu0 %2541
        %2543 = vrot.lane.b32.xlu0 %v536, 64
        %v2544 = vpop.permute.xlu0 %2543
        %2545 = vrot.lane.b32.xlu0 %v541, 64
        %v2546 = vpop.permute.xlu0 %2545
        %2547 = vrot.lane.b32.xlu0 %v544, 64
        %v2548 = vpop.permute.xlu0 %2547
        %2549 = vrot.lane.b32.xlu0 %v549, 64
        %v2550 = vpop.permute.xlu0 %2549
        %2551 = vrot.lane.b32.xlu0 %v552, 64
        %v2552 = vpop.permute.xlu0 %2551
        %2553 = vrot.lane.b32.xlu0 %v557, 64
        %v2554 = vpop.permute.xlu0 %2553
        %2555 = vrot.lane.b32.xlu0 %v560, 64
        %v2556 = vpop.permute.xlu0 %2555
        %2557 = vrot.lane.b32.xlu0 %v565, 64
        %v2558 = vpop.permute.xlu0 %2557
        %2559 = vrot.lane.b32.xlu0 %v568, 64
        %v2560 = vpop.permute.xlu0 %2559
        %2561 = vrot.lane.b32.xlu0 %v573, 64
        %v2562 = vpop.permute.xlu0 %2561
        %2563 = vrot.lane.b32.xlu0 %v576, 64
        %v2564 = vpop.permute.xlu0 %2563
        %2565 = vrot.lane.b32.xlu0 %v581, 64
        %v2566 = vpop.permute.xlu0 %2565
        %2567 = vrot.lane.b32.xlu0 %v584, 64
        %v2568 = vpop.permute.xlu0 %2567
        %2569 = vrot.lane.b32.xlu0 %v589, 64
        %v2570 = vpop.permute.xlu0 %2569
        %2571 = vrot.lane.b32.xlu0 %v592, 64
        %v2572 = vpop.permute.xlu0 %2571
        %2573 = vrot.lane.b32.xlu0 %v597, 64
        %v2574 = vpop.permute.xlu0 %2573
        %2575 = vrot.lane.b32.xlu0 %v600, 64
        %v2576 = vpop.permute.xlu0 %2575
        %2577 = vrot.lane.b32.xlu0 %v605, 64
        %v2578 = vpop.permute.xlu0 %2577
        %2579 = vrot.lane.b32.xlu0 %v608, 64
        %v2580 = vpop.permute.xlu0 %2579
        %2581 = vrot.lane.b32.xlu0 %v613, 64
        %v2582 = vpop.permute.xlu0 %2581
        %2583 = vrot.lane.b32.xlu0 %v616, 64
        %v2584 = vpop.permute.xlu0 %2583
        %2585 = vrot.lane.b32.xlu0 %v621, 64
        %v2586 = vpop.permute.xlu0 %2585
        %2587 = vrot.lane.b32.xlu0 %v624, 64
        %v2588 = vpop.permute.xlu0 %2587
        %2589 = vrot.lane.b32.xlu0 %v629, 64
        %v2590 = vpop.permute.xlu0 %2589
        %2591 = vrot.lane.b32.xlu0 %v632, 64
        %v2592 = vpop.permute.xlu0 %2591
        %2593 = vrot.lane.b32.xlu0 %v637, 64
        %v2594 = vpop.permute.xlu0 %2593
        %2595 = vrot.lane.b32.xlu0 %v640, 64
        %v2596 = vpop.permute.xlu0 %2595
        %2597 = vrot.lane.b32.xlu0 %v645, 64
        %v2598 = vpop.permute.xlu0 %2597
        %2599 = vrot.lane.b32.xlu0 %v648, 64
        %v2600 = vpop.permute.xlu0 %2599
        %2601 = vrot.lane.b32.xlu0 %v653, 64
        %v2602 = vpop.permute.xlu0 %2601
        %2603 = vrot.lane.b32.xlu0 %v656, 64
        %v2604 = vpop.permute.xlu0 %2603
        %2605 = vrot.lane.b32.xlu0 %v661, 64
        %v2606 = vpop.permute.xlu0 %2605
        %2607 = vrot.lane.b32.xlu0 %v664, 64
        %v2608 = vpop.permute.xlu0 %2607
        %2609 = vrot.lane.b32.xlu0 %v669, 64
        %v2610 = vpop.permute.xlu0 %2609
        %2611 = vrot.lane.b32.xlu0 %v672, 64
        %v2612 = vpop.permute.xlu0 %2611
        %2613 = vrot.lane.b32.xlu0 %v677, 64
        %v2614 = vpop.permute.xlu0 %2613
        %2615 = vrot.lane.b32.xlu0 %v680, 64
        %v2616 = vpop.permute.xlu0 %2615
        %2617 = vrot.lane.b32.xlu0 %v685, 64
        %v2618 = vpop.permute.xlu0 %2617
        %2619 = vrot.lane.b32.xlu0 %v688, 64
        %v2620 = vpop.permute.xlu0 %2619
        %2621 = vrot.lane.b32.xlu0 %v693, 64
        %v2622 = vpop.permute.xlu0 %2621
        %2623 = vrot.lane.b32.xlu0 %v696, 64
        %v2624 = vpop.permute.xlu0 %2623
        %2625 = vrot.lane.b32.xlu0 %v701, 64
        %v2626 = vpop.permute.xlu0 %2625
        %2627 = vrot.lane.b32.xlu0 %v704, 64
        %v2628 = vpop.permute.xlu0 %2627
        %2629 = vrot.lane.b32.xlu0 %v709, 64
        %v2630 = vpop.permute.xlu0 %2629
        %2631 = vrot.lane.b32.xlu0 %v712, 64
        %v2632 = vpop.permute.xlu0 %2631
        %2633 = vrot.lane.b32.xlu0 %v717, 64
        %v2634 = vpop.permute.xlu0 %2633
        %2635 = vrot.lane.b32.xlu0 %v720, 64
        %v2636 = vpop.permute.xlu0 %2635
        %2637 = vrot.lane.b32.xlu0 %v725, 64
        %v2638 = vpop.permute.xlu0 %2637
        %2639 = vrot.lane.b32.xlu0 %v728, 64
        %v2640 = vpop.permute.xlu0 %2639
        %2641 = vrot.lane.b32.xlu0 %v733, 64
        %v2642 = vpop.permute.xlu0 %2641
        %2643 = vrot.lane.b32.xlu0 %v736, 64
        %v2644 = vpop.permute.xlu0 %2643
        %2645 = vrot.lane.b32.xlu0 %v741, 64
        %v2646 = vpop.permute.xlu0 %2645
        %2647 = vrot.lane.b32.xlu0 %v744, 64
        %v2648 = vpop.permute.xlu0 %2647
        %2649 = vrot.lane.b32.xlu0 %v749, 64
        %v2650 = vpop.permute.xlu0 %2649
        %2651 = vrot.lane.b32.xlu0 %v752, 64
        %v2652 = vpop.permute.xlu0 %2651
        %2653 = vrot.lane.b32.xlu0 %v757, 64
        %v2654 = vpop.permute.xlu0 %2653
        %2655 = vrot.lane.b32.xlu0 %v760, 64
        %v2656 = vpop.permute.xlu0 %2655
        %2657 = vrot.lane.b32.xlu0 %v765, 64
        %v2658 = vpop.permute.xlu0 %2657
        %2659 = vrot.lane.b32.xlu0 %v768, 64
        %v2660 = vpop.permute.xlu0 %2659
        %2661 = vrot.lane.b32.xlu0 %v773, 64
        %v2662 = vpop.permute.xlu0 %2661
        %2663 = vrot.lane.b32.xlu0 %v776, 64
        %v2664 = vpop.permute.xlu0 %2663
        %v2730 = vsel %vm914, %v2408, 0
        %v2733 = vsel %vm914, %v2409, 0
        %v2736 = vsel %vm914, %v2410, 0
        %v2739 = vsel %vm914, %v2411, 0
        %v2742 = vsel %vm914, %v2412, 0
        %v2745 = vsel %vm914, %v2413, 0
        %v2748 = vsel %vm914, %v2414, 0
        %v2751 = vsel %vm914, %v2415, 0
        %v2754 = vsel %vm914, %v2416, 0
        %v2757 = vsel %vm914, %v2417, 0
        %v2760 = vsel %vm914, %v2418, 0
        %v2763 = vsel %vm914, %v2419, 0
        %v2766 = vsel %vm914, %v2420, 0
        %v2769 = vsel %vm914, %v2421, 0
        %v2772 = vsel %vm914, %v2422, 0
        %v2775 = vsel %vm914, %v2423, 0
        %v2778 = vsel %vm914, %v2424, 0
        %v2781 = vsel %vm914, %v2425, 0
        %v2784 = vsel %vm914, %v2426, 0
        %v2787 = vsel %vm914, %v2427, 0
        %v2790 = vsel %vm914, %v2428, 0
        %v2793 = vsel %vm914, %v2429, 0
        %v2796 = vsel %vm914, %v2430, 0
        %v2799 = vsel %vm914, %v2431, 0
        %v2802 = vsel %vm914, %v2432, 0
        %v2805 = vsel %vm914, %v2433, 0
        %v2808 = vsel %vm914, %v2434, 0
        %v2811 = vsel %vm914, %v2435, 0
        %v2814 = vsel %vm914, %v2436, 0
        %v2817 = vsel %vm914, %v2437, 0
        %v2820 = vsel %vm914, %v2438, 0
        %v2823 = vsel %vm914, %v2439, 0
        %2825 = vmatprep.subr.bf16.mxu0 0
        %2826 = vmatpush1.bf16.msra.mxu0 %v2465
        %2827 = vmatprep.subr.bf16.mxu0 0
        %2828 = vmatpush1.bf16.msra.mxu0 %v2466
        %2829 = vmatprep.subr.bf16.mxu0 0
        %2830 = vmatpush1.bf16.msra.mxu0 %v2467
        %2831 = vmatprep.subr.bf16.mxu0 0
        %2832 = vmatpush1.bf16.msra.mxu0 %v2468
        %2833 = vmatprep.subr.bf16.mxu0 0
        %2834 = vmatpush1.bf16.msra.mxu0 0
        %2835 = vmatprep.subr.bf16.mxu0 0
        %2836 = vmatpush1.bf16.msra.mxu0 0
        %2837 = vmatprep.subr.bf16.mxu0 0
        %2838 = vmatpush1.bf16.msra.mxu0 0
        %2839 = vmatprep.subr.bf16.mxu0 0
        %2840 = vmatpush1.bf16.msra.mxu0 0
        %2841 = vmatprep.subr.bf16.mxu0 0
        %2842 = vmatpush1.bf16.msra.mxu0 0
        %2843 = vmatprep.subr.bf16.mxu0 0
        %2844 = vmatpush1.bf16.msra.mxu0 0
        %2845 = vmatprep.subr.bf16.mxu0 0
        %2846 = vmatpush1.bf16.msra.mxu0 0
        %2847 = vmatprep.subr.bf16.mxu0 0
        %2848 = vmatpush1.bf16.msra.mxu0 0
        %2849 = vmatprep.subr.bf16.mxu0 0
        %2850 = vmatpush1.bf16.msra.mxu0 0
        %2851 = vmatprep.subr.bf16.mxu0 0
        %2852 = vmatpush1.bf16.msra.mxu0 0
        %2853 = vmatprep.subr.bf16.mxu0 0
        %2854 = vmatpush1.bf16.msra.mxu0 0
        %2855 = vmatprep.subr.bf16.mxu0 0
        %2856 = vmatpush1.bf16.msra.mxu0 0
        %2857 = vmatprep.mubr.bf16.mxu0 0
        %2858 = vmatmul.mubr.bf16.gmra.mrb[0].mxu0 %v2730
        %v2859 = vpop.f32.mrb[0].mxu0
        %v2860 = vadd.f32 %v2538, %v2859
        %v2861 = vpop.f32.mrb[0].mxu0
        %v2862 = vpop.f32.mrb[0].mxu0
        %v2863 = vadd.f32 %v2540, %v2862
        %v2864 = vpop.f32.mrb[0].mxu0
        %2865 = vmatprep.mubr.bf16.mxu0 0
        %2866 = vmatmul.mubr.bf16.gmra.mrb[0].mxu0 %v2733
        %v2867 = vpop.f32.mrb[0].mxu0
        %v2868 = vadd.f32 %v2542, %v2867
        %v2869 = vpop.f32.mrb[0].mxu0
        %v2870 = vpop.f32.mrb[0].mxu0
        %v2871 = vadd.f32 %v2544, %v2870
        %v2872 = vpop.f32.mrb[0].mxu0
        %2873 = vmatprep.mubr.bf16.mxu0 0
        %2874 = vmatmul.mubr.bf16.gmra.mrb[0].mxu0 %v2736
        %v2875 = vpop.f32.mrb[0].mxu0
        %v2876 = vadd.f32 %v2546, %v2875
        %v2877 = vpop.f32.mrb[0].mxu0
        %v2878 = vpop.f32.mrb[0].mxu0
        %v2879 = vadd.f32 %v2548, %v2878
        %v2880 = vpop.f32.mrb[0].mxu0
        %2881 = vmatprep.mubr.bf16.mxu0 0
        %2882 = vmatmul.mubr.bf16.gmra.mrb[0].mxu0 %v2739
        %v2883 = vpop.f32.mrb[0].mxu0
        %v2884 = vadd.f32 %v2550, %v2883
        %v2885 = vpop.f32.mrb[0].mxu0
        %v2886 = vpop.f32.mrb[0].mxu0
        %v2887 = vadd.f32 %v2552, %v2886
        %v2888 = vpop.f32.mrb[0].mxu0
        %2889 = vmatprep.mubr.bf16.mxu0 0
        %2890 = vmatmul.mubr.bf16.gmra.mrb[0].mxu0 %v2742
        %v2891 = vpop.f32.mrb[0].mxu0
        %v2892 = vadd.f32 %v2554, %v2891
        %v2893 = vpop.f32.mrb[0].mxu0
        %v2894 = vpop.f32.mrb[0].mxu0
        %v2895 = vadd.f32 %v2556, %v2894
        %v2896 = vpop.f32.mrb[0].mxu0
        %2897 = vmatprep.mubr.bf16.mxu0 0
        %2898 = vmatmul.mubr.bf16.gmra.mrb[0].mxu0 %v2745
        %v2899 = vpop.f32.mrb[0].mxu0
        %v2900 = vadd.f32 %v2558, %v2899
        %v2901 = vpop.f32.mrb[0].mxu0
        %v2902 = vpop.f32.mrb[0].mxu0
        %v2903 = vadd.f32 %v2560, %v2902
        %v2904 = vpop.f32.mrb[0].mxu0
        %2905 = vmatprep.mubr.bf16.mxu0 0
        %2906 = vmatmul.mubr.bf16.gmra.mrb[0].mxu0 %v2748
        %v2907 = vpop.f32.mrb[0].mxu0
        %v2908 = vadd.f32 %v2562, %v2907
        %v2909 = vpop.f32.mrb[0].mxu0
        %v2910 = vpop.f32.mrb[0].mxu0
        %v2911 = vadd.f32 %v2564, %v2910
        %v2912 = vpop.f32.mrb[0].mxu0
        %2913 = vmatprep.mubr.bf16.mxu0 0
        %2914 = vmatmul.mubr.bf16.gmra.mrb[0].mxu0 %v2751
        %v2915 = vpop.f32.mrb[0].mxu0
        %v2916 = vadd.f32 %v2566, %v2915
        %v2917 = vpop.f32.mrb[0].mxu0
        %v2918 = vpop.f32.mrb[0].mxu0
        %v2919 = vadd.f32 %v2568, %v2918
        %v2920 = vpop.f32.mrb[0].mxu0
        %2921 = vmatprep.mubr.bf16.mxu0 0
        %2922 = vmatmul.mubr.bf16.gmra.mrb[0].mxu0 %v2754
        %v2923 = vpop.f32.mrb[0].mxu0
        %v2924 = vadd.f32 %v2570, %v2923
        %v2925 = vpop.f32.mrb[0].mxu0
        %v2926 = vpop.f32.mrb[0].mxu0
        %v2927 = vadd.f32 %v2572, %v2926
        %v2928 = vpop.f32.mrb[0].mxu0
        %2929 = vmatprep.mubr.bf16.mxu0 0
        %2930 = vmatmul.mubr.bf16.gmra.mrb[0].mxu0 %v2757
        %v2931 = vpop.f32.mrb[0].mxu0
        %v2932 = vadd.f32 %v2574, %v2931
        %v2933 = vpop.f32.mrb[0].mxu0
        %v2934 = vpop.f32.mrb[0].mxu0
        %v2935 = vadd.f32 %v2576, %v2934
        %v2936 = vpop.f32.mrb[0].mxu0
        %2937 = vmatprep.mubr.bf16.mxu0 0
        %2938 = vmatmul.mubr.bf16.gmra.mrb[0].mxu0 %v2760
        %v2939 = vpop.f32.mrb[0].mxu0
        %v2940 = vadd.f32 %v2578, %v2939
        %v2941 = vpop.f32.mrb[0].mxu0
        %v2942 = vpop.f32.mrb[0].mxu0
        %v2943 = vadd.f32 %v2580, %v2942
        %v2944 = vpop.f32.mrb[0].mxu0
        %2945 = vmatprep.mubr.bf16.mxu0 0
        %2946 = vmatmul.mubr.bf16.gmra.mrb[0].mxu0 %v2763
        %v2947 = vpop.f32.mrb[0].mxu0
        %v2948 = vadd.f32 %v2582, %v2947
        %v2949 = vpop.f32.mrb[0].mxu0
        %v2950 = vpop.f32.mrb[0].mxu0
        %v2951 = vadd.f32 %v2584, %v2950
        %v2952 = vpop.f32.mrb[0].mxu0
        %2953 = vmatprep.mubr.bf16.mxu0 0
        %2954 = vmatmul.mubr.bf16.gmra.mrb[0].mxu0 %v2766
        %v2955 = vpop.f32.mrb[0].mxu0
        %v2956 = vadd.f32 %v2586, %v2955
        %v2957 = vpop.f32.mrb[0].mxu0
        %v2958 = vpop.f32.mrb[0].mxu0
        %v2959 = vadd.f32 %v2588, %v2958
        %v2960 = vpop.f32.mrb[0].mxu0
        %2961 = vmatprep.mubr.bf16.mxu0 0
        %2962 = vmatmul.mubr.bf16.gmra.mrb[0].mxu0 %v2769
        %v2963 = vpop.f32.mrb[0].mxu0
        %v2964 = vadd.f32 %v2590, %v2963
        %v2965 = vpop.f32.mrb[0].mxu0
        %v2966 = vpop.f32.mrb[0].mxu0
        %v2967 = vadd.f32 %v2592, %v2966
        %v2968 = vpop.f32.mrb[0].mxu0
        %2969 = vmatprep.mubr.bf16.mxu0 0
        %2970 = vmatmul.mubr.bf16.gmra.mrb[0].mxu0 %v2772
        %v2971 = vpop.f32.mrb[0].mxu0
        %v2972 = vadd.f32 %v2594, %v2971
        %v2973 = vpop.f32.mrb[0].mxu0
        %v2974 = vpop.f32.mrb[0].mxu0
        %v2975 = vadd.f32 %v2596, %v2974
        %v2976 = vpop.f32.mrb[0].mxu0
        %2977 = vmatprep.mubr.bf16.mxu0 0
        %2978 = vmatmul.mubr.bf16.gmra.mrb[0].mxu0 %v2775
        %v2979 = vpop.f32.mrb[0].mxu0
        %v2980 = vadd.f32 %v2598, %v2979
        %v2981 = vpop.f32.mrb[0].mxu0
        %v2982 = vpop.f32.mrb[0].mxu0
        %v2983 = vadd.f32 %v2600, %v2982
        %v2984 = vpop.f32.mrb[0].mxu0
        %2985 = vmatprep.mubr.bf16.mxu0 0
        %2986 = vmatmul.mubr.bf16.gmra.mrb[0].mxu0 %v2778
        %v2987 = vpop.f32.mrb[0].mxu0
        %v2988 = vadd.f32 %v2602, %v2987
        %v2989 = vpop.f32.mrb[0].mxu0
        %v2990 = vpop.f32.mrb[0].mxu0
        %v2991 = vadd.f32 %v2604, %v2990
        %v2992 = vpop.f32.mrb[0].mxu0
        %2993 = vmatprep.mubr.bf16.mxu0 0
        %2994 = vmatmul.mubr.bf16.gmra.mrb[0].mxu0 %v2781
        %v2995 = vpop.f32.mrb[0].mxu0
        %v2996 = vadd.f32 %v2606, %v2995
        %v2997 = vpop.f32.mrb[0].mxu0
        %v2998 = vpop.f32.mrb[0].mxu0
        %v2999 = vadd.f32 %v2608, %v2998
        %v3000 = vpop.f32.mrb[0].mxu0
        %3001 = vmatprep.mubr.bf16.mxu0 0
        %3002 = vmatmul.mubr.bf16.gmra.mrb[0].mxu0 %v2784
        %v3003 = vpop.f32.mrb[0].mxu0
        %v3004 = vadd.f32 %v2610, %v3003
        %v3005 = vpop.f32.mrb[0].mxu0
        %v3006 = vpop.f32.mrb[0].mxu0
        %v3007 = vadd.f32 %v2612, %v3006
        %v3008 = vpop.f32.mrb[0].mxu0
        %3009 = vmatprep.mubr.bf16.mxu0 0
        %3010 = vmatmul.mubr.bf16.gmra.mrb[0].mxu0 %v2787
        %v3011 = vpop.f32.mrb[0].mxu0
        %v3012 = vadd.f32 %v2614, %v3011
        %v3013 = vpop.f32.mrb[0].mxu0
        %v3014 = vpop.f32.mrb[0].mxu0
        %v3015 = vadd.f32 %v2616, %v3014
        %v3016 = vpop.f32.mrb[0].mxu0
        %3017 = vmatprep.mubr.bf16.mxu0 0
        %3018 = vmatmul.mubr.bf16.gmra.mrb[0].mxu0 %v2790
        %v3019 = vpop.f32.mrb[0].mxu0
        %v3020 = vadd.f32 %v2618, %v3019
        %v3021 = vpop.f32.mrb[0].mxu0
        %v3022 = vpop.f32.mrb[0].mxu0
        %v3023 = vadd.f32 %v2620, %v3022
        %v3024 = vpop.f32.mrb[0].mxu0
        %3025 = vmatprep.mubr.bf16.mxu0 0
        %3026 = vmatmul.mubr.bf16.gmra.mrb[0].mxu0 %v2793
        %v3027 = vpop.f32.mrb[0].mxu0
        %v3028 = vadd.f32 %v2622, %v3027
        %v3029 = vpop.f32.mrb[0].mxu0
        %v3030 = vpop.f32.mrb[0].mxu0
        %v3031 = vadd.f32 %v2624, %v3030
        %v3032 = vpop.f32.mrb[0].mxu0
        %3033 = vmatprep.mubr.bf16.mxu0 0
        %3034 = vmatmul.mubr.bf16.gmra.mrb[0].mxu0 %v2796
        %v3035 = vpop.f32.mrb[0].mxu0
        %v3036 = vadd.f32 %v2626, %v3035
        %v3037 = vpop.f32.mrb[0].mxu0
        %v3038 = vpop.f32.mrb[0].mxu0
        %v3039 = vadd.f32 %v2628, %v3038
        %v3040 = vpop.f32.mrb[0].mxu0
        %3041 = vmatprep.mubr.bf16.mxu0 0
        %3042 = vmatmul.mubr.bf16.gmra.mrb[0].mxu0 %v2799
        %v3043 = vpop.f32.mrb[0].mxu0
        %v3044 = vadd.f32 %v2630, %v3043
        %v3045 = vpop.f32.mrb[0].mxu0
        %v3046 = vpop.f32.mrb[0].mxu0
        %v3047 = vadd.f32 %v2632, %v3046
        %v3048 = vpop.f32.mrb[0].mxu0
        %3049 = vmatprep.mubr.bf16.mxu0 0
        %3050 = vmatmul.mubr.bf16.gmra.mrb[0].mxu0 %v2802
        %v3051 = vpop.f32.mrb[0].mxu0
        %v3052 = vadd.f32 %v2634, %v3051
        %v3053 = vpop.f32.mrb[0].mxu0
        %v3054 = vpop.f32.mrb[0].mxu0
        %v3055 = vadd.f32 %v2636, %v3054
        %v3056 = vpop.f32.mrb[0].mxu0
        %3057 = vmatprep.mubr.bf16.mxu0 0
        %3058 = vmatmul.mubr.bf16.gmra.mrb[0].mxu0 %v2805
        %v3059 = vpop.f32.mrb[0].mxu0
        %v3060 = vadd.f32 %v2638, %v3059
        %v3061 = vpop.f32.mrb[0].mxu0
        %v3062 = vpop.f32.mrb[0].mxu0
        %v3063 = vadd.f32 %v2640, %v3062
        %v3064 = vpop.f32.mrb[0].mxu0
        %3065 = vmatprep.mubr.bf16.mxu0 0
        %3066 = vmatmul.mubr.bf16.gmra.mrb[0].mxu0 %v2808
        %v3067 = vpop.f32.mrb[0].mxu0
        %v3068 = vadd.f32 %v2642, %v3067
        %v3069 = vpop.f32.mrb[0].mxu0
        %v3070 = vpop.f32.mrb[0].mxu0
        %v3071 = vadd.f32 %v2644, %v3070
        %v3072 = vpop.f32.mrb[0].mxu0
        %3073 = vmatprep.mubr.bf16.mxu0 0
        %3074 = vmatmul.mubr.bf16.gmra.mrb[0].mxu0 %v2811
        %v3075 = vpop.f32.mrb[0].mxu0
        %v3076 = vadd.f32 %v2646, %v3075
        %v3077 = vpop.f32.mrb[0].mxu0
        %v3078 = vpop.f32.mrb[0].mxu0
        %v3079 = vadd.f32 %v2648, %v3078
        %v3080 = vpop.f32.mrb[0].mxu0
        %3081 = vmatprep.mubr.bf16.mxu0 0
        %3082 = vmatmul.mubr.bf16.gmra.mrb[0].mxu0 %v2814
        %v3083 = vpop.f32.mrb[0].mxu0
        %v3084 = vadd.f32 %v2650, %v3083
        %v3085 = vpop.f32.mrb[0].mxu0
        %v3086 = vpop.f32.mrb[0].mxu0
        %v3087 = vadd.f32 %v2652, %v3086
        %v3088 = vpop.f32.mrb[0].mxu0
        %3089 = vmatprep.mubr.bf16.mxu0 0
        %3090 = vmatmul.mubr.bf16.gmra.mrb[0].mxu0 %v2817
        %v3091 = vpop.f32.mrb[0].mxu0
        %v3092 = vadd.f32 %v2654, %v3091
        %v3093 = vpop.f32.mrb[0].mxu0
        %v3094 = vpop.f32.mrb[0].mxu0
        %v3095 = vadd.f32 %v2656, %v3094
        %v3096 = vpop.f32.mrb[0].mxu0
        %3097 = vmatprep.mubr.bf16.mxu0 0
        %3098 = vmatmul.mubr.bf16.gmra.mrb[0].mxu0 %v2820
        %v3099 = vpop.f32.mrb[0].mxu0
        %v3100 = vadd.f32 %v2658, %v3099
        %v3101 = vpop.f32.mrb[0].mxu0
        %v3102 = vpop.f32.mrb[0].mxu0
        %v3103 = vadd.f32 %v2660, %v3102
        %v3104 = vpop.f32.mrb[0].mxu0
        %3105 = vmatprep.mubr.bf16.mxu0 0
        %3106 = vmatmul.mubr.bf16.gmra.mrb[0].mxu0 %v2823
        %v3107 = vpop.f32.mrb[0].mxu0
        %v3108 = vadd.f32 %v2662, %v3107
        %v3109 = vpop.f32.mrb[0].mxu0
        %v3110 = vpop.f32.mrb[0].mxu0
        %v3111 = vadd.f32 %v2664, %v3110
        %v3112 = vpop.f32.mrb[0].mxu0
        %3113 = vdwg.mxu0
        %s3114 = scalar_lea.vmem %s4, 3
        %v3115 = vld [vmem:[%s3114] sm:$0x1]
        %v3117 = vlaneseq
        %v3118 = vshrl.u32 %v3117, 7
        %v3119 = vsub.s32 0, %v3118
        %v3120 = vrot.slane %v3115, %v3119
        %v3122 = vadd.f32 %v2860, %v3120
        %v3123 = vadd.f32 %v2863, %v3120
        %v3124 = vadd.f32 %v2868, %v3120
        %v3125 = vadd.f32 %v2871, %v3120
        %v3126 = vadd.f32 %v2876, %v3120
        %v3127 = vadd.f32 %v2879, %v3120
        %v3128 = vadd.f32 %v2884, %v3120
        %v3129 = vadd.f32 %v2887, %v3120
        %v3130 = vadd.f32 %v2892, %v3120
        %v3131 = vadd.f32 %v2895, %v3120
        %v3132 = vadd.f32 %v2900, %v3120
        %v3133 = vadd.f32 %v2903, %v3120
        %v3134 = vadd.f32 %v2908, %v3120
        %v3135 = vadd.f32 %v2911, %v3120
        %v3136 = vadd.f32 %v2916, %v3120
        %v3137 = vadd.f32 %v2919, %v3120
        %v3138 = vadd.f32 %v2924, %v3120
        %v3139 = vadd.f32 %v2927, %v3120
        %v3140 = vadd.f32 %v2932, %v3120
        %v3141 = vadd.f32 %v2935, %v3120
        %v3142 = vadd.f32 %v2940, %v3120
        %v3143 = vadd.f32 %v2943, %v3120
        %v3144 = vadd.f32 %v2948, %v3120
        %v3145 = vadd.f32 %v2951, %v3120
        %v3146 = vadd.f32 %v2956, %v3120
        %v3147 = vadd.f32 %v2959, %v3120
        %v3148 = vadd.f32 %v2964, %v3120
        %v3149 = vadd.f32 %v2967, %v3120
        %v3150 = vadd.f32 %v2972, %v3120
        %v3151 = vadd.f32 %v2975, %v3120
        %v3152 = vadd.f32 %v2980, %v3120
        %v3153 = vadd.f32 %v2983, %v3120
        %v3154 = vadd.f32 %v2988, %v3120
        %v3155 = vadd.f32 %v2991, %v3120
        %v3156 = vadd.f32 %v2996, %v3120
        %v3157 = vadd.f32 %v2999, %v3120
        %v3158 = vadd.f32 %v3004, %v3120
        %v3159 = vadd.f32 %v3007, %v3120
        %v3160 = vadd.f32 %v3012, %v3120
        %v3161 = vadd.f32 %v3015, %v3120
        %v3162 = vadd.f32 %v3020, %v3120
        %v3163 = vadd.f32 %v3023, %v3120
        %v3164 = vadd.f32 %v3028, %v3120
        %v3165 = vadd.f32 %v3031, %v3120
        %v3166 = vadd.f32 %v3036, %v3120
        %v3167 = vadd.f32 %v3039, %v3120
        %v3168 = vadd.f32 %v3044, %v3120
        %v3169 = vadd.f32 %v3047, %v3120
        %v3170 = vadd.f32 %v3052, %v3120
        %v3171 = vadd.f32 %v3055, %v3120
        %v3172 = vadd.f32 %v3060, %v3120
        %v3173 = vadd.f32 %v3063, %v3120
        %v3174 = vadd.f32 %v3068, %v3120
        %v3175 = vadd.f32 %v3071, %v3120
        %v3176 = vadd.f32 %v3076, %v3120
        %v3177 = vadd.f32 %v3079, %v3120
        %v3178 = vadd.f32 %v3084, %v3120
        %v3179 = vadd.f32 %v3087, %v3120
        %v3180 = vadd.f32 %v3092, %v3120
        %v3181 = vadd.f32 %v3095, %v3120
        %v3182 = vadd.f32 %v3100, %v3120
        %v3183 = vadd.f32 %v3103, %v3120
        %v3184 = vadd.f32 %v3108, %v3120
        %v3185 = vadd.f32 %v3111, %v3120
        %v3186 = vmax.f32 %v3122, 0.0
        %v3187 = vmax.f32 %v3123, 0.0
        %v3188 = vmax.f32 %v3124, 0.0
        %v3189 = vmax.f32 %v3125, 0.0
        %v3190 = vmax.f32 %v3126, 0.0
        %v3191 = vmax.f32 %v3127, 0.0
        %v3192 = vmax.f32 %v3128, 0.0
        %v3193 = vmax.f32 %v3129, 0.0
        %v3194 = vmax.f32 %v3130, 0.0
        %v3195 = vmax.f32 %v3131, 0.0
        %v3196 = vmax.f32 %v3132, 0.0
        %v3197 = vmax.f32 %v3133, 0.0
        %v3198 = vmax.f32 %v3134, 0.0
        %v3199 = vmax.f32 %v3135, 0.0
        %v3200 = vmax.f32 %v3136, 0.0
        %v3201 = vmax.f32 %v3137, 0.0
        %v3202 = vmax.f32 %v3138, 0.0
        %v3203 = vmax.f32 %v3139, 0.0
        %v3204 = vmax.f32 %v3140, 0.0
        %v3205 = vmax.f32 %v3141, 0.0
        %v3206 = vmax.f32 %v3142, 0.0
        %v3207 = vmax.f32 %v3143, 0.0
        %v3208 = vmax.f32 %v3144, 0.0
        %v3209 = vmax.f32 %v3145, 0.0
        %v3210 = vmax.f32 %v3146, 0.0
        %v3211 = vmax.f32 %v3147, 0.0
        %v3212 = vmax.f32 %v3148, 0.0
        %v3213 = vmax.f32 %v3149, 0.0
        %v3214 = vmax.f32 %v3150, 0.0
        %v3215 = vmax.f32 %v3151, 0.0
        %v3216 = vmax.f32 %v3152, 0.0
        %v3217 = vmax.f32 %v3153, 0.0
        %v3218 = vmax.f32 %v3154, 0.0
        %v3219 = vmax.f32 %v3155, 0.0
        %v3220 = vmax.f32 %v3156, 0.0
        %v3221 = vmax.f32 %v3157, 0.0
        %v3222 = vmax.f32 %v3158, 0.0
        %v3223 = vmax.f32 %v3159, 0.0
        %v3224 = vmax.f32 %v3160, 0.0
        %v3225 = vmax.f32 %v3161, 0.0
        %v3226 = vmax.f32 %v3162, 0.0
        %v3227 = vmax.f32 %v3163, 0.0
        %v3228 = vmax.f32 %v3164, 0.0
        %v3229 = vmax.f32 %v3165, 0.0
        %v3230 = vmax.f32 %v3166, 0.0
        %v3231 = vmax.f32 %v3167, 0.0
        %v3232 = vmax.f32 %v3168, 0.0
        %v3233 = vmax.f32 %v3169, 0.0
        %v3234 = vmax.f32 %v3170, 0.0
        %v3235 = vmax.f32 %v3171, 0.0
        %v3236 = vmax.f32 %v3172, 0.0
        %v3237 = vmax.f32 %v3173, 0.0
        %v3238 = vmax.f32 %v3174, 0.0
        %v3239 = vmax.f32 %v3175, 0.0
        %v3240 = vmax.f32 %v3176, 0.0
        %v3241 = vmax.f32 %v3177, 0.0
        %v3242 = vmax.f32 %v3178, 0.0
        %v3243 = vmax.f32 %v3179, 0.0
        %v3244 = vmax.f32 %v3180, 0.0
        %v3245 = vmax.f32 %v3181, 0.0
        %v3246 = vmax.f32 %v3182, 0.0
        %v3247 = vmax.f32 %v3183, 0.0
        %v3248 = vmax.f32 %v3184, 0.0
        %v3249 = vmax.f32 %v3185, 0.0
        %v3250 = vpack.c.bf16 %v3187, %v3186
        %v3251 = vpack.c.bf16 %v3189, %v3188
        %v3252 = vpack.c.bf16 %v3191, %v3190
        %v3253 = vpack.c.bf16 %v3193, %v3192
        %v3254 = vpack.c.bf16 %v3195, %v3194
        %v3255 = vpack.c.bf16 %v3197, %v3196
        %v3256 = vpack.c.bf16 %v3199, %v3198
        %v3257 = vpack.c.bf16 %v3201, %v3200
        %v3258 = vpack.c.bf16 %v3203, %v3202
        %v3259 = vpack.c.bf16 %v3205, %v3204
        %v3260 = vpack.c.bf16 %v3207, %v3206
        %v3261 = vpack.c.bf16 %v3209, %v3208
        %v3262 = vpack.c.bf16 %v3211, %v3210
        %v3263 = vpack.c.bf16 %v3213, %v3212
        %v3264 = vpack.c.bf16 %v3215, %v3214
        %v3265 = vpack.c.bf16 %v3217, %v3216
        %v3266 = vpack.c.bf16 %v3219, %v3218
        %v3267 = vpack.c.bf16 %v3221, %v3220
        %v3268 = vpack.c.bf16 %v3223, %v3222
        %v3269 = vpack.c.bf16 %v3225, %v3224
        %v3270 = vpack.c.bf16 %v3227, %v3226
        %v3271 = vpack.c.bf16 %v3229, %v3228
        %v3272 = vpack.c.bf16 %v3231, %v3230
        %v3273 = vpack.c.bf16 %v3233, %v3232
        %v3274 = vpack.c.bf16 %v3235, %v3234
        %v3275 = vpack.c.bf16 %v3237, %v3236
        %v3276 = vpack.c.bf16 %v3239, %v3238
        %v3277 = vpack.c.bf16 %v3241, %v3240
        %v3278 = vpack.c.bf16 %v3243, %v3242
        %v3279 = vpack.c.bf16 %v3245, %v3244
        %v3280 = vpack.c.bf16 %v3247, %v3246
        %v3281 = vpack.c.bf16 %v3249, %v3248
        %s3282 = scalar_lea.vmem %s3, 128
        %v3283 = vld [vmem:[%s3282] sm:$0xf]
        %v3284 = vld [vmem:[%s3282 + $0x4] sm:$0xf]
        %v3285 = vld [vmem:[%s3282 + $0x8] sm:$0xf]
        %v3286 = vld [vmem:[%s3282 + $0xc] sm:$0xf]
        %v3287 = vld [vmem:[%s3282 + $0x10] sm:$0xf]
        %v3288 = vld [vmem:[%s3282 + $0x14] sm:$0xf]
        %v3289 = vld [vmem:[%s3282 + $0x18] sm:$0xf]
        %v3290 = vld [vmem:[%s3282 + $0x1c] sm:$0xf]
        %s3291 = scalar_lea.vmem %s4, 4
        %v3292 = vld [vmem:[%s3291] sm:$0x1]
        %v3294 = vlaneseq
        %v3295 = vshrl.u32 %v3294, 7
        %v3296 = vsub.s32 0, %v3295
        %v3297 = vrot.slane %v3292, %v3296
        %v3307 = vunpack.c.l.b16 %v3283
        %v3308 = vunpack.c.l.b16 %v3284
        %v3309 = vunpack.c.l.b16 %v3285
        %v3310 = vunpack.c.l.b16 %v3286
        %v3311 = vunpack.c.l.b16 %v3287
        %v3312 = vunpack.c.l.b16 %v3288
        %v3313 = vunpack.c.l.b16 %v3289
        %v3314 = vunpack.c.l.b16 %v3290
        %v3315 = vpack.c.b16 %v3308, %v3307
        %v3316 = vpack.c.b16 %v3310, %v3309
        %v3317 = vpack.c.b16 %v3312, %v3311
        %v3318 = vpack.c.b16 %v3314, %v3313
        %v3324 = vsel %vm914, %v3250, 0
        %v3327 = vsel %vm914, %v3251, 0
        %v3330 = vsel %vm914, %v3252, 0
        %v3333 = vsel %vm914, %v3253, 0
        %v3336 = vsel %vm914, %v3254, 0
        %v3339 = vsel %vm914, %v3255, 0
        %v3342 = vsel %vm914, %v3256, 0
        %v3345 = vsel %vm914, %v3257, 0
        %v3348 = vsel %vm914, %v3258, 0
        %v3351 = vsel %vm914, %v3259, 0
        %v3354 = vsel %vm914, %v3260, 0
        %v3357 = vsel %vm914, %v3261, 0
        %v3360 = vsel %vm914, %v3262, 0
        %v3363 = vsel %vm914, %v3263, 0
        %v3366 = vsel %vm914, %v3264, 0
        %v3369 = vsel %vm914, %v3265, 0
        %v3372 = vsel %vm914, %v3266, 0
        %v3375 = vsel %vm914, %v3267, 0
        %v3378 = vsel %vm914, %v3268, 0
        %v3381 = vsel %vm914, %v3269, 0
        %v3384 = vsel %vm914, %v3270, 0
        %v3387 = vsel %vm914, %v3271, 0
        %v3390 = vsel %vm914, %v3272, 0
        %v3393 = vsel %vm914, %v3273, 0
        %v3396 = vsel %vm914, %v3274, 0
        %v3399 = vsel %vm914, %v3275, 0
        %v3402 = vsel %vm914, %v3276, 0
        %v3405 = vsel %vm914, %v3277, 0
        %v3408 = vsel %vm914, %v3278, 0
        %v3411 = vsel %vm914, %v3279, 0
        %v3414 = vsel %vm914, %v3280, 0
        %v3417 = vsel %vm914, %v3281, 0
        %3419 = vmatprep.subr.bf16.mxu0 0
        %3420 = vmatpush1.bf16.msra.mxu0 %v3315
        %3421 = vmatprep.subr.bf16.mxu0 0
        %3422 = vmatpush1.bf16.msra.mxu0 %v3316
        %3423 = vmatprep.subr.bf16.mxu0 0
        %3424 = vmatpush1.bf16.msra.mxu0 %v3317
        %3425 = vmatprep.subr.bf16.mxu0 0
        %3426 = vmatpush1.bf16.msra.mxu0 %v3318
        %3427 = vmatprep.subr.bf16.mxu0 0
        %3428 = vmatpush1.bf16.msra.mxu0 0
        %3429 = vmatprep.subr.bf16.mxu0 0
        %3430 = vmatpush1.bf16.msra.mxu0 0
        %3431 = vmatprep.subr.bf16.mxu0 0
        %3432 = vmatpush1.bf16.msra.mxu0 0
        %3433 = vmatprep.subr.bf16.mxu0 0
        %3434 = vmatpush1.bf16.msra.mxu0 0
        %3435 = vmatprep.subr.bf16.mxu0 0
        %3436 = vmatpush1.bf16.msra.mxu0 0
        %3437 = vmatprep.subr.bf16.mxu0 0
        %3438 = vmatpush1.bf16.msra.mxu0 0
        %3439 = vmatprep.subr.bf16.mxu0 0
        %3440 = vmatpush1.bf16.msra.mxu0 0
        %3441 = vmatprep.subr.bf16.mxu0 0
        %3442 = vmatpush1.bf16.msra.mxu0 0
        %3443 = vmatprep.subr.bf16.mxu0 0
        %3444 = vmatpush1.bf16.msra.mxu0 0
        %3445 = vmatprep.subr.bf16.mxu0 0
        %3446 = vmatpush1.bf16.msra.mxu0 0
        %3447 = vmatprep.subr.bf16.mxu0 0
        %3448 = vmatpush1.bf16.msra.mxu0 0
        %3449 = vmatprep.subr.bf16.mxu0 0
        %3450 = vmatpush1.bf16.msra.mxu0 0
        %3451 = vmatprep.mubr.bf16.mxu0 0
        %3452 = vmatmul.mubr.bf16.gmra.mrb[0].mxu0 %v3324
        %v3453 = vpop.f32.mrb[0].mxu0
        %v3454 = vadd.f32 %v3297, %v3453
        %v3455 = vpop.f32.mrb[0].mxu0
        %v3456 = vpop.f32.mrb[0].mxu0
        %v3457 = vadd.f32 %v3297, %v3456
        %v3458 = vpop.f32.mrb[0].mxu0
        %3459 = vmatprep.mubr.bf16.mxu0 0
        %3460 = vmatmul.mubr.bf16.gmra.mrb[0].mxu0 %v3327
        %v3461 = vpop.f32.mrb[0].mxu0
        %v3462 = vadd.f32 %v3297, %v3461
        %v3463 = vpop.f32.mrb[0].mxu0
        %v3464 = vpop.f32.mrb[0].mxu0
        %v3465 = vadd.f32 %v3297, %v3464
        %v3466 = vpop.f32.mrb[0].mxu0
        %3467 = vmatprep.mubr.bf16.mxu0 0
        %3468 = vmatmul.mubr.bf16.gmra.mrb[0].mxu0 %v3330
        %v3469 = vpop.f32.mrb[0].mxu0
        %v3470 = vadd.f32 %v3297, %v3469
        %v3471 = vpop.f32.mrb[0].mxu0
        %v3472 = vpop.f32.mrb[0].mxu0
        %v3473 = vadd.f32 %v3297, %v3472
        %v3474 = vpop.f32.mrb[0].mxu0
        %3475 = vmatprep.mubr.bf16.mxu0 0
        %3476 = vmatmul.mubr.bf16.gmra.mrb[0].mxu0 %v3333
        %v3477 = vpop.f32.mrb[0].mxu0
        %v3478 = vadd.f32 %v3297, %v3477
        %v3479 = vpop.f32.mrb[0].mxu0
        %v3480 = vpop.f32.mrb[0].mxu0
        %v3481 = vadd.f32 %v3297, %v3480
        %v3482 = vpop.f32.mrb[0].mxu0
        %3483 = vmatprep.mubr.bf16.mxu0 0
        %3484 = vmatmul.mubr.bf16.gmra.mrb[0].mxu0 %v3336
        %v3485 = vpop.f32.mrb[0].mxu0
        %v3486 = vadd.f32 %v3297, %v3485
        %v3487 = vpop.f32.mrb[0].mxu0
        %v3488 = vpop.f32.mrb[0].mxu0
        %v3489 = vadd.f32 %v3297, %v3488
        %v3490 = vpop.f32.mrb[0].mxu0
        %3491 = vmatprep.mubr.bf16.mxu0 0
        %3492 = vmatmul.mubr.bf16.gmra.mrb[0].mxu0 %v3339
        %v3493 = vpop.f32.mrb[0].mxu0
        %v3494 = vadd.f32 %v3297, %v3493
        %v3495 = vpop.f32.mrb[0].mxu0
        %v3496 = vpop.f32.mrb[0].mxu0
        %v3497 = vadd.f32 %v3297, %v3496
        %v3498 = vpop.f32.mrb[0].mxu0
        %3499 = vmatprep.mubr.bf16.mxu0 0
        %3500 = vmatmul.mubr.bf16.gmra.mrb[0].mxu0 %v3342
        %v3501 = vpop.f32.mrb[0].mxu0
        %v3502 = vadd.f32 %v3297, %v3501
        %v3503 = vpop.f32.mrb[0].mxu0
        %v3504 = vpop.f32.mrb[0].mxu0
        %v3505 = vadd.f32 %v3297, %v3504
        %v3506 = vpop.f32.mrb[0].mxu0
        %3507 = vmatprep.mubr.bf16.mxu0 0
        %3508 = vmatmul.mubr.bf16.gmra.mrb[0].mxu0 %v3345
        %v3509 = vpop.f32.mrb[0].mxu0
        %v3510 = vadd.f32 %v3297, %v3509
        %v3511 = vpop.f32.mrb[0].mxu0
        %v3512 = vpop.f32.mrb[0].mxu0
        %v3513 = vadd.f32 %v3297, %v3512
        %v3514 = vpop.f32.mrb[0].mxu0
        %3515 = vmatprep.mubr.bf16.mxu0 0
        %3516 = vmatmul.mubr.bf16.gmra.mrb[0].mxu0 %v3348
        %v3517 = vpop.f32.mrb[0].mxu0
        %v3518 = vadd.f32 %v3297, %v3517
        %v3519 = vpop.f32.mrb[0].mxu0
        %v3520 = vpop.f32.mrb[0].mxu0
        %v3521 = vadd.f32 %v3297, %v3520
        %v3522 = vpop.f32.mrb[0].mxu0
        %3523 = vmatprep.mubr.bf16.mxu0 0
        %3524 = vmatmul.mubr.bf16.gmra.mrb[0].mxu0 %v3351
        %v3525 = vpop.f32.mrb[0].mxu0
        %v3526 = vadd.f32 %v3297, %v3525
        %v3527 = vpop.f32.mrb[0].mxu0
        %v3528 = vpop.f32.mrb[0].mxu0
        %v3529 = vadd.f32 %v3297, %v3528
        %v3530 = vpop.f32.mrb[0].mxu0
        %3531 = vmatprep.mubr.bf16.mxu0 0
        %3532 = vmatmul.mubr.bf16.gmra.mrb[0].mxu0 %v3354
        %v3533 = vpop.f32.mrb[0].mxu0
        %v3534 = vadd.f32 %v3297, %v3533
        %v3535 = vpop.f32.mrb[0].mxu0
        %v3536 = vpop.f32.mrb[0].mxu0
        %v3537 = vadd.f32 %v3297, %v3536
        %v3538 = vpop.f32.mrb[0].mxu0
        %3539 = vmatprep.mubr.bf16.mxu0 0
        %3540 = vmatmul.mubr.bf16.gmra.mrb[0].mxu0 %v3357
        %v3541 = vpop.f32.mrb[0].mxu0
        %v3542 = vadd.f32 %v3297, %v3541
        %v3543 = vpop.f32.mrb[0].mxu0
        %v3544 = vpop.f32.mrb[0].mxu0
        %v3545 = vadd.f32 %v3297, %v3544
        %v3546 = vpop.f32.mrb[0].mxu0
        %3547 = vmatprep.mubr.bf16.mxu0 0
        %3548 = vmatmul.mubr.bf16.gmra.mrb[0].mxu0 %v3360
        %v3549 = vpop.f32.mrb[0].mxu0
        %v3550 = vadd.f32 %v3297, %v3549
        %v3551 = vpop.f32.mrb[0].mxu0
        %v3552 = vpop.f32.mrb[0].mxu0
        %v3553 = vadd.f32 %v3297, %v3552
        %v3554 = vpop.f32.mrb[0].mxu0
        %3555 = vmatprep.mubr.bf16.mxu0 0
        %3556 = vmatmul.mubr.bf16.gmra.mrb[0].mxu0 %v3363
        %v3557 = vpop.f32.mrb[0].mxu0
        %v3558 = vadd.f32 %v3297, %v3557
        %v3559 = vpop.f32.mrb[0].mxu0
        %v3560 = vpop.f32.mrb[0].mxu0
        %v3561 = vadd.f32 %v3297, %v3560
        %v3562 = vpop.f32.mrb[0].mxu0
        %3563 = vmatprep.mubr.bf16.mxu0 0
        %3564 = vmatmul.mubr.bf16.gmra.mrb[0].mxu0 %v3366
        %v3565 = vpop.f32.mrb[0].mxu0
        %v3566 = vadd.f32 %v3297, %v3565
        %v3567 = vpop.f32.mrb[0].mxu0
        %v3568 = vpop.f32.mrb[0].mxu0
        %v3569 = vadd.f32 %v3297, %v3568
        %v3570 = vpop.f32.mrb[0].mxu0
        %3571 = vmatprep.mubr.bf16.mxu0 0
        %3572 = vmatmul.mubr.bf16.gmra.mrb[0].mxu0 %v3369
        %v3573 = vpop.f32.mrb[0].mxu0
        %v3574 = vadd.f32 %v3297, %v3573
        %v3575 = vpop.f32.mrb[0].mxu0
        %v3576 = vpop.f32.mrb[0].mxu0
        %v3577 = vadd.f32 %v3297, %v3576
        %v3578 = vpop.f32.mrb[0].mxu0
        %3579 = vmatprep.mubr.bf16.mxu0 0
        %3580 = vmatmul.mubr.bf16.gmra.mrb[0].mxu0 %v3372
        %v3581 = vpop.f32.mrb[0].mxu0
        %v3582 = vadd.f32 %v3297, %v3581
        %v3583 = vpop.f32.mrb[0].mxu0
        %v3584 = vpop.f32.mrb[0].mxu0
        %v3585 = vadd.f32 %v3297, %v3584
        %v3586 = vpop.f32.mrb[0].mxu0
        %3587 = vmatprep.mubr.bf16.mxu0 0
        %3588 = vmatmul.mubr.bf16.gmra.mrb[0].mxu0 %v3375
        %v3589 = vpop.f32.mrb[0].mxu0
        %v3590 = vadd.f32 %v3297, %v3589
        %v3591 = vpop.f32.mrb[0].mxu0
        %v3592 = vpop.f32.mrb[0].mxu0
        %v3593 = vadd.f32 %v3297, %v3592
        %v3594 = vpop.f32.mrb[0].mxu0
        %3595 = vmatprep.mubr.bf16.mxu0 0
        %3596 = vmatmul.mubr.bf16.gmra.mrb[0].mxu0 %v3378
        %v3597 = vpop.f32.mrb[0].mxu0
        %v3598 = vadd.f32 %v3297, %v3597
        %v3599 = vpop.f32.mrb[0].mxu0
        %v3600 = vpop.f32.mrb[0].mxu0
        %v3601 = vadd.f32 %v3297, %v3600
        %v3602 = vpop.f32.mrb[0].mxu0
        %3603 = vmatprep.mubr.bf16.mxu0 0
        %3604 = vmatmul.mubr.bf16.gmra.mrb[0].mxu0 %v3381
        %v3605 = vpop.f32.mrb[0].mxu0
        %v3606 = vadd.f32 %v3297, %v3605
        %v3607 = vpop.f32.mrb[0].mxu0
        %v3608 = vpop.f32.mrb[0].mxu0
        %v3609 = vadd.f32 %v3297, %v3608
        %v3610 = vpop.f32.mrb[0].mxu0
        %3611 = vmatprep.mubr.bf16.mxu0 0
        %3612 = vmatmul.mubr.bf16.gmra.mrb[0].mxu0 %v3384
        %v3613 = vpop.f32.mrb[0].mxu0
        %v3614 = vadd.f32 %v3297, %v3613
        %v3615 = vpop.f32.mrb[0].mxu0
        %v3616 = vpop.f32.mrb[0].mxu0
        %v3617 = vadd.f32 %v3297, %v3616
        %v3618 = vpop.f32.mrb[0].mxu0
        %3619 = vmatprep.mubr.bf16.mxu0 0
        %3620 = vmatmul.mubr.bf16.gmra.mrb[0].mxu0 %v3387
        %v3621 = vpop.f32.mrb[0].mxu0
        %v3622 = vadd.f32 %v3297, %v3621
        %v3623 = vpop.f32.mrb[0].mxu0
        %v3624 = vpop.f32.mrb[0].mxu0
        %v3625 = vadd.f32 %v3297, %v3624
        %v3626 = vpop.f32.mrb[0].mxu0
        %3627 = vmatprep.mubr.bf16.mxu0 0
        %3628 = vmatmul.mubr.bf16.gmra.mrb[0].mxu0 %v3390
        %v3629 = vpop.f32.mrb[0].mxu0
        %v3630 = vadd.f32 %v3297, %v3629
        %v3631 = vpop.f32.mrb[0].mxu0
        %v3632 = vpop.f32.mrb[0].mxu0
        %v3633 = vadd.f32 %v3297, %v3632
        %v3634 = vpop.f32.mrb[0].mxu0
        %3635 = vmatprep.mubr.bf16.mxu0 0
        %3636 = vmatmul.mubr.bf16.gmra.mrb[0].mxu0 %v3393
        %v3637 = vpop.f32.mrb[0].mxu0
        %v3638 = vadd.f32 %v3297, %v3637
        %v3639 = vpop.f32.mrb[0].mxu0
        %v3640 = vpop.f32.mrb[0].mxu0
        %v3641 = vadd.f32 %v3297, %v3640
        %v3642 = vpop.f32.mrb[0].mxu0
        %3643 = vmatprep.mubr.bf16.mxu0 0
        %3644 = vmatmul.mubr.bf16.gmra.mrb[0].mxu0 %v3396
        %v3645 = vpop.f32.mrb[0].mxu0
        %v3646 = vadd.f32 %v3297, %v3645
        %v3647 = vpop.f32.mrb[0].mxu0
        %v3648 = vpop.f32.mrb[0].mxu0
        %v3649 = vadd.f32 %v3297, %v3648
        %v3650 = vpop.f32.mrb[0].mxu0
        %3651 = vmatprep.mubr.bf16.mxu0 0
        %3652 = vmatmul.mubr.bf16.gmra.mrb[0].mxu0 %v3399
        %v3653 = vpop.f32.mrb[0].mxu0
        %v3654 = vadd.f32 %v3297, %v3653
        %v3655 = vpop.f32.mrb[0].mxu0
        %v3656 = vpop.f32.mrb[0].mxu0
        %v3657 = vadd.f32 %v3297, %v3656
        %v3658 = vpop.f32.mrb[0].mxu0
        %3659 = vmatprep.mubr.bf16.mxu0 0
        %3660 = vmatmul.mubr.bf16.gmra.mrb[0].mxu0 %v3402
        %v3661 = vpop.f32.mrb[0].mxu0
        %v3662 = vadd.f32 %v3297, %v3661
        %v3663 = vpop.f32.mrb[0].mxu0
        %v3664 = vpop.f32.mrb[0].mxu0
        %v3665 = vadd.f32 %v3297, %v3664
        %v3666 = vpop.f32.mrb[0].mxu0
        %3667 = vmatprep.mubr.bf16.mxu0 0
        %3668 = vmatmul.mubr.bf16.gmra.mrb[0].mxu0 %v3405
        %v3669 = vpop.f32.mrb[0].mxu0
        %v3670 = vadd.f32 %v3297, %v3669
        %v3671 = vpop.f32.mrb[0].mxu0
        %v3672 = vpop.f32.mrb[0].mxu0
        %v3673 = vadd.f32 %v3297, %v3672
        %v3674 = vpop.f32.mrb[0].mxu0
        %3675 = vmatprep.mubr.bf16.mxu0 0
        %3676 = vmatmul.mubr.bf16.gmra.mrb[0].mxu0 %v3408
        %v3677 = vpop.f32.mrb[0].mxu0
        %v3678 = vadd.f32 %v3297, %v3677
        %v3679 = vpop.f32.mrb[0].mxu0
        %v3680 = vpop.f32.mrb[0].mxu0
        %v3681 = vadd.f32 %v3297, %v3680
        %v3682 = vpop.f32.mrb[0].mxu0
        %3683 = vmatprep.mubr.bf16.mxu0 0
        %3684 = vmatmul.mubr.bf16.gmra.mrb[0].mxu0 %v3411
        %v3685 = vpop.f32.mrb[0].mxu0
        %v3686 = vadd.f32 %v3297, %v3685
        %v3687 = vpop.f32.mrb[0].mxu0
        %v3688 = vpop.f32.mrb[0].mxu0
        %v3689 = vadd.f32 %v3297, %v3688
        %v3690 = vpop.f32.mrb[0].mxu0
        %3691 = vmatprep.mubr.bf16.mxu0 0
        %3692 = vmatmul.mubr.bf16.gmra.mrb[0].mxu0 %v3414
        %v3693 = vpop.f32.mrb[0].mxu0
        %v3694 = vadd.f32 %v3297, %v3693
        %v3695 = vpop.f32.mrb[0].mxu0
        %v3696 = vpop.f32.mrb[0].mxu0
        %v3697 = vadd.f32 %v3297, %v3696
        %v3698 = vpop.f32.mrb[0].mxu0
        %3699 = vmatprep.mubr.bf16.mxu0 0
        %3700 = vmatmul.mubr.bf16.gmra.mrb[0].mxu0 %v3417
        %v3701 = vpop.f32.mrb[0].mxu0
        %v3702 = vadd.f32 %v3297, %v3701
        %v3703 = vpop.f32.mrb[0].mxu0
        %v3704 = vpop.f32.mrb[0].mxu0
        %v3705 = vadd.f32 %v3297, %v3704
        %v3706 = vpop.f32.mrb[0].mxu0
        %3707 = vdwg.mxu0
        %v3708 = vmax.f32 %v3454, 0.0
        %v3709 = vmax.f32 %v3457, 0.0
        %v3710 = vmax.f32 %v3462, 0.0
        %v3711 = vmax.f32 %v3465, 0.0
        %v3712 = vmax.f32 %v3470, 0.0
        %v3713 = vmax.f32 %v3473, 0.0
        %v3714 = vmax.f32 %v3478, 0.0
        %v3715 = vmax.f32 %v3481, 0.0
        %v3716 = vmax.f32 %v3486, 0.0
        %v3717 = vmax.f32 %v3489, 0.0
        %v3718 = vmax.f32 %v3494, 0.0
        %v3719 = vmax.f32 %v3497, 0.0
        %v3720 = vmax.f32 %v3502, 0.0
        %v3721 = vmax.f32 %v3505, 0.0
        %v3722 = vmax.f32 %v3510, 0.0
        %v3723 = vmax.f32 %v3513, 0.0
        %v3724 = vmax.f32 %v3518, 0.0
        %v3725 = vmax.f32 %v3521, 0.0
        %v3726 = vmax.f32 %v3526, 0.0
        %v3727 = vmax.f32 %v3529, 0.0
        %v3728 = vmax.f32 %v3534, 0.0
        %v3729 = vmax.f32 %v3537, 0.0
        %v3730 = vmax.f32 %v3542, 0.0
        %v3731 = vmax.f32 %v3545, 0.0
        %v3732 = vmax.f32 %v3550, 0.0
        %v3733 = vmax.f32 %v3553, 0.0
        %v3734 = vmax.f32 %v3558, 0.0
        %v3735 = vmax.f32 %v3561, 0.0
        %v3736 = vmax.f32 %v3566, 0.0
        %v3737 = vmax.f32 %v3569, 0.0
        %v3738 = vmax.f32 %v3574, 0.0
        %v3739 = vmax.f32 %v3577, 0.0
        %v3740 = vmax.f32 %v3582, 0.0
        %v3741 = vmax.f32 %v3585, 0.0
        %v3742 = vmax.f32 %v3590, 0.0
        %v3743 = vmax.f32 %v3593, 0.0
        %v3744 = vmax.f32 %v3598, 0.0
        %v3745 = vmax.f32 %v3601, 0.0
        %v3746 = vmax.f32 %v3606, 0.0
        %v3747 = vmax.f32 %v3609, 0.0
        %v3748 = vmax.f32 %v3614, 0.0
        %v3749 = vmax.f32 %v3617, 0.0
        %v3750 = vmax.f32 %v3622, 0.0
        %v3751 = vmax.f32 %v3625, 0.0
        %v3752 = vmax.f32 %v3630, 0.0
        %v3753 = vmax.f32 %v3633, 0.0
        %v3754 = vmax.f32 %v3638, 0.0
        %v3755 = vmax.f32 %v3641, 0.0
        %v3756 = vmax.f32 %v3646, 0.0
        %v3757 = vmax.f32 %v3649, 0.0
        %v3758 = vmax.f32 %v3654, 0.0
        %v3759 = vmax.f32 %v3657, 0.0
        %v3760 = vmax.f32 %v3662, 0.0
        %v3761 = vmax.f32 %v3665, 0.0
        %v3762 = vmax.f32 %v3670, 0.0
        %v3763 = vmax.f32 %v3673, 0.0
        %v3764 = vmax.f32 %v3678, 0.0
        %v3765 = vmax.f32 %v3681, 0.0
        %v3766 = vmax.f32 %v3686, 0.0
        %v3767 = vmax.f32 %v3689, 0.0
        %v3768 = vmax.f32 %v3694, 0.0
        %v3769 = vmax.f32 %v3697, 0.0
        %v3770 = vmax.f32 %v3702, 0.0
        %v3771 = vmax.f32 %v3705, 0.0
        %v3772 = vpack.c.bf16 %v3709, %v3708
        %v3773 = vpack.c.bf16 %v3711, %v3710
        %v3774 = vpack.c.bf16 %v3713, %v3712
        %v3775 = vpack.c.bf16 %v3715, %v3714
        %v3776 = vpack.c.bf16 %v3717, %v3716
        %v3777 = vpack.c.bf16 %v3719, %v3718
        %v3778 = vpack.c.bf16 %v3721, %v3720
        %v3779 = vpack.c.bf16 %v3723, %v3722
        %v3780 = vpack.c.bf16 %v3725, %v3724
        %v3781 = vpack.c.bf16 %v3727, %v3726
        %v3782 = vpack.c.bf16 %v3729, %v3728
        %v3783 = vpack.c.bf16 %v3731, %v3730
        %v3784 = vpack.c.bf16 %v3733, %v3732
        %v3785 = vpack.c.bf16 %v3735, %v3734
        %v3786 = vpack.c.bf16 %v3737, %v3736
        %v3787 = vpack.c.bf16 %v3739, %v3738
        %v3788 = vpack.c.bf16 %v3741, %v3740
        %v3789 = vpack.c.bf16 %v3743, %v3742
        %v3790 = vpack.c.bf16 %v3745, %v3744
        %v3791 = vpack.c.bf16 %v3747, %v3746
        %v3792 = vpack.c.bf16 %v3749, %v3748
        %v3793 = vpack.c.bf16 %v3751, %v3750
        %v3794 = vpack.c.bf16 %v3753, %v3752
        %v3795 = vpack.c.bf16 %v3755, %v3754
        %v3796 = vpack.c.bf16 %v3757, %v3756
        %v3797 = vpack.c.bf16 %v3759, %v3758
        %v3798 = vpack.c.bf16 %v3761, %v3760
        %v3799 = vpack.c.bf16 %v3763, %v3762
        %v3800 = vpack.c.bf16 %v3765, %v3764
        %v3801 = vpack.c.bf16 %v3767, %v3766
        %v3802 = vpack.c.bf16 %v3769, %v3768
        %v3803 = vpack.c.bf16 %v3771, %v3770
        %s3804 = scalar_lea.vmem %s3, 160
        %v3805 = vld [vmem:[%s3804] sm:$0xf]
        %v3806 = vld [vmem:[%s3804 + $0x4] sm:$0xf]
        %v3807 = vld [vmem:[%s3804 + $0x8] sm:$0xf]
        %v3808 = vld [vmem:[%s3804 + $0xc] sm:$0xf]
        %v3809 = vld [vmem:[%s3804 + $0x10] sm:$0xf]
        %v3810 = vld [vmem:[%s3804 + $0x14] sm:$0xf]
        %v3811 = vld [vmem:[%s3804 + $0x18] sm:$0xf]
        %v3812 = vld [vmem:[%s3804 + $0x1c] sm:$0xf]
        %s3813 = scalar_lea.vmem %s4, 5
        %v3814 = vld [vmem:[%s3813] sm:$0x1]
        %v3816 = vlaneseq
        %v3817 = vshrl.u32 %v3816, 7
        %v3818 = vsub.s32 0, %v3817
        %v3819 = vrot.slane %v3814, %v3818
        %v3829 = vunpack.c.l.b16 %v3805
        %v3830 = vunpack.c.l.b16 %v3806
        %v3831 = vunpack.c.l.b16 %v3807
        %v3832 = vunpack.c.l.b16 %v3808
        %v3833 = vunpack.c.l.b16 %v3809
        %v3834 = vunpack.c.l.b16 %v3810
        %v3835 = vunpack.c.l.b16 %v3811
        %v3836 = vunpack.c.l.b16 %v3812
        %v3837 = vpack.c.b16 %v3830, %v3829
        %v3838 = vpack.c.b16 %v3832, %v3831
        %v3839 = vpack.c.b16 %v3834, %v3833
        %v3840 = vpack.c.b16 %v3836, %v3835
        %v3846 = vsel %vm914, %v3772, 0
        %v3849 = vsel %vm914, %v3773, 0
        %v3852 = vsel %vm914, %v3774, 0
        %v3855 = vsel %vm914, %v3775, 0
        %v3858 = vsel %vm914, %v3776, 0
        %v3861 = vsel %vm914, %v3777, 0
        %v3864 = vsel %vm914, %v3778, 0
        %v3867 = vsel %vm914, %v3779, 0
        %v3870 = vsel %vm914, %v3780, 0
        %v3873 = vsel %vm914, %v3781, 0
        %v3876 = vsel %vm914, %v3782, 0
        %v3879 = vsel %vm914, %v3783, 0
        %v3882 = vsel %vm914, %v3784, 0
        %v3885 = vsel %vm914, %v3785, 0
        %v3888 = vsel %vm914, %v3786, 0
        %v3891 = vsel %vm914, %v3787, 0
        %v3894 = vsel %vm914, %v3788, 0
        %v3897 = vsel %vm914, %v3789, 0
        %v3900 = vsel %vm914, %v3790, 0
        %v3903 = vsel %vm914, %v3791, 0
        %v3906 = vsel %vm914, %v3792, 0
        %v3909 = vsel %vm914, %v3793, 0
        %v3912 = vsel %vm914, %v3794, 0
        %v3915 = vsel %vm914, %v3795, 0
        %v3918 = vsel %vm914, %v3796, 0
        %v3921 = vsel %vm914, %v3797, 0
        %v3924 = vsel %vm914, %v3798, 0
        %v3927 = vsel %vm914, %v3799, 0
        %v3930 = vsel %vm914, %v3800, 0
        %v3933 = vsel %vm914, %v3801, 0
        %v3936 = vsel %vm914, %v3802, 0
        %v3939 = vsel %vm914, %v3803, 0
        %3941 = vmatprep.subr.bf16.mxu0 0
        %3942 = vmatpush1.bf16.msra.mxu0 %v3837
        %3943 = vmatprep.subr.bf16.mxu0 0
        %3944 = vmatpush1.bf16.msra.mxu0 %v3838
        %3945 = vmatprep.subr.bf16.mxu0 0
        %3946 = vmatpush1.bf16.msra.mxu0 %v3839
        %3947 = vmatprep.subr.bf16.mxu0 0
        %3948 = vmatpush1.bf16.msra.mxu0 %v3840
        %3949 = vmatprep.subr.bf16.mxu0 0
        %3950 = vmatpush1.bf16.msra.mxu0 0
        %3951 = vmatprep.subr.bf16.mxu0 0
        %3952 = vmatpush1.bf16.msra.mxu0 0
        %3953 = vmatprep.subr.bf16.mxu0 0
        %3954 = vmatpush1.bf16.msra.mxu0 0
        %3955 = vmatprep.subr.bf16.mxu0 0
        %3956 = vmatpush1.bf16.msra.mxu0 0
        %3957 = vmatprep.subr.bf16.mxu0 0
        %3958 = vmatpush1.bf16.msra.mxu0 0
        %3959 = vmatprep.subr.bf16.mxu0 0
        %3960 = vmatpush1.bf16.msra.mxu0 0
        %3961 = vmatprep.subr.bf16.mxu0 0
        %3962 = vmatpush1.bf16.msra.mxu0 0
        %3963 = vmatprep.subr.bf16.mxu0 0
        %3964 = vmatpush1.bf16.msra.mxu0 0
        %3965 = vmatprep.subr.bf16.mxu0 0
        %3966 = vmatpush1.bf16.msra.mxu0 0
        %3967 = vmatprep.subr.bf16.mxu0 0
        %3968 = vmatpush1.bf16.msra.mxu0 0
        %3969 = vmatprep.subr.bf16.mxu0 0
        %3970 = vmatpush1.bf16.msra.mxu0 0
        %3971 = vmatprep.subr.bf16.mxu0 0
        %3972 = vmatpush1.bf16.msra.mxu0 0
        %3973 = vmatprep.mubr.bf16.mxu0 0
        %3974 = vmatmul.mubr.bf16.gmra.mrb[0].mxu0 %v3846
        %v3975 = vpop.f32.mrb[0].mxu0
        %v3976 = vadd.f32 %v3819, %v3975
        %v3977 = vpop.f32.mrb[0].mxu0
        %v3978 = vpop.f32.mrb[0].mxu0
        %v3979 = vadd.f32 %v3819, %v3978
        %v3980 = vpop.f32.mrb[0].mxu0
        %3981 = vmatprep.mubr.bf16.mxu0 0
        %3982 = vmatmul.mubr.bf16.gmra.mrb[0].mxu0 %v3849
        %v3983 = vpop.f32.mrb[0].mxu0
        %v3984 = vadd.f32 %v3819, %v3983
        %v3985 = vpop.f32.mrb[0].mxu0
        %v3986 = vpop.f32.mrb[0].mxu0
        %v3987 = vadd.f32 %v3819, %v3986
        %v3988 = vpop.f32.mrb[0].mxu0
        %3989 = vmatprep.mubr.bf16.mxu0 0
        %3990 = vmatmul.mubr.bf16.gmra.mrb[0].mxu0 %v3852
        %v3991 = vpop.f32.mrb[0].mxu0
        %v3992 = vadd.f32 %v3819, %v3991
        %v3993 = vpop.f32.mrb[0].mxu0
        %v3994 = vpop.f32.mrb[0].mxu0
        %v3995 = vadd.f32 %v3819, %v3994
        %v3996 = vpop.f32.mrb[0].mxu0
        %3997 = vmatprep.mubr.bf16.mxu0 0
        %3998 = vmatmul.mubr.bf16.gmra.mrb[0].mxu0 %v3855
        %v3999 = vpop.f32.mrb[0].mxu0
        %v4000 = vadd.f32 %v3819, %v3999
        %v4001 = vpop.f32.mrb[0].mxu0
        %v4002 = vpop.f32.mrb[0].mxu0
        %v4003 = vadd.f32 %v3819, %v4002
        %v4004 = vpop.f32.mrb[0].mxu0
        %4005 = vmatprep.mubr.bf16.mxu0 0
        %4006 = vmatmul.mubr.bf16.gmra.mrb[0].mxu0 %v3858
        %v4007 = vpop.f32.mrb[0].mxu0
        %v4008 = vadd.f32 %v3819, %v4007
        %v4009 = vpop.f32.mrb[0].mxu0
        %v4010 = vpop.f32.mrb[0].mxu0
        %v4011 = vadd.f32 %v3819, %v4010
        %v4012 = vpop.f32.mrb[0].mxu0
        %4013 = vmatprep.mubr.bf16.mxu0 0
        %4014 = vmatmul.mubr.bf16.gmra.mrb[0].mxu0 %v3861
        %v4015 = vpop.f32.mrb[0].mxu0
        %v4016 = vadd.f32 %v3819, %v4015
        %v4017 = vpop.f32.mrb[0].mxu0
        %v4018 = vpop.f32.mrb[0].mxu0
        %v4019 = vadd.f32 %v3819, %v4018
        %v4020 = vpop.f32.mrb[0].mxu0
        %4021 = vmatprep.mubr.bf16.mxu0 0
        %4022 = vmatmul.mubr.bf16.gmra.mrb[0].mxu0 %v3864
        %v4023 = vpop.f32.mrb[0].mxu0
        %v4024 = vadd.f32 %v3819, %v4023
        %v4025 = vpop.f32.mrb[0].mxu0
        %v4026 = vpop.f32.mrb[0].mxu0
        %v4027 = vadd.f32 %v3819, %v4026
        %v4028 = vpop.f32.mrb[0].mxu0
        %4029 = vmatprep.mubr.bf16.mxu0 0
        %4030 = vmatmul.mubr.bf16.gmra.mrb[0].mxu0 %v3867
        %v4031 = vpop.f32.mrb[0].mxu0
        %v4032 = vadd.f32 %v3819, %v4031
        %v4033 = vpop.f32.mrb[0].mxu0
        %v4034 = vpop.f32.mrb[0].mxu0
        %v4035 = vadd.f32 %v3819, %v4034
        %v4036 = vpop.f32.mrb[0].mxu0
        %4037 = vmatprep.mubr.bf16.mxu0 0
        %4038 = vmatmul.mubr.bf16.gmra.mrb[0].mxu0 %v3870
        %v4039 = vpop.f32.mrb[0].mxu0
        %v4040 = vadd.f32 %v3819, %v4039
        %v4041 = vpop.f32.mrb[0].mxu0
        %v4042 = vpop.f32.mrb[0].mxu0
        %v4043 = vadd.f32 %v3819, %v4042
        %v4044 = vpop.f32.mrb[0].mxu0
        %4045 = vmatprep.mubr.bf16.mxu0 0
        %4046 = vmatmul.mubr.bf16.gmra.mrb[0].mxu0 %v3873
        %v4047 = vpop.f32.mrb[0].mxu0
        %v4048 = vadd.f32 %v3819, %v4047
        %v4049 = vpop.f32.mrb[0].mxu0
        %v4050 = vpop.f32.mrb[0].mxu0
        %v4051 = vadd.f32 %v3819, %v4050
        %v4052 = vpop.f32.mrb[0].mxu0
        %4053 = vmatprep.mubr.bf16.mxu0 0
        %4054 = vmatmul.mubr.bf16.gmra.mrb[0].mxu0 %v3876
        %v4055 = vpop.f32.mrb[0].mxu0
        %v4056 = vadd.f32 %v3819, %v4055
        %v4057 = vpop.f32.mrb[0].mxu0
        %v4058 = vpop.f32.mrb[0].mxu0
        %v4059 = vadd.f32 %v3819, %v4058
        %v4060 = vpop.f32.mrb[0].mxu0
        %4061 = vmatprep.mubr.bf16.mxu0 0
        %4062 = vmatmul.mubr.bf16.gmra.mrb[0].mxu0 %v3879
        %v4063 = vpop.f32.mrb[0].mxu0
        %v4064 = vadd.f32 %v3819, %v4063
        %v4065 = vpop.f32.mrb[0].mxu0
        %v4066 = vpop.f32.mrb[0].mxu0
        %v4067 = vadd.f32 %v3819, %v4066
        %v4068 = vpop.f32.mrb[0].mxu0
        %4069 = vmatprep.mubr.bf16.mxu0 0
        %4070 = vmatmul.mubr.bf16.gmra.mrb[0].mxu0 %v3882
        %v4071 = vpop.f32.mrb[0].mxu0
        %v4072 = vadd.f32 %v3819, %v4071
        %v4073 = vpop.f32.mrb[0].mxu0
        %v4074 = vpop.f32.mrb[0].mxu0
        %v4075 = vadd.f32 %v3819, %v4074
        %v4076 = vpop.f32.mrb[0].mxu0
        %4077 = vmatprep.mubr.bf16.mxu0 0
        %4078 = vmatmul.mubr.bf16.gmra.mrb[0].mxu0 %v3885
        %v4079 = vpop.f32.mrb[0].mxu0
        %v4080 = vadd.f32 %v3819, %v4079
        %v4081 = vpop.f32.mrb[0].mxu0
        %v4082 = vpop.f32.mrb[0].mxu0
        %v4083 = vadd.f32 %v3819, %v4082
        %v4084 = vpop.f32.mrb[0].mxu0
        %4085 = vmatprep.mubr.bf16.mxu0 0
        %4086 = vmatmul.mubr.bf16.gmra.mrb[0].mxu0 %v3888
        %v4087 = vpop.f32.mrb[0].mxu0
        %v4088 = vadd.f32 %v3819, %v4087
        %v4089 = vpop.f32.mrb[0].mxu0
        %v4090 = vpop.f32.mrb[0].mxu0
        %v4091 = vadd.f32 %v3819, %v4090
        %v4092 = vpop.f32.mrb[0].mxu0
        %4093 = vmatprep.mubr.bf16.mxu0 0
        %4094 = vmatmul.mubr.bf16.gmra.mrb[0].mxu0 %v3891
        %v4095 = vpop.f32.mrb[0].mxu0
        %v4096 = vadd.f32 %v3819, %v4095
        %v4097 = vpop.f32.mrb[0].mxu0
        %v4098 = vpop.f32.mrb[0].mxu0
        %v4099 = vadd.f32 %v3819, %v4098
        %v4100 = vpop.f32.mrb[0].mxu0
        %4101 = vmatprep.mubr.bf16.mxu0 0
        %4102 = vmatmul.mubr.bf16.gmra.mrb[0].mxu0 %v3894
        %v4103 = vpop.f32.mrb[0].mxu0
        %v4104 = vadd.f32 %v3819, %v4103
        %v4105 = vpop.f32.mrb[0].mxu0
        %v4106 = vpop.f32.mrb[0].mxu0
        %v4107 = vadd.f32 %v3819, %v4106
        %v4108 = vpop.f32.mrb[0].mxu0
        %4109 = vmatprep.mubr.bf16.mxu0 0
        %4110 = vmatmul.mubr.bf16.gmra.mrb[0].mxu0 %v3897
        %v4111 = vpop.f32.mrb[0].mxu0
        %v4112 = vadd.f32 %v3819, %v4111
        %v4113 = vpop.f32.mrb[0].mxu0
        %v4114 = vpop.f32.mrb[0].mxu0
        %v4115 = vadd.f32 %v3819, %v4114
        %v4116 = vpop.f32.mrb[0].mxu0
        %4117 = vmatprep.mubr.bf16.mxu0 0
        %4118 = vmatmul.mubr.bf16.gmra.mrb[0].mxu0 %v3900
        %v4119 = vpop.f32.mrb[0].mxu0
        %v4120 = vadd.f32 %v3819, %v4119
        %v4121 = vpop.f32.mrb[0].mxu0
        %v4122 = vpop.f32.mrb[0].mxu0
        %v4123 = vadd.f32 %v3819, %v4122
        %v4124 = vpop.f32.mrb[0].mxu0
        %4125 = vmatprep.mubr.bf16.mxu0 0
        %4126 = vmatmul.mubr.bf16.gmra.mrb[0].mxu0 %v3903
        %v4127 = vpop.f32.mrb[0].mxu0
        %v4128 = vadd.f32 %v3819, %v4127
        %v4129 = vpop.f32.mrb[0].mxu0
        %v4130 = vpop.f32.mrb[0].mxu0
        %v4131 = vadd.f32 %v3819, %v4130
        %v4132 = vpop.f32.mrb[0].mxu0
        %4133 = vmatprep.mubr.bf16.mxu0 0
        %4134 = vmatmul.mubr.bf16.gmra.mrb[0].mxu0 %v3906
        %v4135 = vpop.f32.mrb[0].mxu0
        %v4136 = vadd.f32 %v3819, %v4135
        %v4137 = vpop.f32.mrb[0].mxu0
        %v4138 = vpop.f32.mrb[0].mxu0
        %v4139 = vadd.f32 %v3819, %v4138
        %v4140 = vpop.f32.mrb[0].mxu0
        %4141 = vmatprep.mubr.bf16.mxu0 0
        %4142 = vmatmul.mubr.bf16.gmra.mrb[0].mxu0 %v3909
        %v4143 = vpop.f32.mrb[0].mxu0
        %v4144 = vadd.f32 %v3819, %v4143
        %v4145 = vpop.f32.mrb[0].mxu0
        %v4146 = vpop.f32.mrb[0].mxu0
        %v4147 = vadd.f32 %v3819, %v4146
        %v4148 = vpop.f32.mrb[0].mxu0
        %4149 = vmatprep.mubr.bf16.mxu0 0
        %4150 = vmatmul.mubr.bf16.gmra.mrb[0].mxu0 %v3912
        %v4151 = vpop.f32.mrb[0].mxu0
        %v4152 = vadd.f32 %v3819, %v4151
        %v4153 = vpop.f32.mrb[0].mxu0
        %v4154 = vpop.f32.mrb[0].mxu0
        %v4155 = vadd.f32 %v3819, %v4154
        %v4156 = vpop.f32.mrb[0].mxu0
        %4157 = vmatprep.mubr.bf16.mxu0 0
        %4158 = vmatmul.mubr.bf16.gmra.mrb[0].mxu0 %v3915
        %v4159 = vpop.f32.mrb[0].mxu0
        %v4160 = vadd.f32 %v3819, %v4159
        %v4161 = vpop.f32.mrb[0].mxu0
        %v4162 = vpop.f32.mrb[0].mxu0
        %v4163 = vadd.f32 %v3819, %v4162
        %v4164 = vpop.f32.mrb[0].mxu0
        %4165 = vmatprep.mubr.bf16.mxu0 0
        %4166 = vmatmul.mubr.bf16.gmra.mrb[0].mxu0 %v3918
        %v4167 = vpop.f32.mrb[0].mxu0
        %v4168 = vadd.f32 %v3819, %v4167
        %v4169 = vpop.f32.mrb[0].mxu0
        %v4170 = vpop.f32.mrb[0].mxu0
        %v4171 = vadd.f32 %v3819, %v4170
        %v4172 = vpop.f32.mrb[0].mxu0
        %4173 = vmatprep.mubr.bf16.mxu0 0
        %4174 = vmatmul.mubr.bf16.gmra.mrb[0].mxu0 %v3921
        %v4175 = vpop.f32.mrb[0].mxu0
        %v4176 = vadd.f32 %v3819, %v4175
        %v4177 = vpop.f32.mrb[0].mxu0
        %v4178 = vpop.f32.mrb[0].mxu0
        %v4179 = vadd.f32 %v3819, %v4178
        %v4180 = vpop.f32.mrb[0].mxu0
        %4181 = vmatprep.mubr.bf16.mxu0 0
        %4182 = vmatmul.mubr.bf16.gmra.mrb[0].mxu0 %v3924
        %v4183 = vpop.f32.mrb[0].mxu0
        %v4184 = vadd.f32 %v3819, %v4183
        %v4185 = vpop.f32.mrb[0].mxu0
        %v4186 = vpop.f32.mrb[0].mxu0
        %v4187 = vadd.f32 %v3819, %v4186
        %v4188 = vpop.f32.mrb[0].mxu0
        %4189 = vmatprep.mubr.bf16.mxu0 0
        %4190 = vmatmul.mubr.bf16.gmra.mrb[0].mxu0 %v3927
        %v4191 = vpop.f32.mrb[0].mxu0
        %v4192 = vadd.f32 %v3819, %v4191
        %v4193 = vpop.f32.mrb[0].mxu0
        %v4194 = vpop.f32.mrb[0].mxu0
        %v4195 = vadd.f32 %v3819, %v4194
        %v4196 = vpop.f32.mrb[0].mxu0
        %4197 = vmatprep.mubr.bf16.mxu0 0
        %4198 = vmatmul.mubr.bf16.gmra.mrb[0].mxu0 %v3930
        %v4199 = vpop.f32.mrb[0].mxu0
        %v4200 = vadd.f32 %v3819, %v4199
        %v4201 = vpop.f32.mrb[0].mxu0
        %v4202 = vpop.f32.mrb[0].mxu0
        %v4203 = vadd.f32 %v3819, %v4202
        %v4204 = vpop.f32.mrb[0].mxu0
        %4205 = vmatprep.mubr.bf16.mxu0 0
        %4206 = vmatmul.mubr.bf16.gmra.mrb[0].mxu0 %v3933
        %v4207 = vpop.f32.mrb[0].mxu0
        %v4208 = vadd.f32 %v3819, %v4207
        %v4209 = vpop.f32.mrb[0].mxu0
        %v4210 = vpop.f32.mrb[0].mxu0
        %v4211 = vadd.f32 %v3819, %v4210
        %v4212 = vpop.f32.mrb[0].mxu0
        %4213 = vmatprep.mubr.bf16.mxu0 0
        %4214 = vmatmul.mubr.bf16.gmra.mrb[0].mxu0 %v3936
        %v4215 = vpop.f32.mrb[0].mxu0
        %v4216 = vadd.f32 %v3819, %v4215
        %v4217 = vpop.f32.mrb[0].mxu0
        %v4218 = vpop.f32.mrb[0].mxu0
        %v4219 = vadd.f32 %v3819, %v4218
        %v4220 = vpop.f32.mrb[0].mxu0
        %4221 = vmatprep.mubr.bf16.mxu0 0
        %4222 = vmatmul.mubr.bf16.gmra.mrb[0].mxu0 %v3939
        %v4223 = vpop.f32.mrb[0].mxu0
        %v4224 = vadd.f32 %v3819, %v4223
        %v4225 = vpop.f32.mrb[0].mxu0
        %v4226 = vpop.f32.mrb[0].mxu0
        %v4227 = vadd.f32 %v3819, %v4226
        %v4228 = vpop.f32.mrb[0].mxu0
        %4229 = vdwg.mxu0
        %v4230 = vmax.f32 %v3976, 0.0
        %v4231 = vmax.f32 %v3979, 0.0
        %v4232 = vmax.f32 %v3984, 0.0
        %v4233 = vmax.f32 %v3987, 0.0
        %v4234 = vmax.f32 %v3992, 0.0
        %v4235 = vmax.f32 %v3995, 0.0
        %v4236 = vmax.f32 %v4000, 0.0
        %v4237 = vmax.f32 %v4003, 0.0
        %v4238 = vmax.f32 %v4008, 0.0
        %v4239 = vmax.f32 %v4011, 0.0
        %v4240 = vmax.f32 %v4016, 0.0
        %v4241 = vmax.f32 %v4019, 0.0
        %v4242 = vmax.f32 %v4024, 0.0
        %v4243 = vmax.f32 %v4027, 0.0
        %v4244 = vmax.f32 %v4032, 0.0
        %v4245 = vmax.f32 %v4035, 0.0
        %v4246 = vmax.f32 %v4040, 0.0
        %v4247 = vmax.f32 %v4043, 0.0
        %v4248 = vmax.f32 %v4048, 0.0
        %v4249 = vmax.f32 %v4051, 0.0
        %v4250 = vmax.f32 %v4056, 0.0
        %v4251 = vmax.f32 %v4059, 0.0
        %v4252 = vmax.f32 %v4064, 0.0
        %v4253 = vmax.f32 %v4067, 0.0
        %v4254 = vmax.f32 %v4072, 0.0
        %v4255 = vmax.f32 %v4075, 0.0
        %v4256 = vmax.f32 %v4080, 0.0
        %v4257 = vmax.f32 %v4083, 0.0
        %v4258 = vmax.f32 %v4088, 0.0
        %v4259 = vmax.f32 %v4091, 0.0
        %v4260 = vmax.f32 %v4096, 0.0
        %v4261 = vmax.f32 %v4099, 0.0
        %v4262 = vmax.f32 %v4104, 0.0
        %v4263 = vmax.f32 %v4107, 0.0
        %v4264 = vmax.f32 %v4112, 0.0
        %v4265 = vmax.f32 %v4115, 0.0
        %v4266 = vmax.f32 %v4120, 0.0
        %v4267 = vmax.f32 %v4123, 0.0
        %v4268 = vmax.f32 %v4128, 0.0
        %v4269 = vmax.f32 %v4131, 0.0
        %v4270 = vmax.f32 %v4136, 0.0
        %v4271 = vmax.f32 %v4139, 0.0
        %v4272 = vmax.f32 %v4144, 0.0
        %v4273 = vmax.f32 %v4147, 0.0
        %v4274 = vmax.f32 %v4152, 0.0
        %v4275 = vmax.f32 %v4155, 0.0
        %v4276 = vmax.f32 %v4160, 0.0
        %v4277 = vmax.f32 %v4163, 0.0
        %v4278 = vmax.f32 %v4168, 0.0
        %v4279 = vmax.f32 %v4171, 0.0
        %v4280 = vmax.f32 %v4176, 0.0
        %v4281 = vmax.f32 %v4179, 0.0
        %v4282 = vmax.f32 %v4184, 0.0
        %v4283 = vmax.f32 %v4187, 0.0
        %v4284 = vmax.f32 %v4192, 0.0
        %v4285 = vmax.f32 %v4195, 0.0
        %v4286 = vmax.f32 %v4200, 0.0
        %v4287 = vmax.f32 %v4203, 0.0
        %v4288 = vmax.f32 %v4208, 0.0
        %v4289 = vmax.f32 %v4211, 0.0
        %v4290 = vmax.f32 %v4216, 0.0
        %v4291 = vmax.f32 %v4219, 0.0
        %v4292 = vmax.f32 %v4224, 0.0
        %v4293 = vmax.f32 %v4227, 0.0
        %v4294 = vpack.c.bf16 %v4231, %v4230
        %v4295 = vpack.c.bf16 %v4233, %v4232
        %v4296 = vpack.c.bf16 %v4235, %v4234
        %v4297 = vpack.c.bf16 %v4237, %v4236
        %v4298 = vpack.c.bf16 %v4239, %v4238
        %v4299 = vpack.c.bf16 %v4241, %v4240
        %v4300 = vpack.c.bf16 %v4243, %v4242
        %v4301 = vpack.c.bf16 %v4245, %v4244
        %v4302 = vpack.c.bf16 %v4247, %v4246
        %v4303 = vpack.c.bf16 %v4249, %v4248
        %v4304 = vpack.c.bf16 %v4251, %v4250
        %v4305 = vpack.c.bf16 %v4253, %v4252
        %v4306 = vpack.c.bf16 %v4255, %v4254
        %v4307 = vpack.c.bf16 %v4257, %v4256
        %v4308 = vpack.c.bf16 %v4259, %v4258
        %v4309 = vpack.c.bf16 %v4261, %v4260
        %v4310 = vpack.c.bf16 %v4263, %v4262
        %v4311 = vpack.c.bf16 %v4265, %v4264
        %v4312 = vpack.c.bf16 %v4267, %v4266
        %v4313 = vpack.c.bf16 %v4269, %v4268
        %v4314 = vpack.c.bf16 %v4271, %v4270
        %v4315 = vpack.c.bf16 %v4273, %v4272
        %v4316 = vpack.c.bf16 %v4275, %v4274
        %v4317 = vpack.c.bf16 %v4277, %v4276
        %v4318 = vpack.c.bf16 %v4279, %v4278
        %v4319 = vpack.c.bf16 %v4281, %v4280
        %v4320 = vpack.c.bf16 %v4283, %v4282
        %v4321 = vpack.c.bf16 %v4285, %v4284
        %v4322 = vpack.c.bf16 %v4287, %v4286
        %v4323 = vpack.c.bf16 %v4289, %v4288
        %v4324 = vpack.c.bf16 %v4291, %v4290
        %v4325 = vpack.c.bf16 %v4293, %v4292
        %s4326 = scalar_lea.vmem %s3, 192
        %v4327 = vld [vmem:[%s4326] sm:$0xf]
        %v4328 = vld [vmem:[%s4326 + $0x4] sm:$0xf]
        %v4329 = vld [vmem:[%s4326 + $0x8] sm:$0xf]
        %v4330 = vld [vmem:[%s4326 + $0xc] sm:$0xf]
        %v4331 = vld [vmem:[%s4326 + $0x10] sm:$0xf]
        %v4332 = vld [vmem:[%s4326 + $0x14] sm:$0xf]
        %v4333 = vld [vmem:[%s4326 + $0x18] sm:$0xf]
        %v4334 = vld [vmem:[%s4326 + $0x1c] sm:$0xf]
        %s4335 = scalar_lea.vmem %s4, 6
        %v4336 = vld [vmem:[%s4335] sm:$0x1]
        %v4338 = vlaneseq
        %v4339 = vshrl.u32 %v4338, 7
        %v4340 = vsub.s32 0, %v4339
        %v4341 = vrot.slane %v4336, %v4340
        %v4351 = vunpack.c.l.b16 %v4327
        %v4352 = vunpack.c.l.b16 %v4328
        %v4353 = vunpack.c.l.b16 %v4329
        %v4354 = vunpack.c.l.b16 %v4330
        %v4355 = vunpack.c.l.b16 %v4331
        %v4356 = vunpack.c.l.b16 %v4332
        %v4357 = vunpack.c.l.b16 %v4333
        %v4358 = vunpack.c.l.b16 %v4334
        %v4359 = vpack.c.b16 %v4352, %v4351
        %v4360 = vpack.c.b16 %v4354, %v4353
        %v4361 = vpack.c.b16 %v4356, %v4355
        %v4362 = vpack.c.b16 %v4358, %v4357
        %v4368 = vsel %vm914, %v4294, 0
        %v4371 = vsel %vm914, %v4295, 0
        %v4374 = vsel %vm914, %v4296, 0
        %v4377 = vsel %vm914, %v4297, 0
        %v4380 = vsel %vm914, %v4298, 0
        %v4383 = vsel %vm914, %v4299, 0
        %v4386 = vsel %vm914, %v4300, 0
        %v4389 = vsel %vm914, %v4301, 0
        %v4392 = vsel %vm914, %v4302, 0
        %v4395 = vsel %vm914, %v4303, 0
        %v4398 = vsel %vm914, %v4304, 0
        %v4401 = vsel %vm914, %v4305, 0
        %v4404 = vsel %vm914, %v4306, 0
        %v4407 = vsel %vm914, %v4307, 0
        %v4410 = vsel %vm914, %v4308, 0
        %v4413 = vsel %vm914, %v4309, 0
        %v4416 = vsel %vm914, %v4310, 0
        %v4419 = vsel %vm914, %v4311, 0
        %v4422 = vsel %vm914, %v4312, 0
        %v4425 = vsel %vm914, %v4313, 0
        %v4428 = vsel %vm914, %v4314, 0
        %v4431 = vsel %vm914, %v4315, 0
        %v4434 = vsel %vm914, %v4316, 0
        %v4437 = vsel %vm914, %v4317, 0
        %v4440 = vsel %vm914, %v4318, 0
        %v4443 = vsel %vm914, %v4319, 0
        %v4446 = vsel %vm914, %v4320, 0
        %v4449 = vsel %vm914, %v4321, 0
        %v4452 = vsel %vm914, %v4322, 0
        %v4455 = vsel %vm914, %v4323, 0
        %v4458 = vsel %vm914, %v4324, 0
        %v4461 = vsel %vm914, %v4325, 0
        %4463 = vmatprep.subr.bf16.mxu0 0
        %4464 = vmatpush1.bf16.msra.mxu0 %v4359
        %4465 = vmatprep.subr.bf16.mxu0 0
        %4466 = vmatpush1.bf16.msra.mxu0 %v4360
        %4467 = vmatprep.subr.bf16.mxu0 0
        %4468 = vmatpush1.bf16.msra.mxu0 %v4361
        %4469 = vmatprep.subr.bf16.mxu0 0
        %4470 = vmatpush1.bf16.msra.mxu0 %v4362
        %4471 = vmatprep.subr.bf16.mxu0 0
        %4472 = vmatpush1.bf16.msra.mxu0 0
        %4473 = vmatprep.subr.bf16.mxu0 0
        %4474 = vmatpush1.bf16.msra.mxu0 0
        %4475 = vmatprep.subr.bf16.mxu0 0
        %4476 = vmatpush1.bf16.msra.mxu0 0
        %4477 = vmatprep.subr.bf16.mxu0 0
        %4478 = vmatpush1.bf16.msra.mxu0 0
        %4479 = vmatprep.subr.bf16.mxu0 0
        %4480 = vmatpush1.bf16.msra.mxu0 0
        %4481 = vmatprep.subr.bf16.mxu0 0
        %4482 = vmatpush1.bf16.msra.mxu0 0
        %4483 = vmatprep.subr.bf16.mxu0 0
        %4484 = vmatpush1.bf16.msra.mxu0 0
        %4485 = vmatprep.subr.bf16.mxu0 0
        %4486 = vmatpush1.bf16.msra.mxu0 0
        %4487 = vmatprep.subr.bf16.mxu0 0
        %4488 = vmatpush1.bf16.msra.mxu0 0
        %4489 = vmatprep.subr.bf16.mxu0 0
        %4490 = vmatpush1.bf16.msra.mxu0 0
        %4491 = vmatprep.subr.bf16.mxu0 0
        %4492 = vmatpush1.bf16.msra.mxu0 0
        %4493 = vmatprep.subr.bf16.mxu0 0
        %4494 = vmatpush1.bf16.msra.mxu0 0
        %4495 = vmatprep.mubr.bf16.mxu0 0
        %4496 = vmatmul.mubr.bf16.gmra.mrb[0].mxu0 %v4368
        %v4497 = vpop.f32.mrb[0].mxu0
        %v4498 = vadd.f32 %v4341, %v4497
        %v4499 = vpop.f32.mrb[0].mxu0
        %v4500 = vpop.f32.mrb[0].mxu0
        %v4501 = vadd.f32 %v4341, %v4500
        %v4502 = vpop.f32.mrb[0].mxu0
        %4503 = vmatprep.mubr.bf16.mxu0 0
        %4504 = vmatmul.mubr.bf16.gmra.mrb[0].mxu0 %v4371
        %v4505 = vpop.f32.mrb[0].mxu0
        %v4506 = vadd.f32 %v4341, %v4505
        %v4507 = vpop.f32.mrb[0].mxu0
        %v4508 = vpop.f32.mrb[0].mxu0
        %v4509 = vadd.f32 %v4341, %v4508
        %v4510 = vpop.f32.mrb[0].mxu0
        %4511 = vmatprep.mubr.bf16.mxu0 0
        %4512 = vmatmul.mubr.bf16.gmra.mrb[0].mxu0 %v4374
        %v4513 = vpop.f32.mrb[0].mxu0
        %v4514 = vadd.f32 %v4341, %v4513
        %v4515 = vpop.f32.mrb[0].mxu0
        %v4516 = vpop.f32.mrb[0].mxu0
        %v4517 = vadd.f32 %v4341, %v4516
        %v4518 = vpop.f32.mrb[0].mxu0
        %4519 = vmatprep.mubr.bf16.mxu0 0
        %4520 = vmatmul.mubr.bf16.gmra.mrb[0].mxu0 %v4377
        %v4521 = vpop.f32.mrb[0].mxu0
        %v4522 = vadd.f32 %v4341, %v4521
        %v4523 = vpop.f32.mrb[0].mxu0
        %v4524 = vpop.f32.mrb[0].mxu0
        %v4525 = vadd.f32 %v4341, %v4524
        %v4526 = vpop.f32.mrb[0].mxu0
        %4527 = vmatprep.mubr.bf16.mxu0 0
        %4528 = vmatmul.mubr.bf16.gmra.mrb[0].mxu0 %v4380
        %v4529 = vpop.f32.mrb[0].mxu0
        %v4530 = vadd.f32 %v4341, %v4529
        %v4531 = vpop.f32.mrb[0].mxu0
        %v4532 = vpop.f32.mrb[0].mxu0
        %v4533 = vadd.f32 %v4341, %v4532
        %v4534 = vpop.f32.mrb[0].mxu0
        %4535 = vmatprep.mubr.bf16.mxu0 0
        %4536 = vmatmul.mubr.bf16.gmra.mrb[0].mxu0 %v4383
        %v4537 = vpop.f32.mrb[0].mxu0
        %v4538 = vadd.f32 %v4341, %v4537
        %v4539 = vpop.f32.mrb[0].mxu0
        %v4540 = vpop.f32.mrb[0].mxu0
        %v4541 = vadd.f32 %v4341, %v4540
        %v4542 = vpop.f32.mrb[0].mxu0
        %4543 = vmatprep.mubr.bf16.mxu0 0
        %4544 = vmatmul.mubr.bf16.gmra.mrb[0].mxu0 %v4386
        %v4545 = vpop.f32.mrb[0].mxu0
        %v4546 = vadd.f32 %v4341, %v4545
        %v4547 = vpop.f32.mrb[0].mxu0
        %v4548 = vpop.f32.mrb[0].mxu0
        %v4549 = vadd.f32 %v4341, %v4548
        %v4550 = vpop.f32.mrb[0].mxu0
        %4551 = vmatprep.mubr.bf16.mxu0 0
        %4552 = vmatmul.mubr.bf16.gmra.mrb[0].mxu0 %v4389
        %v4553 = vpop.f32.mrb[0].mxu0
        %v4554 = vadd.f32 %v4341, %v4553
        %v4555 = vpop.f32.mrb[0].mxu0
        %v4556 = vpop.f32.mrb[0].mxu0
        %v4557 = vadd.f32 %v4341, %v4556
        %v4558 = vpop.f32.mrb[0].mxu0
        %4559 = vmatprep.mubr.bf16.mxu0 0
        %4560 = vmatmul.mubr.bf16.gmra.mrb[0].mxu0 %v4392
        %v4561 = vpop.f32.mrb[0].mxu0
        %v4562 = vadd.f32 %v4341, %v4561
        %v4563 = vpop.f32.mrb[0].mxu0
        %v4564 = vpop.f32.mrb[0].mxu0
        %v4565 = vadd.f32 %v4341, %v4564
        %v4566 = vpop.f32.mrb[0].mxu0
        %4567 = vmatprep.mubr.bf16.mxu0 0
        %4568 = vmatmul.mubr.bf16.gmra.mrb[0].mxu0 %v4395
        %v4569 = vpop.f32.mrb[0].mxu0
        %v4570 = vadd.f32 %v4341, %v4569
        %v4571 = vpop.f32.mrb[0].mxu0
        %v4572 = vpop.f32.mrb[0].mxu0
        %v4573 = vadd.f32 %v4341, %v4572
        %v4574 = vpop.f32.mrb[0].mxu0
        %4575 = vmatprep.mubr.bf16.mxu0 0
        %4576 = vmatmul.mubr.bf16.gmra.mrb[0].mxu0 %v4398
        %v4577 = vpop.f32.mrb[0].mxu0
        %v4578 = vadd.f32 %v4341, %v4577
        %v4579 = vpop.f32.mrb[0].mxu0
        %v4580 = vpop.f32.mrb[0].mxu0
        %v4581 = vadd.f32 %v4341, %v4580
        %v4582 = vpop.f32.mrb[0].mxu0
        %4583 = vmatprep.mubr.bf16.mxu0 0
        %4584 = vmatmul.mubr.bf16.gmra.mrb[0].mxu0 %v4401
        %v4585 = vpop.f32.mrb[0].mxu0
        %v4586 = vadd.f32 %v4341, %v4585
        %v4587 = vpop.f32.mrb[0].mxu0
        %v4588 = vpop.f32.mrb[0].mxu0
        %v4589 = vadd.f32 %v4341, %v4588
        %v4590 = vpop.f32.mrb[0].mxu0
        %4591 = vmatprep.mubr.bf16.mxu0 0
        %4592 = vmatmul.mubr.bf16.gmra.mrb[0].mxu0 %v4404
        %v4593 = vpop.f32.mrb[0].mxu0
        %v4594 = vadd.f32 %v4341, %v4593
        %v4595 = vpop.f32.mrb[0].mxu0
        %v4596 = vpop.f32.mrb[0].mxu0
        %v4597 = vadd.f32 %v4341, %v4596
        %v4598 = vpop.f32.mrb[0].mxu0
        %4599 = vmatprep.mubr.bf16.mxu0 0
        %4600 = vmatmul.mubr.bf16.gmra.mrb[0].mxu0 %v4407
        %v4601 = vpop.f32.mrb[0].mxu0
        %v4602 = vadd.f32 %v4341, %v4601
        %v4603 = vpop.f32.mrb[0].mxu0
        %v4604 = vpop.f32.mrb[0].mxu0
        %v4605 = vadd.f32 %v4341, %v4604
        %v4606 = vpop.f32.mrb[0].mxu0
        %4607 = vmatprep.mubr.bf16.mxu0 0
        %4608 = vmatmul.mubr.bf16.gmra.mrb[0].mxu0 %v4410
        %v4609 = vpop.f32.mrb[0].mxu0
        %v4610 = vadd.f32 %v4341, %v4609
        %v4611 = vpop.f32.mrb[0].mxu0
        %v4612 = vpop.f32.mrb[0].mxu0
        %v4613 = vadd.f32 %v4341, %v4612
        %v4614 = vpop.f32.mrb[0].mxu0
        %4615 = vmatprep.mubr.bf16.mxu0 0
        %4616 = vmatmul.mubr.bf16.gmra.mrb[0].mxu0 %v4413
        %v4617 = vpop.f32.mrb[0].mxu0
        %v4618 = vadd.f32 %v4341, %v4617
        %v4619 = vpop.f32.mrb[0].mxu0
        %v4620 = vpop.f32.mrb[0].mxu0
        %v4621 = vadd.f32 %v4341, %v4620
        %v4622 = vpop.f32.mrb[0].mxu0
        %4623 = vmatprep.mubr.bf16.mxu0 0
        %4624 = vmatmul.mubr.bf16.gmra.mrb[0].mxu0 %v4416
        %v4625 = vpop.f32.mrb[0].mxu0
        %v4626 = vadd.f32 %v4341, %v4625
        %v4627 = vpop.f32.mrb[0].mxu0
        %v4628 = vpop.f32.mrb[0].mxu0
        %v4629 = vadd.f32 %v4341, %v4628
        %v4630 = vpop.f32.mrb[0].mxu0
        %4631 = vmatprep.mubr.bf16.mxu0 0
        %4632 = vmatmul.mubr.bf16.gmra.mrb[0].mxu0 %v4419
        %v4633 = vpop.f32.mrb[0].mxu0
        %v4634 = vadd.f32 %v4341, %v4633
        %v4635 = vpop.f32.mrb[0].mxu0
        %v4636 = vpop.f32.mrb[0].mxu0
        %v4637 = vadd.f32 %v4341, %v4636
        %v4638 = vpop.f32.mrb[0].mxu0
        %4639 = vmatprep.mubr.bf16.mxu0 0
        %4640 = vmatmul.mubr.bf16.gmra.mrb[0].mxu0 %v4422
        %v4641 = vpop.f32.mrb[0].mxu0
        %v4642 = vadd.f32 %v4341, %v4641
        %v4643 = vpop.f32.mrb[0].mxu0
        %v4644 = vpop.f32.mrb[0].mxu0
        %v4645 = vadd.f32 %v4341, %v4644
        %v4646 = vpop.f32.mrb[0].mxu0
        %4647 = vmatprep.mubr.bf16.mxu0 0
        %4648 = vmatmul.mubr.bf16.gmra.mrb[0].mxu0 %v4425
        %v4649 = vpop.f32.mrb[0].mxu0
        %v4650 = vadd.f32 %v4341, %v4649
        %v4651 = vpop.f32.mrb[0].mxu0
        %v4652 = vpop.f32.mrb[0].mxu0
        %v4653 = vadd.f32 %v4341, %v4652
        %v4654 = vpop.f32.mrb[0].mxu0
        %4655 = vmatprep.mubr.bf16.mxu0 0
        %4656 = vmatmul.mubr.bf16.gmra.mrb[0].mxu0 %v4428
        %v4657 = vpop.f32.mrb[0].mxu0
        %v4658 = vadd.f32 %v4341, %v4657
        %v4659 = vpop.f32.mrb[0].mxu0
        %v4660 = vpop.f32.mrb[0].mxu0
        %v4661 = vadd.f32 %v4341, %v4660
        %v4662 = vpop.f32.mrb[0].mxu0
        %4663 = vmatprep.mubr.bf16.mxu0 0
        %4664 = vmatmul.mubr.bf16.gmra.mrb[0].mxu0 %v4431
        %v4665 = vpop.f32.mrb[0].mxu0
        %v4666 = vadd.f32 %v4341, %v4665
        %v4667 = vpop.f32.mrb[0].mxu0
        %v4668 = vpop.f32.mrb[0].mxu0
        %v4669 = vadd.f32 %v4341, %v4668
        %v4670 = vpop.f32.mrb[0].mxu0
        %4671 = vmatprep.mubr.bf16.mxu0 0
        %4672 = vmatmul.mubr.bf16.gmra.mrb[0].mxu0 %v4434
        %v4673 = vpop.f32.mrb[0].mxu0
        %v4674 = vadd.f32 %v4341, %v4673
        %v4675 = vpop.f32.mrb[0].mxu0
        %v4676 = vpop.f32.mrb[0].mxu0
        %v4677 = vadd.f32 %v4341, %v4676
        %v4678 = vpop.f32.mrb[0].mxu0
        %4679 = vmatprep.mubr.bf16.mxu0 0
        %4680 = vmatmul.mubr.bf16.gmra.mrb[0].mxu0 %v4437
        %v4681 = vpop.f32.mrb[0].mxu0
        %v4682 = vadd.f32 %v4341, %v4681
        %v4683 = vpop.f32.mrb[0].mxu0
        %v4684 = vpop.f32.mrb[0].mxu0
        %v4685 = vadd.f32 %v4341, %v4684
        %v4686 = vpop.f32.mrb[0].mxu0
        %4687 = vmatprep.mubr.bf16.mxu0 0
        %4688 = vmatmul.mubr.bf16.gmra.mrb[0].mxu0 %v4440
        %v4689 = vpop.f32.mrb[0].mxu0
        %v4690 = vadd.f32 %v4341, %v4689
        %v4691 = vpop.f32.mrb[0].mxu0
        %v4692 = vpop.f32.mrb[0].mxu0
        %v4693 = vadd.f32 %v4341, %v4692
        %v4694 = vpop.f32.mrb[0].mxu0
        %4695 = vmatprep.mubr.bf16.mxu0 0
        %4696 = vmatmul.mubr.bf16.gmra.mrb[0].mxu0 %v4443
        %v4697 = vpop.f32.mrb[0].mxu0
        %v4698 = vadd.f32 %v4341, %v4697
        %v4699 = vpop.f32.mrb[0].mxu0
        %v4700 = vpop.f32.mrb[0].mxu0
        %v4701 = vadd.f32 %v4341, %v4700
        %v4702 = vpop.f32.mrb[0].mxu0
        %4703 = vmatprep.mubr.bf16.mxu0 0
        %4704 = vmatmul.mubr.bf16.gmra.mrb[0].mxu0 %v4446
        %v4705 = vpop.f32.mrb[0].mxu0
        %v4706 = vadd.f32 %v4341, %v4705
        %v4707 = vpop.f32.mrb[0].mxu0
        %v4708 = vpop.f32.mrb[0].mxu0
        %v4709 = vadd.f32 %v4341, %v4708
        %v4710 = vpop.f32.mrb[0].mxu0
        %4711 = vmatprep.mubr.bf16.mxu0 0
        %4712 = vmatmul.mubr.bf16.gmra.mrb[0].mxu0 %v4449
        %v4713 = vpop.f32.mrb[0].mxu0
        %v4714 = vadd.f32 %v4341, %v4713
        %v4715 = vpop.f32.mrb[0].mxu0
        %v4716 = vpop.f32.mrb[0].mxu0
        %v4717 = vadd.f32 %v4341, %v4716
        %v4718 = vpop.f32.mrb[0].mxu0
        %4719 = vmatprep.mubr.bf16.mxu0 0
        %4720 = vmatmul.mubr.bf16.gmra.mrb[0].mxu0 %v4452
        %v4721 = vpop.f32.mrb[0].mxu0
        %v4722 = vadd.f32 %v4341, %v4721
        %v4723 = vpop.f32.mrb[0].mxu0
        %v4724 = vpop.f32.mrb[0].mxu0
        %v4725 = vadd.f32 %v4341, %v4724
        %v4726 = vpop.f32.mrb[0].mxu0
        %4727 = vmatprep.mubr.bf16.mxu0 0
        %4728 = vmatmul.mubr.bf16.gmra.mrb[0].mxu0 %v4455
        %v4729 = vpop.f32.mrb[0].mxu0
        %v4730 = vadd.f32 %v4341, %v4729
        %v4731 = vpop.f32.mrb[0].mxu0
        %v4732 = vpop.f32.mrb[0].mxu0
        %v4733 = vadd.f32 %v4341, %v4732
        %v4734 = vpop.f32.mrb[0].mxu0
        %4735 = vmatprep.mubr.bf16.mxu0 0
        %4736 = vmatmul.mubr.bf16.gmra.mrb[0].mxu0 %v4458
        %v4737 = vpop.f32.mrb[0].mxu0
        %v4738 = vadd.f32 %v4341, %v4737
        %v4739 = vpop.f32.mrb[0].mxu0
        %v4740 = vpop.f32.mrb[0].mxu0
        %v4741 = vadd.f32 %v4341, %v4740
        %v4742 = vpop.f32.mrb[0].mxu0
        %4743 = vmatprep.mubr.bf16.mxu0 0
        %4744 = vmatmul.mubr.bf16.gmra.mrb[0].mxu0 %v4461
        %v4745 = vpop.f32.mrb[0].mxu0
        %v4746 = vadd.f32 %v4341, %v4745
        %v4747 = vpop.f32.mrb[0].mxu0
        %v4748 = vpop.f32.mrb[0].mxu0
        %v4749 = vadd.f32 %v4341, %v4748
        %v4750 = vpop.f32.mrb[0].mxu0
        %4751 = vdwg.mxu0
        %v4752 = vmax.f32 %v4498, 0.0
        %v4753 = vmax.f32 %v4501, 0.0
        %v4754 = vmax.f32 %v4506, 0.0
        %v4755 = vmax.f32 %v4509, 0.0
        %v4756 = vmax.f32 %v4514, 0.0
        %v4757 = vmax.f32 %v4517, 0.0
        %v4758 = vmax.f32 %v4522, 0.0
        %v4759 = vmax.f32 %v4525, 0.0
        %v4760 = vmax.f32 %v4530, 0.0
        %v4761 = vmax.f32 %v4533, 0.0
        %v4762 = vmax.f32 %v4538, 0.0
        %v4763 = vmax.f32 %v4541, 0.0
        %v4764 = vmax.f32 %v4546, 0.0
        %v4765 = vmax.f32 %v4549, 0.0
        %v4766 = vmax.f32 %v4554, 0.0
        %v4767 = vmax.f32 %v4557, 0.0
        %v4768 = vmax.f32 %v4562, 0.0
        %v4769 = vmax.f32 %v4565, 0.0
        %v4770 = vmax.f32 %v4570, 0.0
        %v4771 = vmax.f32 %v4573, 0.0
        %v4772 = vmax.f32 %v4578, 0.0
        %v4773 = vmax.f32 %v4581, 0.0
        %v4774 = vmax.f32 %v4586, 0.0
        %v4775 = vmax.f32 %v4589, 0.0
        %v4776 = vmax.f32 %v4594, 0.0
        %v4777 = vmax.f32 %v4597, 0.0
        %v4778 = vmax.f32 %v4602, 0.0
        %v4779 = vmax.f32 %v4605, 0.0
        %v4780 = vmax.f32 %v4610, 0.0
        %v4781 = vmax.f32 %v4613, 0.0
        %v4782 = vmax.f32 %v4618, 0.0
        %v4783 = vmax.f32 %v4621, 0.0
        %v4784 = vmax.f32 %v4626, 0.0
        %v4785 = vmax.f32 %v4629, 0.0
        %v4786 = vmax.f32 %v4634, 0.0
        %v4787 = vmax.f32 %v4637, 0.0
        %v4788 = vmax.f32 %v4642, 0.0
        %v4789 = vmax.f32 %v4645, 0.0
        %v4790 = vmax.f32 %v4650, 0.0
        %v4791 = vmax.f32 %v4653, 0.0
        %v4792 = vmax.f32 %v4658, 0.0
        %v4793 = vmax.f32 %v4661, 0.0
        %v4794 = vmax.f32 %v4666, 0.0
        %v4795 = vmax.f32 %v4669, 0.0
        %v4796 = vmax.f32 %v4674, 0.0
        %v4797 = vmax.f32 %v4677, 0.0
        %v4798 = vmax.f32 %v4682, 0.0
        %v4799 = vmax.f32 %v4685, 0.0
        %v4800 = vmax.f32 %v4690, 0.0
        %v4801 = vmax.f32 %v4693, 0.0
        %v4802 = vmax.f32 %v4698, 0.0
        %v4803 = vmax.f32 %v4701, 0.0
        %v4804 = vmax.f32 %v4706, 0.0
        %v4805 = vmax.f32 %v4709, 0.0
        %v4806 = vmax.f32 %v4714, 0.0
        %v4807 = vmax.f32 %v4717, 0.0
        %v4808 = vmax.f32 %v4722, 0.0
        %v4809 = vmax.f32 %v4725, 0.0
        %v4810 = vmax.f32 %v4730, 0.0
        %v4811 = vmax.f32 %v4733, 0.0
        %v4812 = vmax.f32 %v4738, 0.0
        %v4813 = vmax.f32 %v4741, 0.0
        %v4814 = vmax.f32 %v4746, 0.0
        %v4815 = vmax.f32 %v4749, 0.0
        %v4816 = vld [vmem:[%s5] sm:$0x1]
        %v4817 = vld [vmem:[#allocation2] sm:$0x1]
        %4819 = vset.pattern.permute.xlu0 0
        %4820 = vperm.xlu0 %4819, %v4817
        %v4821 = vpop.permute.xlu0 %4820
        %v4823 = vlaneseq
        %v4824 = vshrl.u32 %v4823, 7
        %v4825 = vsub.s32 0, %v4824
        %v4826 = vrot.slane %v4821, %v4825
        %v4828 = vsel %vm914, %v4816, 0
        %v4831 = vsel %vm914, %v4752, 0
        %v4834 = vsel %vm914, %v4753, 0
        %v4837 = vsel %vm914, %v4754, 0
        %v4840 = vsel %vm914, %v4755, 0
        %v4843 = vsel %vm914, %v4756, 0
        %v4846 = vsel %vm914, %v4757, 0
        %v4849 = vsel %vm914, %v4758, 0
        %v4852 = vsel %vm914, %v4759, 0
        %v4855 = vsel %vm914, %v4760, 0
        %v4858 = vsel %vm914, %v4761, 0
        %v4861 = vsel %vm914, %v4762, 0
        %v4864 = vsel %vm914, %v4763, 0
        %v4867 = vsel %vm914, %v4764, 0
        %v4870 = vsel %vm914, %v4765, 0
        %v4873 = vsel %vm914, %v4766, 0
        %v4876 = vsel %vm914, %v4767, 0
        %v4879 = vsel %vm914, %v4768, 0
        %v4882 = vsel %vm914, %v4769, 0
        %v4885 = vsel %vm914, %v4770, 0
        %v4888 = vsel %vm914, %v4771, 0
        %v4891 = vsel %vm914, %v4772, 0
        %v4894 = vsel %vm914, %v4773, 0
        %v4897 = vsel %vm914, %v4774, 0
        %v4900 = vsel %vm914, %v4775, 0
        %v4903 = vsel %vm914, %v4776, 0
        %v4906 = vsel %vm914, %v4777, 0
        %v4909 = vsel %vm914, %v4778, 0
        %v4912 = vsel %vm914, %v4779, 0
        %v4915 = vsel %vm914, %v4780, 0
        %v4918 = vsel %vm914, %v4781, 0
        %v4921 = vsel %vm914, %v4782, 0
        %v4924 = vsel %vm914, %v4783, 0
        %v4927 = vsel %vm914, %v4784, 0
        %v4930 = vsel %vm914, %v4785, 0
        %v4933 = vsel %vm914, %v4786, 0
        %v4936 = vsel %vm914, %v4787, 0
        %v4939 = vsel %vm914, %v4788, 0
        %v4942 = vsel %vm914, %v4789, 0
        %v4945 = vsel %vm914, %v4790, 0
        %v4948 = vsel %vm914, %v4791, 0
        %v4951 = vsel %vm914, %v4792, 0
        %v4954 = vsel %vm914, %v4793, 0
        %v4957 = vsel %vm914, %v4794, 0
        %v4960 = vsel %vm914, %v4795, 0
        %v4963 = vsel %vm914, %v4796, 0
        %v4966 = vsel %vm914, %v4797, 0
        %v4969 = vsel %vm914, %v4798, 0
        %v4972 = vsel %vm914, %v4799, 0
        %v4975 = vsel %vm914, %v4800, 0
        %v4978 = vsel %vm914, %v4801, 0
        %v4981 = vsel %vm914, %v4802, 0
        %v4984 = vsel %vm914, %v4803, 0
        %v4987 = vsel %vm914, %v4804, 0
        %v4990 = vsel %vm914, %v4805, 0
        %v4993 = vsel %vm914, %v4806, 0
        %v4996 = vsel %vm914, %v4807, 0
        %v4999 = vsel %vm914, %v4808, 0
        %v5002 = vsel %vm914, %v4809, 0
        %v5005 = vsel %vm914, %v4810, 0
        %v5008 = vsel %vm914, %v4811, 0
        %v5011 = vsel %vm914, %v4812, 0
        %v5014 = vsel %vm914, %v4813, 0
        %v5017 = vsel %vm914, %v4814, 0
        %v5020 = vsel %vm914, %v4815, 0
        %5022 = vmatprep.subr.mxu0 0.0
        %5023 = vmatpush1.xpose.msra.mxu0 %v4831
        %5024 = vmatprep.subr.mxu0 0.0
        %5025 = vmatpush1.xpose.msra.mxu0 %v4834
        %5026 = vmatprep.subr.mxu0 0.0
        %5027 = vmatpush1.xpose.msra.mxu0 %v4837
        %5028 = vmatprep.subr.mxu0 0.0
        %5029 = vmatpush1.xpose.msra.mxu0 %v4840
        %5030 = vmatprep.subr.mxu0 0.0
        %5031 = vmatpush1.xpose.msra.mxu0 %v4843
        %5032 = vmatprep.subr.mxu0 0.0
        %5033 = vmatpush1.xpose.msra.mxu0 %v4846
        %5034 = vmatprep.subr.mxu0 0.0
        %5035 = vmatpush1.xpose.msra.mxu0 %v4849
        %5036 = vmatprep.subr.mxu0 0.0
        %5037 = vmatpush1.xpose.msra.mxu0 %v4852
        %5038 = vmatprep.subr.mxu0 0.0
        %5039 = vmatpush1.xpose.msra.mxu0 %v4855
        %5040 = vmatprep.subr.mxu0 0.0
        %5041 = vmatpush1.xpose.msra.mxu0 %v4858
        %5042 = vmatprep.subr.mxu0 0.0
        %5043 = vmatpush1.xpose.msra.mxu0 %v4861
        %5044 = vmatprep.subr.mxu0 0.0
        %5045 = vmatpush1.xpose.msra.mxu0 %v4864
        %5046 = vmatprep.subr.mxu0 0.0
        %5047 = vmatpush1.xpose.msra.mxu0 %v4867
        %5048 = vmatprep.subr.mxu0 0.0
        %5049 = vmatpush1.xpose.msra.mxu0 %v4870
        %5050 = vmatprep.subr.mxu0 0.0
        %5051 = vmatpush1.xpose.msra.mxu0 %v4873
        %5052 = vmatprep.subr.mxu0 0.0
        %5053 = vmatpush1.xpose.msra.mxu0 %v4876
        %5054 = vmatprep.subr.mxu0 0.0
        %5055 = vmatpush1.xpose.msra.mxu0 %v4879
        %5056 = vmatprep.subr.mxu0 0.0
        %5057 = vmatpush1.xpose.msra.mxu0 %v4882
        %5058 = vmatprep.subr.mxu0 0.0
        %5059 = vmatpush1.xpose.msra.mxu0 %v4885
        %5060 = vmatprep.subr.mxu0 0.0
        %5061 = vmatpush1.xpose.msra.mxu0 %v4888
        %5062 = vmatprep.subr.mxu0 0.0
        %5063 = vmatpush1.xpose.msra.mxu0 %v4891
        %5064 = vmatprep.subr.mxu0 0.0
        %5065 = vmatpush1.xpose.msra.mxu0 %v4894
        %5066 = vmatprep.subr.mxu0 0.0
        %5067 = vmatpush1.xpose.msra.mxu0 %v4897
        %5068 = vmatprep.subr.mxu0 0.0
        %5069 = vmatpush1.xpose.msra.mxu0 %v4900
        %5070 = vmatprep.subr.mxu0 0.0
        %5071 = vmatpush1.xpose.msra.mxu0 %v4903
        %5072 = vmatprep.subr.mxu0 0.0
        %5073 = vmatpush1.xpose.msra.mxu0 %v4906
        %5074 = vmatprep.subr.mxu0 0.0
        %5075 = vmatpush1.xpose.msra.mxu0 %v4909
        %5076 = vmatprep.subr.mxu0 0.0
        %5077 = vmatpush1.xpose.msra.mxu0 %v4912
        %5078 = vmatprep.subr.mxu0 0.0
        %5079 = vmatpush1.xpose.msra.mxu0 %v4915
        %5080 = vmatprep.subr.mxu0 0.0
        %5081 = vmatpush1.xpose.msra.mxu0 %v4918
        %5082 = vmatprep.subr.mxu0 0.0
        %5083 = vmatpush1.xpose.msra.mxu0 %v4921
        %5084 = vmatprep.subr.mxu0 0.0
        %5085 = vmatpush1.xpose.msra.mxu0 %v4924
        %5086 = vmatprep.mubr.f32.mxu0 0.0
        %5087 = vmatmul.mubr.f32.gmra.mrb[0].mxu0 %v4828
        %v5088 = vpop.f32.mrb[0].mxu0
        %v5089 = vadd.f32 %v4826, %v5088
        %v5090 = vpop.f32.mrb[0].mxu0
        %v5091 = vadd.f32 %v4826, %v5090
        %5092 = vdwg.mxu0
        %5093 = vmatprep.subr.mxu0 0.0
        %5094 = vmatpush1.xpose.msra.mxu0 %v4927
        %5095 = vmatprep.subr.mxu0 0.0
        %5096 = vmatpush1.xpose.msra.mxu0 %v4930
        %5097 = vmatprep.subr.mxu0 0.0
        %5098 = vmatpush1.xpose.msra.mxu0 %v4933
        %5099 = vmatprep.subr.mxu0 0.0
        %5100 = vmatpush1.xpose.msra.mxu0 %v4936
        %5101 = vmatprep.subr.mxu0 0.0
        %5102 = vmatpush1.xpose.msra.mxu0 %v4939
        %5103 = vmatprep.subr.mxu0 0.0
        %5104 = vmatpush1.xpose.msra.mxu0 %v4942
        %5105 = vmatprep.subr.mxu0 0.0
        %5106 = vmatpush1.xpose.msra.mxu0 %v4945
        %5107 = vmatprep.subr.mxu0 0.0
        %5108 = vmatpush1.xpose.msra.mxu0 %v4948
        %5109 = vmatprep.subr.mxu0 0.0
        %5110 = vmatpush1.xpose.msra.mxu0 %v4951
        %5111 = vmatprep.subr.mxu0 0.0
        %5112 = vmatpush1.xpose.msra.mxu0 %v4954
        %5113 = vmatprep.subr.mxu0 0.0
        %5114 = vmatpush1.xpose.msra.mxu0 %v4957
        %5115 = vmatprep.subr.mxu0 0.0
        %5116 = vmatpush1.xpose.msra.mxu0 %v4960
        %5117 = vmatprep.subr.mxu0 0.0
        %5118 = vmatpush1.xpose.msra.mxu0 %v4963
        %5119 = vmatprep.subr.mxu0 0.0
        %5120 = vmatpush1.xpose.msra.mxu0 %v4966
        %5121 = vmatprep.subr.mxu0 0.0
        %5122 = vmatpush1.xpose.msra.mxu0 %v4969
        %5123 = vmatprep.subr.mxu0 0.0
        %5124 = vmatpush1.xpose.msra.mxu0 %v4972
        %5125 = vmatprep.subr.mxu0 0.0
        %5126 = vmatpush1.xpose.msra.mxu0 %v4975
        %5127 = vmatprep.subr.mxu0 0.0
        %5128 = vmatpush1.xpose.msra.mxu0 %v4978
        %5129 = vmatprep.subr.mxu0 0.0
        %5130 = vmatpush1.xpose.msra.mxu0 %v4981
        %5131 = vmatprep.subr.mxu0 0.0
        %5132 = vmatpush1.xpose.msra.mxu0 %v4984
        %5133 = vmatprep.subr.mxu0 0.0
        %5134 = vmatpush1.xpose.msra.mxu0 %v4987
        %5135 = vmatprep.subr.mxu0 0.0
        %5136 = vmatpush1.xpose.msra.mxu0 %v4990
        %5137 = vmatprep.subr.mxu0 0.0
        %5138 = vmatpush1.xpose.msra.mxu0 %v4993
        %5139 = vmatprep.subr.mxu0 0.0
        %5140 = vmatpush1.xpose.msra.mxu0 %v4996
        %5141 = vmatprep.subr.mxu0 0.0
        %5142 = vmatpush1.xpose.msra.mxu0 %v4999
        %5143 = vmatprep.subr.mxu0 0.0
        %5144 = vmatpush1.xpose.msra.mxu0 %v5002
        %5145 = vmatprep.subr.mxu0 0.0
        %5146 = vmatpush1.xpose.msra.mxu0 %v5005
        %5147 = vmatprep.subr.mxu0 0.0
        %5148 = vmatpush1.xpose.msra.mxu0 %v5008
        %5149 = vmatprep.subr.mxu0 0.0
        %5150 = vmatpush1.xpose.msra.mxu0 %v5011
        %5151 = vmatprep.subr.mxu0 0.0
        %5152 = vmatpush1.xpose.msra.mxu0 %v5014
        %5153 = vmatprep.subr.mxu0 0.0
        %5154 = vmatpush1.xpose.msra.mxu0 %v5017
        %5155 = vmatprep.subr.mxu0 0.0
        %5156 = vmatpush1.xpose.msra.mxu0 %v5020
        %5157 = vmatprep.mubr.f32.mxu0 0.0
        %5158 = vmatmul.mubr.f32.gmra.mrb[0].mxu0 %v4828
        %v5159 = vpop.f32.mrb[0].mxu0
        %v5160 = vadd.f32 %v4826, %v5159
        %v5161 = vpop.f32.mrb[0].mxu0
        %v5162 = vadd.f32 %v4826, %v5161
        %5163 = vdwg.mxu0
        %v5168 = vcombine.low %v5089, %v5091
        %v5169 = vcombine.low %v5160, %v5162
        %v5171 = vunpack.c.l.s4 1966171168
        %v5172 = vunpack.c.0.s8 %v5171
        %v5173 = vlaneseq
        %v5174 = vshrl.u32 %v5173, 7
        %v5175 = vsub.s32 %v5172, %v5174
        %v5176 = vrot.slane %v5168, %v5175
        %v5178 = vunpack.c.l.s4 1966171168
        %v5179 = vunpack.c.0.s8 %v5178
        %v5180 = vlaneseq
        %v5181 = vshrl.u32 %v5180, 7
        %v5182 = vsub.s32 %v5179, %v5181
        %v5183 = vrot.slane %v5169, %v5182
        %v5184 = vcombine.low %v5176, %v5183
        %v5186 = vunpack.c.l.s4 1966171168
        %v5187 = vunpack.c.0.s8 %v5186
        %v5188 = vlaneseq
        %v5189 = vshrl.u32 %v5188, 7
        %v5190 = vsub.s32 %v5187, %v5189
        %v5191 = vrot.slane %v5184, %v5190
        %v5193 = vlaneseq
        %vm5194 = vcmp.ge.s32.totalorder %v5193, 0
        %vm5195 = vcmp.lt.s32.totalorder %v5193, 512
        %vm5196 = vmand %vm5194, %vm5195
        %5197 = vst.msk [vmem:[%s274] sm:$0xf] %vm5196, %v5191
        %s5198 = sand.u32 %s183, 1
        %s5199 = scalar_lea.sflag [#allocation4], %s5198
        %s5200 = sand.u32 %s183, 1
        %s5201 = smul.addr %s5200, 4
        %s5202 = scalar_lea.vmem [#allocation3], %s5201
        // Predicated region
        $region49: #{tpu_custom_call.1} parent=47 // pred_check
          %p5203 = pneg %p193
        $region50: #{tpu_custom_call.1} parent=47 // pred_check_branch
          %5205 = sbr.rel (%p5203) target = $region52
        $region51: #{tpu_custom_call.1} parent=47 // pred_region
          %s5207 = ssub.s32 64, 64
          %5208 = vsyncadd %s5199, %s5207
          %s5209 = smul.addr %s23, 4
          %s5210 = smul.addr %s5209, 16
          %s5211 = scalar_lea.hbm %s7, %s5210
          %s5213 = sshll.u32 %s5202, 4
          %s5214 = int_to_ptr.vmem [resolvable:$true] %s5213
          %5216 = dma.vmem_to_hbm [thread:$0]  %s5214, 64, %s5211, %s5199
        $region52: #{tpu_custom_call.1} parent=47 // pred_fallthru
          _
      $region48: #{tpu_custom_call.1} parent=5 // pred_fallthru
        _
      %p5217 = scmp.le.s32.totalorder 2, %s18
      // Predicated region
      $region53: #{tpu_custom_call.1} parent=5 // pred_check
        %p5218 = pneg %p5217
      $region54: #{tpu_custom_call.1} parent=5 // pred_check_branch
        %5220 = sbr.rel (%p5218) target = $region56
      $region55: #{tpu_custom_call.1} parent=5 // pred_region
        %s5221 = ssub.s32 %s18, 2
        // Predicated region
        $region57: #{tpu_custom_call.1} parent=55 // pred_check
          %p5222 = pneg %p199
        $region58: #{tpu_custom_call.1} parent=55 // pred_check_branch
          %5224 = sbr.rel (%p5222) target = $region60
        $region59: #{tpu_custom_call.1} parent=55 // pred_region
          %s5225 = sand.u32 %s184, 1
          %s5226 = scalar_lea.sflag [#allocation4], %s5225
          %s5227 = sand.u32 %s184, 1
          %s5228 = smul.addr %s5227, 4
          %s5229 = scalar_lea.vmem [#allocation3], %s5228
          %5230 = dma.done %s5226, 64
        $region60: #{tpu_custom_call.1} parent=55 // pred_fallthru
          _
      $region56: #{tpu_custom_call.1} parent=5 // pred_fallthru
        _
    $region6: #{tpu_custom_call.1} parent=1 // loop_footer
      %s22 = sadd.s32 1, %s18
    $region7: #{tpu_custom_call.1} parent=1 // loop_footer_branch
      %17 = sbr.rel target = $region3
    $region8: #{tpu_custom_call.1} parent=1 // loop_exit
      _
    %5231 = vsyncpa [#allocation4], 1
    %s5232 = scalar_lea.sflag [#allocation4], 1
    %5233 = vsyncpa %s5232, 1

</llo_original>
